<compile_context>
chip_gen: v5e
topology: v5e:2x2
jax: 0.10.0
libtpu: 0.0.40
codegen_flags: <defaults>
</compile_context>

<pallas_src>
import functools
import math

import jax
import jax.numpy as jnp
from jax.experimental import pallas as pl
from jax.experimental.pallas import tpu as pltpu

# ----------------------------- model config ---------------------------------
HIDDEN = 64
NUM_HEADS = 4
HEAD_DIM = HIDDEN // NUM_HEADS          # 16
HD = NUM_HEADS * HEAD_DIM               # 64
MLP_RATIO = 4.0
MLP_HIDDEN = int(HIDDEN * MLP_RATIO)    # 256
QKV_DIM = 3 * HD                        # 192

B = 2
L_X = 8
L_TXT = 4

F32 = jnp.float32
BF16 = jnp.bfloat16
VMEM = pltpu.MemorySpace.VMEM


# ----------------------------- fused kernel ---------------------------------
def _double_stream_kernel(
    # activations
    x_ref, txt_ref, cond_ref,
    # modality embeddings
    scene_emb_ref, text_emb_ref,
    # modulation linears
    x_mod_w_ref, x_mod_b_ref, txt_mod_w_ref, txt_mod_b_ref,
    # qkv linears
    x_qkv_w_ref, x_qkv_b_ref, txt_qkv_w_ref, txt_qkv_b_ref,
    # qk RMSNorm scales
    x_q_scale_ref, x_k_scale_ref, txt_q_scale_ref, txt_k_scale_ref,
    # post-attention linears
    x_post_w_ref, x_post_b_ref, txt_post_w_ref, txt_post_b_ref,
    # MLPs
    x_mlp_w1_ref, x_mlp_b1_ref, x_mlp_w2_ref, x_mlp_b2_ref,
    txt_mlp_w1_ref, txt_mlp_b1_ref, txt_mlp_w2_ref, txt_mlp_b2_ref,
    # outputs
    x_out_ref, txt_out_ref,
    *, num_heads,
):
    batch = x_ref.shape[0]
    lx = x_ref.shape[1]
    lt = txt_ref.shape[1]
    hidden = x_ref.shape[2]
    hd = x_post_w_ref.shape[0]          # num_heads * head_dim
    head_dim = hd // num_heads
    attn_scale = 1.0 / math.sqrt(head_dim)

    def dot(a_f32, w_ref):
        # bf16 MXU operands, f32 accumulation.
        return jnp.dot(a_f32.astype(BF16), w_ref[...],
                       preferred_element_type=F32)

    def layernorm(v):                    # eps=1e-6, no affine
        mu = jnp.mean(v, axis=-1, keepdims=True)
        var = jnp.mean((v - mu) * (v - mu), axis=-1, keepdims=True)
        return (v - mu) * jax.lax.rsqrt(var + 1e-6)

    def gelu_tanh(v):
        return 0.5 * v * (1.0 + jnp.tanh(
            0.7978845608028654 * (v + 0.044715 * v * v * v)))

    def silu(v):
        return v * (1.0 / (1.0 + jnp.exp(-v)))

    def qk_rmsnorm(qk, scale_row):
        # qk: (L, H*D) lane-packed; per-head RMS over each 16-lane group.
        parts = []
        for h in range(num_heads):
            blk = qk[:, h * head_dim:(h + 1) * head_dim]
            rrms = jax.lax.rsqrt(
                jnp.mean(blk * blk, axis=-1, keepdims=True) + 1e-6)
            parts.append(blk * rrms * scale_row)
        return jnp.concatenate(parts, axis=-1)

    scene_emb = scene_emb_ref[...]       # (1, hidden)
    text_emb = text_emb_ref[...]
    x_q_scale = x_q_scale_ref[...]       # (1, head_dim)
    x_k_scale = x_k_scale_ref[...]
    t_q_scale = txt_q_scale_ref[...]
    t_k_scale = txt_k_scale_ref[...]

    # Fully unrolled over the (tiny) batch: every op below is a plain 2-D
    # VMEM tile op; everything stays resident in VMEM for the whole block.
    for b in range(batch):
        x = x_ref[b] + scene_emb         # (lx, hidden)
        txt = txt_ref[b] + text_emb      # (lt, hidden)
        cond = cond_ref[b:b + 1, :]      # (1, hidden)

        # ---- modulation: SiLU(cond) computed once, both streams fused ----
        sc = silu(cond)
        x_mod = dot(sc, x_mod_w_ref) + x_mod_b_ref[...]     # (1, 6*hidden)
        t_mod = dot(sc, txt_mod_w_ref) + txt_mod_b_ref[...]
        x_shift1 = x_mod[:, 0:hidden]
        x_scale1 = x_mod[:, hidden:2 * hidden]
        x_gate1 = x_mod[:, 2 * hidden:3 * hidden]
        x_shift2 = x_mod[:, 3 * hidden:4 * hidden]
        x_scale2 = x_mod[:, 4 * hidden:5 * hidden]
        x_gate2 = x_mod[:, 5 * hidden:6 * hidden]
        t_shift1 = t_mod[:, 0:hidden]
        t_scale1 = t_mod[:, hidden:2 * hidden]
        t_gate1 = t_mod[:, 2 * hidden:3 * hidden]
        t_shift2 = t_mod[:, 3 * hidden:4 * hidden]
        t_scale2 = t_mod[:, 4 * hidden:5 * hidden]
        t_gate2 = t_mod[:, 5 * hidden:6 * hidden]

        # ---- pre-norm + modulate + QKV projections ----
        x_modulated = (1.0 + x_scale1) * layernorm(x) + x_shift1
        x_qkv = dot(x_modulated, x_qkv_w_ref) + x_qkv_b_ref[...]  # (lx, 3*hd)
        t_modulated = (1.0 + t_scale1) * layernorm(txt) + t_shift1
        t_qkv = dot(t_modulated, txt_qkv_w_ref) + txt_qkv_b_ref[...]

        x_q = qk_rmsnorm(x_qkv[:, 0:hd], x_q_scale)
        x_k = qk_rmsnorm(x_qkv[:, hd:2 * hd], x_k_scale)
        x_v = x_qkv[:, 2 * hd:3 * hd]
        t_q = qk_rmsnorm(t_qkv[:, 0:hd], t_q_scale)
        t_k = qk_rmsnorm(t_qkv[:, hd:2 * hd], t_k_scale)
        t_v = t_qkv[:, 2 * hd:3 * hd]

        # joint sequence (txt first, then x), lane-packed (L, H*D) layout
        q = jnp.concatenate([t_q, x_q], axis=0)      # (lt+lx, hd)
        k = jnp.concatenate([t_k, x_k], axis=0)
        v = jnp.concatenate([t_v, x_v], axis=0)

        # ---- attention, per head on the packed layout ----
        head_outs = []
        for h in range(num_heads):
            sl = slice(h * head_dim, (h + 1) * head_dim)
            qh = q[:, sl].astype(BF16)
            kh_t = k[:, sl].T.astype(BF16)           # f32 transpose, then cast
            vh = v[:, sl].astype(BF16)
            s = jnp.dot(qh, kh_t, preferred_element_type=F32) * attn_scale
            s = s - jnp.max(s, axis=-1, keepdims=True)
            p = jnp.exp(s)
            p = p * pl.reciprocal(jnp.sum(p, axis=-1, keepdims=True),
                                  approx=True)
            head_outs.append(
                jnp.dot(p.astype(BF16), vh, preferred_element_type=F32))
        attn = jnp.concatenate(head_outs, axis=-1)   # (L, H*D) == 'L (H D)'
        txt_attn = attn[0:lt, :]
        x_attn = attn[lt:lt + lx, :]

        # ---- scene stream: post-attn linear + gated residual + MLP ----
        x_out = x + x_gate1 * (dot(x_attn, x_post_w_ref) + x_post_b_ref[...])
        x_mlp_in = (1.0 + x_scale2) * layernorm(x_out) + x_shift2
        x_h = gelu_tanh(dot(x_mlp_in, x_mlp_w1_ref) + x_mlp_b1_ref[...])
        x_out = x_out + x_gate2 * (dot(x_h, x_mlp_w2_ref) + x_mlp_b2_ref[...])
        x_out_ref[b] = x_out

        # ---- text stream ----
        t_out = txt + t_gate1 * (dot(txt_attn, txt_post_w_ref)
                                 + txt_post_b_ref[...])
        t_mlp_in = (1.0 + t_scale2) * layernorm(t_out) + t_shift2
        t_h = gelu_tanh(dot(t_mlp_in, txt_mlp_w1_ref) + txt_mlp_b1_ref[...])
        t_out = t_out + t_gate2 * (dot(t_h, txt_mlp_w2_ref)
                                   + txt_mlp_b2_ref[...])
        txt_out_ref[b] = t_out


# ------------------------------- wrapper -------------------------------------
@jax.jit
def double_stream_block(params, x, txt, cond):
    def w(p):    # matmul weights feed the MXU in bf16
        return p.astype(BF16)

    def row(p):  # biases / per-feature vectors as (1, dim) f32 rows
        return p.reshape(1, -1).astype(F32)

    inputs = (
        x.astype(F32), txt.astype(F32), cond.astype(F32),
        row(params["scene_emb"]), row(params["text_emb"]),
        w(params["x_mod_w"]), row(params["x_mod_b"]),
        w(params["txt_mod_w"]), row(params["txt_mod_b"]),
        w(params["x_qkv_w"]), row(params["x_qkv_b"]),
        w(params["txt_qkv_w"]), row(params["txt_qkv_b"]),
        row(params["x_q_scale"]), row(params["x_k_scale"]),
        row(params["txt_q_scale"]), row(params["txt_k_scale"]),
        w(params["x_post_w"]), row(params["x_post_b"]),
        w(params["txt_post_w"]), row(params["txt_post_b"]),
        w(params["x_mlp_w1"]), row(params["x_mlp_b1"]),
        w(params["x_mlp_w2"]), row(params["x_mlp_b2"]),
        w(params["txt_mlp_w1"]), row(params["txt_mlp_b1"]),
        w(params["txt_mlp_w2"]), row(params["txt_mlp_b2"]),
    )
    n_in = len(inputs)
    out_shape = (
        jax.ShapeDtypeStruct((x.shape[0], x.shape[1], HIDDEN), F32),
        jax.ShapeDtypeStruct((txt.shape[0], txt.shape[1], HIDDEN), F32),
    )
    return pl.pallas_call(
        functools.partial(_double_stream_kernel, num_heads=NUM_HEADS),
        out_shape=out_shape,
        in_specs=[pl.BlockSpec(memory_space=VMEM)] * n_in,
        out_specs=(pl.BlockSpec(memory_space=VMEM),
                   pl.BlockSpec(memory_space=VMEM)),
    )(*inputs)


# ----------------------------- pure-JAX reference ----------------------------
def reference_forward(params, x, txt, cond):
    def silu(v):
        return v * jax.nn.sigmoid(v)

    def ln(v):
        mu = jnp.mean(v, -1, keepdims=True)
        var = jnp.mean((v - mu) ** 2, -1, keepdims=True)
        return (v - mu) * jax.lax.rsqrt(var + 1e-6)

    def gelu(v):
        return 0.5 * v * (1.0 + jnp.tanh(
            0.7978845608028654 * (v + 0.044715 * v ** 3)))

    def rms(v, s):
        rr = jax.lax.rsqrt(jnp.mean(v * v, -1, keepdims=True) + 1e-6)
        return v * rr * s

    x = x + params["scene_emb"].reshape(1, 1, -1)
    txt = txt + params["text_emb"].reshape(1, 1, -1)

    def mod6(wk, bk):
        m = silu(cond) @ params[wk] + params[bk]
        return jnp.split(m[:, None, :], 6, axis=-1)

    xs1, xc1, xg1, xs2, xc2, xg2 = mod6("x_mod_w", "x_mod_b")
    ts1, tc1, tg1, ts2, tc2, tg2 = mod6("txt_mod_w", "txt_mod_b")

    def qkv(v, wk, bk):
        out = v @ params[wk] + params[bk]
        b_, l_ = v.shape[:2]
        out = out.reshape(b_, l_, 3, NUM_HEADS, HEAD_DIM)
        return out[:, :, 0], out[:, :, 1], out[:, :, 2]   # (B, L, H, D)

    xq, xk, xv = qkv((1 + xc1) * ln(x) + xs1, "x_qkv_w", "x_qkv_b")
    xq, xk = rms(xq, params["x_q_scale"]), rms(xk, params["x_k_scale"])
    tq, tk, tv = qkv((1 + tc1) * ln(txt) + ts1, "txt_qkv_w", "txt_qkv_b")
    tq, tk = rms(tq, params["txt_q_scale"]), rms(tk, params["txt_k_scale"])

    q = jnp.concatenate([tq, xq], axis=1)
    k = jnp.concatenate([tk, xk], axis=1)
    v = jnp.concatenate([tv, xv], axis=1)
    s = jnp.einsum("blhd,bmhd->bhlm", q, k) / math.sqrt(HEAD_DIM)
    p = jax.nn.softmax(s, axis=-1)
    attn = jnp.einsum("bhlm,bmhd->blhd", p, v)
    attn = attn.reshape(q.shape[0], q.shape[1], -1)
    lt = txt.shape[1]
    t_attn, x_attn = attn[:, :lt], attn[:, lt:]

    def mlp(v, w1, b1, w2, b2):
        return gelu(v @ params[w1] + params[b1]) @ params[w2] + params[b2]

    x_out = x + xg1 * (x_attn @ params["x_post_w"] + params["x_post_b"])
    x_out = x_out + xg2 * mlp((1 + xc2) * ln(x_out) + xs2,
                              "x_mlp_w1", "x_mlp_b1", "x_mlp_w2", "x_mlp_b2")
    t_out = txt + tg1 * (t_attn @ params["txt_post_w"] + params["txt_post_b"])
    t_out = t_out + tg2 * mlp((1 + tc2) * ln(t_out) + ts2,
                              "txt_mlp_w1", "txt_mlp_b1",
                              "txt_mlp_w2", "txt_mlp_b2")
    return x_out, t_out


# ----------------------------- parameter init --------------------------------
class _KeyGen:
    def __init__(self, key):
        self.key = key

    def __call__(self):
        self.key, sub = jax.random.split(self.key)
        return sub


def init_params(key):
    kg = _KeyGen(key)

    def lin(din, dout, std=0.02):
        return (std * jax.random.normal(kg(), (din, dout), F32),
                std * jax.random.normal(kg(), (dout,), F32))

    p = {
        "scene_emb": jax.random.normal(kg(), (1, 1, HIDDEN), F32),
        "text_emb": jax.random.normal(kg(), (1, 1, HIDDEN), F32),
        "x_q_scale": jnp.ones((HEAD_DIM,), F32),
        "x_k_scale": jnp.ones((HEAD_DIM,), F32),
        "txt_q_scale": jnp.ones((HEAD_DIM,), F32),
        "txt_k_scale": jnp.ones((HEAD_DIM,), F32),
    }
    p["x_mod_w"], p["x_mod_b"] = lin(HIDDEN, 6 * HIDDEN)
    p["txt_mod_w"], p["txt_mod_b"] = lin(HIDDEN, 6 * HIDDEN)
    p["x_qkv_w"], p["x_qkv_b"] = lin(HIDDEN, QKV_DIM)
    p["txt_qkv_w"], p["txt_qkv_b"] = lin(HIDDEN, QKV_DIM)
    p["x_post_w"], p["x_post_b"] = lin(HD, HIDDEN)
    p["txt_post_w"], p["txt_post_b"] = lin(HD, HIDDEN)
    p["x_mlp_w1"], p["x_mlp_b1"] = lin(HIDDEN, MLP_HIDDEN)
    p["x_mlp_w2"], p["x_mlp_b2"] = lin(MLP_HIDDEN, HIDDEN)
    p["txt_mlp_w1"], p["txt_mlp_b1"] = lin(HIDDEN, MLP_HIDDEN)
    p["txt_mlp_w2"], p["txt_mlp_b2"] = lin(MLP_HIDDEN, HIDDEN)
    return p


# ----------------------------------- main -------------------------------------
if __name__ == "__main__":
    root = jax.random.PRNGKey(0)
    kp, kx, kt, kc = jax.random.split(root, 4)
    params = init_params(kp)

    x = jax.random.normal(kx, (B, L_X, HIDDEN), F32)
    txt = jax.random.normal(kt, (B, L_TXT, HIDDEN), F32)
    cond = jax.random.normal(kc, (B, HIDDEN), F32)

    x_out, txt_out = double_stream_block(params, x, txt, cond)
    x_out, txt_out = jax.block_until_ready((x_out, txt_out))

    assert x_out.shape == (B, L_X, HIDDEN), x_out.shape
    assert txt_out.shape == (B, L_TXT, HIDDEN), txt_out.shape
    assert bool(jnp.all(jnp.isfinite(x_out)))
    assert bool(jnp.all(jnp.isfinite(txt_out)))

    # correctness vs. pure-JAX reference (bf16 MXU + approx reciprocal tolerance)
    x_ref_out, txt_ref_out = reference_forward(params, x, txt, cond)
    assert jnp.allclose(x_out, x_ref_out, atol=3e-2, rtol=3e-2), \
        float(jnp.max(jnp.abs(x_out - x_ref_out)))
    assert jnp.allclose(txt_out, txt_ref_out, atol=3e-2, rtol=3e-2), \
        float(jnp.max(jnp.abs(txt_out - txt_ref_out)))

    print("KERNEL_OK")
</pallas_src>

<mosaic_0001>
module attributes {stable_mosaic.version = 11 : i64} {
  func.func @_double_stream_kernel(%arg0: memref<2x8x64xf32, #tpu.memory_space<vmem>>, %arg1: memref<2x4x64xf32, #tpu.memory_space<vmem>>, %arg2: memref<2x64xf32, #tpu.memory_space<vmem>>, %arg3: memref<1x64xf32, #tpu.memory_space<vmem>>, %arg4: memref<1x64xf32, #tpu.memory_space<vmem>>, %arg5: memref<64x384xbf16, #tpu.memory_space<vmem>>, %arg6: memref<1x384xf32, #tpu.memory_space<vmem>>, %arg7: memref<64x384xbf16, #tpu.memory_space<vmem>>, %arg8: memref<1x384xf32, #tpu.memory_space<vmem>>, %arg9: memref<64x192xbf16, #tpu.memory_space<vmem>>, %arg10: memref<1x192xf32, #tpu.memory_space<vmem>>, %arg11: memref<64x192xbf16, #tpu.memory_space<vmem>>, %arg12: memref<1x192xf32, #tpu.memory_space<vmem>>, %arg13: memref<1x16xf32, #tpu.memory_space<vmem>>, %arg14: memref<1x16xf32, #tpu.memory_space<vmem>>, %arg15: memref<1x16xf32, #tpu.memory_space<vmem>>, %arg16: memref<1x16xf32, #tpu.memory_space<vmem>>, %arg17: memref<64x64xbf16, #tpu.memory_space<vmem>>, %arg18: memref<1x64xf32, #tpu.memory_space<vmem>>, %arg19: memref<64x64xbf16, #tpu.memory_space<vmem>>, %arg20: memref<1x64xf32, #tpu.memory_space<vmem>>, %arg21: memref<64x256xbf16, #tpu.memory_space<vmem>>, %arg22: memref<1x256xf32, #tpu.memory_space<vmem>>, %arg23: memref<256x64xbf16, #tpu.memory_space<vmem>>, %arg24: memref<1x64xf32, #tpu.memory_space<vmem>>, %arg25: memref<64x256xbf16, #tpu.memory_space<vmem>>, %arg26: memref<1x256xf32, #tpu.memory_space<vmem>>, %arg27: memref<256x64xbf16, #tpu.memory_space<vmem>>, %arg28: memref<1x64xf32, #tpu.memory_space<vmem>>, %arg29: memref<2x8x64xf32, #tpu.memory_space<vmem>>, %arg30: memref<2x4x64xf32, #tpu.memory_space<vmem>>) attributes {dimension_semantics = [], scalar_prefetch = 0 : i64, scratch_operands = 0 : i64, tpu.core_type = #tpu.core_type<tc>} {
    %c0 = arith.constant 0 : index
    %c0_0 = arith.constant 0 : index
    %0 = vector.load %arg3[%c0, %c0_0] : memref<1x64xf32, #tpu.memory_space<vmem>>, vector<1x64xf32>
    %c0_1 = arith.constant 0 : index
    %c0_2 = arith.constant 0 : index
    %1 = vector.load %arg4[%c0_1, %c0_2] : memref<1x64xf32, #tpu.memory_space<vmem>>, vector<1x64xf32>
    %c0_3 = arith.constant 0 : index
    %c0_4 = arith.constant 0 : index
    %2 = vector.load %arg13[%c0_3, %c0_4] : memref<1x16xf32, #tpu.memory_space<vmem>>, vector<1x16xf32>
    %c0_5 = arith.constant 0 : index
    %c0_6 = arith.constant 0 : index
    %3 = vector.load %arg14[%c0_5, %c0_6] : memref<1x16xf32, #tpu.memory_space<vmem>>, vector<1x16xf32>
    %c0_7 = arith.constant 0 : index
    %c0_8 = arith.constant 0 : index
    %4 = vector.load %arg15[%c0_7, %c0_8] : memref<1x16xf32, #tpu.memory_space<vmem>>, vector<1x16xf32>
    %c0_9 = arith.constant 0 : index
    %c0_10 = arith.constant 0 : index
    %5 = vector.load %arg16[%c0_9, %c0_10] : memref<1x16xf32, #tpu.memory_space<vmem>>, vector<1x16xf32>
    %c0_11 = arith.constant 0 : index
    %c0_12 = arith.constant 0 : index
    %c0_13 = arith.constant 0 : index
    %6 = vector.load %arg0[%c0_11, %c0_12, %c0_13] : memref<2x8x64xf32, #tpu.memory_space<vmem>>, vector<1x8x64xf32>
    %7 = vector.shape_cast %6 : vector<1x8x64xf32> to vector<8x64xf32>
    %8 = vector.broadcast %0 : vector<1x64xf32> to vector<8x64xf32>
    %9 = arith.addf %7, %8 : vector<8x64xf32>
    %c0_14 = arith.constant 0 : index
    %c0_15 = arith.constant 0 : index
    %c0_16 = arith.constant 0 : index
    %10 = vector.load %arg1[%c0_14, %c0_15, %c0_16] : memref<2x4x64xf32, #tpu.memory_space<vmem>>, vector<1x4x64xf32>
    %11 = vector.shape_cast %10 : vector<1x4x64xf32> to vector<4x64xf32>
    %12 = vector.broadcast %1 : vector<1x64xf32> to vector<4x64xf32>
    %13 = arith.addf %11, %12 : vector<4x64xf32>
    %c0_17 = arith.constant 0 : index
    %c0_18 = arith.constant 0 : index
    %14 = vector.load %arg2[%c0_17, %c0_18] : memref<2x64xf32, #tpu.memory_space<vmem>>, vector<1x64xf32>
    %cst = arith.constant 0.000000e+00 : f32
    %15 = vector.broadcast %cst : f32 to vector<1x64xf32>
    %16 = arith.subf %15, %14 : vector<1x64xf32>
    %17 = math.exp %16 : vector<1x64xf32>
    %cst_19 = arith.constant 1.000000e+00 : f32
    %18 = vector.broadcast %cst_19 : f32 to vector<1x64xf32>
    %19 = arith.addf %18, %17 : vector<1x64xf32>
    %cst_20 = arith.constant 1.000000e+00 : f32
    %20 = vector.broadcast %cst_20 : f32 to vector<1x64xf32>
    %21 = arith.divf %20, %19 : vector<1x64xf32>
    %22 = arith.mulf %14, %21 : vector<1x64xf32>
    %23 = arith.truncf %22 : vector<1x64xf32> to vector<1x64xbf16>
    %c0_21 = arith.constant 0 : index
    %c0_22 = arith.constant 0 : index
    %24 = vector.load %arg5[%c0_21, %c0_22] : memref<64x384xbf16, #tpu.memory_space<vmem>>, vector<64x384xbf16>
    %cst_23 = arith.constant dense<0.000000e+00> : vector<1x384xf32>
    %25 = tpu.matmul %23, %24, %cst_23 {dimension_numbers = #tpu.dot_dimension_numbers<[1], [0], [0], [1], [0, 0, 1, 1], [], []>} : vector<1x64xbf16>, vector<64x384xbf16>, vector<1x384xf32> -> vector<1x384xf32>
    %c0_24 = arith.constant 0 : index
    %c0_25 = arith.constant 0 : index
    %26 = vector.load %arg6[%c0_24, %c0_25] : memref<1x384xf32, #tpu.memory_space<vmem>>, vector<1x384xf32>
    %27 = arith.addf %25, %26 : vector<1x384xf32>
    %28 = arith.truncf %22 : vector<1x64xf32> to vector<1x64xbf16>
    %c0_26 = arith.constant 0 : index
    %c0_27 = arith.constant 0 : index
    %29 = vector.load %arg7[%c0_26, %c0_27] : memref<64x384xbf16, #tpu.memory_space<vmem>>, vector<64x384xbf16>
    %cst_28 = arith.constant dense<0.000000e+00> : vector<1x384xf32>
    %30 = tpu.matmul %28, %29, %cst_28 {dimension_numbers = #tpu.dot_dimension_numbers<[1], [0], [0], [1], [0, 0, 1, 1], [], []>} : vector<1x64xbf16>, vector<64x384xbf16>, vector<1x384xf32> -> vector<1x384xf32>
    %c0_29 = arith.constant 0 : index
    %c0_30 = arith.constant 0 : index
    %31 = vector.load %arg8[%c0_29, %c0_30] : memref<1x384xf32, #tpu.memory_space<vmem>>, vector<1x384xf32>
    %32 = arith.addf %30, %31 : vector<1x384xf32>
    %33 = vector.extract_strided_slice %27 {offsets = [0, 0], sizes = [1, 64], strides = [1, 1]} : vector<1x384xf32> to vector<1x64xf32>
    %34 = vector.extract_strided_slice %27 {offsets = [0, 64], sizes = [1, 64], strides = [1, 1]} : vector<1x384xf32> to vector<1x64xf32>
    %35 = vector.extract_strided_slice %27 {offsets = [0, 128], sizes = [1, 64], strides = [1, 1]} : vector<1x384xf32> to vector<1x64xf32>
    %36 = vector.extract_strided_slice %27 {offsets = [0, 192], sizes = [1, 64], strides = [1, 1]} : vector<1x384xf32> to vector<1x64xf32>
    %37 = vector.extract_strided_slice %27 {offsets = [0, 256], sizes = [1, 64], strides = [1, 1]} : vector<1x384xf32> to vector<1x64xf32>
    %38 = vector.extract_strided_slice %27 {offsets = [0, 320], sizes = [1, 64], strides = [1, 1]} : vector<1x384xf32> to vector<1x64xf32>
    %39 = vector.extract_strided_slice %32 {offsets = [0, 0], sizes = [1, 64], strides = [1, 1]} : vector<1x384xf32> to vector<1x64xf32>
    %40 = vector.extract_strided_slice %32 {offsets = [0, 64], sizes = [1, 64], strides = [1, 1]} : vector<1x384xf32> to vector<1x64xf32>
    %41 = vector.extract_strided_slice %32 {offsets = [0, 128], sizes = [1, 64], strides = [1, 1]} : vector<1x384xf32> to vector<1x64xf32>
    %42 = vector.extract_strided_slice %32 {offsets = [0, 192], sizes = [1, 64], strides = [1, 1]} : vector<1x384xf32> to vector<1x64xf32>
    %43 = vector.extract_strided_slice %32 {offsets = [0, 256], sizes = [1, 64], strides = [1, 1]} : vector<1x384xf32> to vector<1x64xf32>
    %44 = vector.extract_strided_slice %32 {offsets = [0, 320], sizes = [1, 64], strides = [1, 1]} : vector<1x384xf32> to vector<1x64xf32>
    %cst_31 = arith.constant 1.000000e+00 : f32
    %45 = vector.broadcast %cst_31 : f32 to vector<1x64xf32>
    %46 = arith.addf %45, %34 : vector<1x64xf32>
    %cst_32 = arith.constant dense<0.000000e+00> : vector<8xf32>
    %47 = vector.multi_reduction <add>, %9, %cst_32 [1] : vector<8x64xf32> to vector<8xf32>
    %48 = vector.shape_cast %47 : vector<8xf32> to vector<8x1xf32>
    %cst_33 = arith.constant 6.400000e+01 : f32
    %49 = vector.broadcast %cst_33 : f32 to vector<8x1xf32>
    %50 = arith.divf %48, %49 : vector<8x1xf32>
    %51 = vector.broadcast %50 : vector<8x1xf32> to vector<8x64xf32>
    %52 = arith.subf %9, %51 : vector<8x64xf32>
    %53 = vector.broadcast %50 : vector<8x1xf32> to vector<8x64xf32>
    %54 = arith.subf %9, %53 : vector<8x64xf32>
    %55 = arith.mulf %52, %54 : vector<8x64xf32>
    %cst_34 = arith.constant dense<0.000000e+00> : vector<8xf32>
    %56 = vector.multi_reduction <add>, %55, %cst_34 [1] : vector<8x64xf32> to vector<8xf32>
    %57 = vector.shape_cast %56 : vector<8xf32> to vector<8x1xf32>
    %cst_35 = arith.constant 6.400000e+01 : f32
    %58 = vector.broadcast %cst_35 : f32 to vector<8x1xf32>
    %59 = arith.divf %57, %58 : vector<8x1xf32>
    %60 = vector.broadcast %50 : vector<8x1xf32> to vector<8x64xf32>
    %61 = arith.subf %9, %60 : vector<8x64xf32>
    %cst_36 = arith.constant 9.99999997E-7 : f32
    %62 = vector.broadcast %cst_36 : f32 to vector<8x1xf32>
    %63 = arith.addf %59, %62 : vector<8x1xf32>
    %64 = math.rsqrt %63 : vector<8x1xf32>
    %65 = vector.broadcast %64 : vector<8x1xf32> to vector<8x64xf32>
    %66 = arith.mulf %61, %65 : vector<8x64xf32>
    %67 = vector.broadcast %46 : vector<1x64xf32> to vector<8x64xf32>
    %68 = arith.mulf %67, %66 : vector<8x64xf32>
    %69 = vector.broadcast %33 : vector<1x64xf32> to vector<8x64xf32>
    %70 = arith.addf %68, %69 : vector<8x64xf32>
    %71 = arith.truncf %70 : vector<8x64xf32> to vector<8x64xbf16>
    %c0_37 = arith.constant 0 : index
    %c0_38 = arith.constant 0 : index
    %72 = vector.load %arg9[%c0_37, %c0_38] : memref<64x192xbf16, #tpu.memory_space<vmem>>, vector<64x192xbf16>
    %cst_39 = arith.constant dense<0.000000e+00> : vector<8x192xf32>
    %73 = tpu.matmul %71, %72, %cst_39 {dimension_numbers = #tpu.dot_dimension_numbers<[1], [0], [0], [1], [0, 0, 1, 1], [], []>} : vector<8x64xbf16>, vector<64x192xbf16>, vector<8x192xf32> -> vector<8x192xf32>
    %c0_40 = arith.constant 0 : index
    %c0_41 = arith.constant 0 : index
    %74 = vector.load %arg10[%c0_40, %c0_41] : memref<1x192xf32, #tpu.memory_space<vmem>>, vector<1x192xf32>
    %75 = vector.broadcast %74 : vector<1x192xf32> to vector<8x192xf32>
    %76 = arith.addf %73, %75 : vector<8x192xf32>
    %cst_42 = arith.constant 1.000000e+00 : f32
    %77 = vector.broadcast %cst_42 : f32 to vector<1x64xf32>
    %78 = arith.addf %77, %40 : vector<1x64xf32>
    %cst_43 = arith.constant dense<0.000000e+00> : vector<4xf32>
    %79 = vector.multi_reduction <add>, %13, %cst_43 [1] : vector<4x64xf32> to vector<4xf32>
    %80 = vector.shape_cast %79 : vector<4xf32> to vector<4x1xf32>
    %cst_44 = arith.constant 6.400000e+01 : f32
    %81 = vector.broadcast %cst_44 : f32 to vector<4x1xf32>
    %82 = arith.divf %80, %81 : vector<4x1xf32>
    %83 = vector.broadcast %82 : vector<4x1xf32> to vector<4x64xf32>
    %84 = arith.subf %13, %83 : vector<4x64xf32>
    %85 = vector.broadcast %82 : vector<4x1xf32> to vector<4x64xf32>
    %86 = arith.subf %13, %85 : vector<4x64xf32>
    %87 = arith.mulf %84, %86 : vector<4x64xf32>
    %cst_45 = arith.constant dense<0.000000e+00> : vector<4xf32>
    %88 = vector.multi_reduction <add>, %87, %cst_45 [1] : vector<4x64xf32> to vector<4xf32>
    %89 = vector.shape_cast %88 : vector<4xf32> to vector<4x1xf32>
    %cst_46 = arith.constant 6.400000e+01 : f32
    %90 = vector.broadcast %cst_46 : f32 to vector<4x1xf32>
    %91 = arith.divf %89, %90 : vector<4x1xf32>
    %92 = vector.broadcast %82 : vector<4x1xf32> to vector<4x64xf32>
    %93 = arith.subf %13, %92 : vector<4x64xf32>
    %cst_47 = arith.constant 9.99999997E-7 : f32
    %94 = vector.broadcast %cst_47 : f32 to vector<4x1xf32>
    %95 = arith.addf %91, %94 : vector<4x1xf32>
    %96 = math.rsqrt %95 : vector<4x1xf32>
    %97 = vector.broadcast %96 : vector<4x1xf32> to vector<4x64xf32>
    %98 = arith.mulf %93, %97 : vector<4x64xf32>
    %99 = vector.broadcast %78 : vector<1x64xf32> to vector<4x64xf32>
    %100 = arith.mulf %99, %98 : vector<4x64xf32>
    %101 = vector.broadcast %39 : vector<1x64xf32> to vector<4x64xf32>
    %102 = arith.addf %100, %101 : vector<4x64xf32>
    %103 = arith.truncf %102 : vector<4x64xf32> to vector<4x64xbf16>
    %c0_48 = arith.constant 0 : index
    %c0_49 = arith.constant 0 : index
    %104 = vector.load %arg11[%c0_48, %c0_49] : memref<64x192xbf16, #tpu.memory_space<vmem>>, vector<64x192xbf16>
    %cst_50 = arith.constant dense<0.000000e+00> : vector<4x192xf32>
    %105 = tpu.matmul %103, %104, %cst_50 {dimension_numbers = #tpu.dot_dimension_numbers<[1], [0], [0], [1], [0, 0, 1, 1], [], []>} : vector<4x64xbf16>, vector<64x192xbf16>, vector<4x192xf32> -> vector<4x192xf32>
    %c0_51 = arith.constant 0 : index
    %c0_52 = arith.constant 0 : index
    %106 = vector.load %arg12[%c0_51, %c0_52] : memref<1x192xf32, #tpu.memory_space<vmem>>, vector<1x192xf32>
    %107 = vector.broadcast %106 : vector<1x192xf32> to vector<4x192xf32>
    %108 = arith.addf %105, %107 : vector<4x192xf32>
    %109 = vector.extract_strided_slice %76 {offsets = [0, 0], sizes = [8, 64], strides = [1, 1]} : vector<8x192xf32> to vector<8x64xf32>
    %110 = vector.extract_strided_slice %109 {offsets = [0, 0], sizes = [8, 16], strides = [1, 1]} : vector<8x64xf32> to vector<8x16xf32>
    %111 = arith.mulf %110, %110 : vector<8x16xf32>
    %cst_53 = arith.constant dense<0.000000e+00> : vector<8xf32>
    %112 = vector.multi_reduction <add>, %111, %cst_53 [1] : vector<8x16xf32> to vector<8xf32>
    %113 = vector.shape_cast %112 : vector<8xf32> to vector<8x1xf32>
    %cst_54 = arith.constant 1.600000e+01 : f32
    %114 = vector.broadcast %cst_54 : f32 to vector<8x1xf32>
    %115 = arith.divf %113, %114 : vector<8x1xf32>
    %cst_55 = arith.constant 9.99999997E-7 : f32
    %116 = vector.broadcast %cst_55 : f32 to vector<8x1xf32>
    %117 = arith.addf %115, %116 : vector<8x1xf32>
    %118 = math.rsqrt %117 : vector<8x1xf32>
    %119 = vector.broadcast %118 : vector<8x1xf32> to vector<8x16xf32>
    %120 = arith.mulf %110, %119 : vector<8x16xf32>
    %121 = vector.broadcast %2 : vector<1x16xf32> to vector<8x16xf32>
    %122 = arith.mulf %120, %121 : vector<8x16xf32>
    %123 = vector.extract_strided_slice %109 {offsets = [0, 16], sizes = [8, 16], strides = [1, 1]} : vector<8x64xf32> to vector<8x16xf32>
    %124 = arith.mulf %123, %123 : vector<8x16xf32>
    %cst_56 = arith.constant dense<0.000000e+00> : vector<8xf32>
    %125 = vector.multi_reduction <add>, %124, %cst_56 [1] : vector<8x16xf32> to vector<8xf32>
    %126 = vector.shape_cast %125 : vector<8xf32> to vector<8x1xf32>
    %cst_57 = arith.constant 1.600000e+01 : f32
    %127 = vector.broadcast %cst_57 : f32 to vector<8x1xf32>
    %128 = arith.divf %126, %127 : vector<8x1xf32>
    %cst_58 = arith.constant 9.99999997E-7 : f32
    %129 = vector.broadcast %cst_58 : f32 to vector<8x1xf32>
    %130 = arith.addf %128, %129 : vector<8x1xf32>
    %131 = math.rsqrt %130 : vector<8x1xf32>
    %132 = vector.broadcast %131 : vector<8x1xf32> to vector<8x16xf32>
    %133 = arith.mulf %123, %132 : vector<8x16xf32>
    %134 = vector.broadcast %2 : vector<1x16xf32> to vector<8x16xf32>
    %135 = arith.mulf %133, %134 : vector<8x16xf32>
    %136 = vector.extract_strided_slice %109 {offsets = [0, 32], sizes = [8, 16], strides = [1, 1]} : vector<8x64xf32> to vector<8x16xf32>
    %137 = arith.mulf %136, %136 : vector<8x16xf32>
    %cst_59 = arith.constant dense<0.000000e+00> : vector<8xf32>
    %138 = vector.multi_reduction <add>, %137, %cst_59 [1] : vector<8x16xf32> to vector<8xf32>
    %139 = vector.shape_cast %138 : vector<8xf32> to vector<8x1xf32>
    %cst_60 = arith.constant 1.600000e+01 : f32
    %140 = vector.broadcast %cst_60 : f32 to vector<8x1xf32>
    %141 = arith.divf %139, %140 : vector<8x1xf32>
    %cst_61 = arith.constant 9.99999997E-7 : f32
    %142 = vector.broadcast %cst_61 : f32 to vector<8x1xf32>
    %143 = arith.addf %141, %142 : vector<8x1xf32>
    %144 = math.rsqrt %143 : vector<8x1xf32>
    %145 = vector.broadcast %144 : vector<8x1xf32> to vector<8x16xf32>
    %146 = arith.mulf %136, %145 : vector<8x16xf32>
    %147 = vector.broadcast %2 : vector<1x16xf32> to vector<8x16xf32>
    %148 = arith.mulf %146, %147 : vector<8x16xf32>
    %149 = vector.extract_strided_slice %109 {offsets = [0, 48], sizes = [8, 16], strides = [1, 1]} : vector<8x64xf32> to vector<8x16xf32>
    %150 = arith.mulf %149, %149 : vector<8x16xf32>
    %cst_62 = arith.constant dense<0.000000e+00> : vector<8xf32>
    %151 = vector.multi_reduction <add>, %150, %cst_62 [1] : vector<8x16xf32> to vector<8xf32>
    %152 = vector.shape_cast %151 : vector<8xf32> to vector<8x1xf32>
    %cst_63 = arith.constant 1.600000e+01 : f32
    %153 = vector.broadcast %cst_63 : f32 to vector<8x1xf32>
    %154 = arith.divf %152, %153 : vector<8x1xf32>
    %cst_64 = arith.constant 9.99999997E-7 : f32
    %155 = vector.broadcast %cst_64 : f32 to vector<8x1xf32>
    %156 = arith.addf %154, %155 : vector<8x1xf32>
    %157 = math.rsqrt %156 : vector<8x1xf32>
    %158 = vector.broadcast %157 : vector<8x1xf32> to vector<8x16xf32>
    %159 = arith.mulf %149, %158 : vector<8x16xf32>
    %160 = vector.broadcast %2 : vector<1x16xf32> to vector<8x16xf32>
    %161 = arith.mulf %159, %160 : vector<8x16xf32>
    %162 = tpu.concatenate %122, %135, %148, %161 in 1 : vector<8x16xf32>, vector<8x16xf32>, vector<8x16xf32>, vector<8x16xf32> -> vector<8x64xf32>
    %163 = vector.extract_strided_slice %76 {offsets = [0, 64], sizes = [8, 64], strides = [1, 1]} : vector<8x192xf32> to vector<8x64xf32>
    %164 = vector.extract_strided_slice %163 {offsets = [0, 0], sizes = [8, 16], strides = [1, 1]} : vector<8x64xf32> to vector<8x16xf32>
    %165 = arith.mulf %164, %164 : vector<8x16xf32>
    %cst_65 = arith.constant dense<0.000000e+00> : vector<8xf32>
    %166 = vector.multi_reduction <add>, %165, %cst_65 [1] : vector<8x16xf32> to vector<8xf32>
    %167 = vector.shape_cast %166 : vector<8xf32> to vector<8x1xf32>
    %cst_66 = arith.constant 1.600000e+01 : f32
    %168 = vector.broadcast %cst_66 : f32 to vector<8x1xf32>
    %169 = arith.divf %167, %168 : vector<8x1xf32>
    %cst_67 = arith.constant 9.99999997E-7 : f32
    %170 = vector.broadcast %cst_67 : f32 to vector<8x1xf32>
    %171 = arith.addf %169, %170 : vector<8x1xf32>
    %172 = math.rsqrt %171 : vector<8x1xf32>
    %173 = vector.broadcast %172 : vector<8x1xf32> to vector<8x16xf32>
    %174 = arith.mulf %164, %173 : vector<8x16xf32>
    %175 = vector.broadcast %3 : vector<1x16xf32> to vector<8x16xf32>
    %176 = arith.mulf %174, %175 : vector<8x16xf32>
    %177 = vector.extract_strided_slice %163 {offsets = [0, 16], sizes = [8, 16], strides = [1, 1]} : vector<8x64xf32> to vector<8x16xf32>
    %178 = arith.mulf %177, %177 : vector<8x16xf32>
    %cst_68 = arith.constant dense<0.000000e+00> : vector<8xf32>
    %179 = vector.multi_reduction <add>, %178, %cst_68 [1] : vector<8x16xf32> to vector<8xf32>
    %180 = vector.shape_cast %179 : vector<8xf32> to vector<8x1xf32>
    %cst_69 = arith.constant 1.600000e+01 : f32
    %181 = vector.broadcast %cst_69 : f32 to vector<8x1xf32>
    %182 = arith.divf %180, %181 : vector<8x1xf32>
    %cst_70 = arith.constant 9.99999997E-7 : f32
    %183 = vector.broadcast %cst_70 : f32 to vector<8x1xf32>
    %184 = arith.addf %182, %183 : vector<8x1xf32>
    %185 = math.rsqrt %184 : vector<8x1xf32>
    %186 = vector.broadcast %185 : vector<8x1xf32> to vector<8x16xf32>
    %187 = arith.mulf %177, %186 : vector<8x16xf32>
    %188 = vector.broadcast %3 : vector<1x16xf32> to vector<8x16xf32>
    %189 = arith.mulf %187, %188 : vector<8x16xf32>
    %190 = vector.extract_strided_slice %163 {offsets = [0, 32], sizes = [8, 16], strides = [1, 1]} : vector<8x64xf32> to vector<8x16xf32>
    %191 = arith.mulf %190, %190 : vector<8x16xf32>
    %cst_71 = arith.constant dense<0.000000e+00> : vector<8xf32>
    %192 = vector.multi_reduction <add>, %191, %cst_71 [1] : vector<8x16xf32> to vector<8xf32>
    %193 = vector.shape_cast %192 : vector<8xf32> to vector<8x1xf32>
    %cst_72 = arith.constant 1.600000e+01 : f32
    %194 = vector.broadcast %cst_72 : f32 to vector<8x1xf32>
    %195 = arith.divf %193, %194 : vector<8x1xf32>
    %cst_73 = arith.constant 9.99999997E-7 : f32
    %196 = vector.broadcast %cst_73 : f32 to vector<8x1xf32>
    %197 = arith.addf %195, %196 : vector<8x1xf32>
    %198 = math.rsqrt %197 : vector<8x1xf32>
    %199 = vector.broadcast %198 : vector<8x1xf32> to vector<8x16xf32>
    %200 = arith.mulf %190, %199 : vector<8x16xf32>
    %201 = vector.broadcast %3 : vector<1x16xf32> to vector<8x16xf32>
    %202 = arith.mulf %200, %201 : vector<8x16xf32>
    %203 = vector.extract_strided_slice %163 {offsets = [0, 48], sizes = [8, 16], strides = [1, 1]} : vector<8x64xf32> to vector<8x16xf32>
    %204 = arith.mulf %203, %203 : vector<8x16xf32>
    %cst_74 = arith.constant dense<0.000000e+00> : vector<8xf32>
    %205 = vector.multi_reduction <add>, %204, %cst_74 [1] : vector<8x16xf32> to vector<8xf32>
    %206 = vector.shape_cast %205 : vector<8xf32> to vector<8x1xf32>
    %cst_75 = arith.constant 1.600000e+01 : f32
    %207 = vector.broadcast %cst_75 : f32 to vector<8x1xf32>
    %208 = arith.divf %206, %207 : vector<8x1xf32>
    %cst_76 = arith.constant 9.99999997E-7 : f32
    %209 = vector.broadcast %cst_76 : f32 to vector<8x1xf32>
    %210 = arith.addf %208, %209 : vector<8x1xf32>
    %211 = math.rsqrt %210 : vector<8x1xf32>
    %212 = vector.broadcast %211 : vector<8x1xf32> to vector<8x16xf32>
    %213 = arith.mulf %203, %212 : vector<8x16xf32>
    %214 = vector.broadcast %3 : vector<1x16xf32> to vector<8x16xf32>
    %215 = arith.mulf %213, %214 : vector<8x16xf32>
    %216 = tpu.concatenate %176, %189, %202, %215 in 1 : vector<8x16xf32>, vector<8x16xf32>, vector<8x16xf32>, vector<8x16xf32> -> vector<8x64xf32>
    %217 = vector.extract_strided_slice %76 {offsets = [0, 128], sizes = [8, 64], strides = [1, 1]} : vector<8x192xf32> to vector<8x64xf32>
    %218 = vector.extract_strided_slice %108 {offsets = [0, 0], sizes = [4, 64], strides = [1, 1]} : vector<4x192xf32> to vector<4x64xf32>
    %219 = vector.extract_strided_slice %218 {offsets = [0, 0], sizes = [4, 16], strides = [1, 1]} : vector<4x64xf32> to vector<4x16xf32>
    %220 = arith.mulf %219, %219 : vector<4x16xf32>
    %cst_77 = arith.constant dense<0.000000e+00> : vector<4xf32>
    %221 = vector.multi_reduction <add>, %220, %cst_77 [1] : vector<4x16xf32> to vector<4xf32>
    %222 = vector.shape_cast %221 : vector<4xf32> to vector<4x1xf32>
    %cst_78 = arith.constant 1.600000e+01 : f32
    %223 = vector.broadcast %cst_78 : f32 to vector<4x1xf32>
    %224 = arith.divf %222, %223 : vector<4x1xf32>
    %cst_79 = arith.constant 9.99999997E-7 : f32
    %225 = vector.broadcast %cst_79 : f32 to vector<4x1xf32>
    %226 = arith.addf %224, %225 : vector<4x1xf32>
    %227 = math.rsqrt %226 : vector<4x1xf32>
    %228 = vector.broadcast %227 : vector<4x1xf32> to vector<4x16xf32>
    %229 = arith.mulf %219, %228 : vector<4x16xf32>
    %230 = vector.broadcast %4 : vector<1x16xf32> to vector<4x16xf32>
    %231 = arith.mulf %229, %230 : vector<4x16xf32>
    %232 = vector.extract_strided_slice %218 {offsets = [0, 16], sizes = [4, 16], strides = [1, 1]} : vector<4x64xf32> to vector<4x16xf32>
    %233 = arith.mulf %232, %232 : vector<4x16xf32>
    %cst_80 = arith.constant dense<0.000000e+00> : vector<4xf32>
    %234 = vector.multi_reduction <add>, %233, %cst_80 [1] : vector<4x16xf32> to vector<4xf32>
    %235 = vector.shape_cast %234 : vector<4xf32> to vector<4x1xf32>
    %cst_81 = arith.constant 1.600000e+01 : f32
    %236 = vector.broadcast %cst_81 : f32 to vector<4x1xf32>
    %237 = arith.divf %235, %236 : vector<4x1xf32>
    %cst_82 = arith.constant 9.99999997E-7 : f32
    %238 = vector.broadcast %cst_82 : f32 to vector<4x1xf32>
    %239 = arith.addf %237, %238 : vector<4x1xf32>
    %240 = math.rsqrt %239 : vector<4x1xf32>
    %241 = vector.broadcast %240 : vector<4x1xf32> to vector<4x16xf32>
    %242 = arith.mulf %232, %241 : vector<4x16xf32>
    %243 = vector.broadcast %4 : vector<1x16xf32> to vector<4x16xf32>
    %244 = arith.mulf %242, %243 : vector<4x16xf32>
    %245 = vector.extract_strided_slice %218 {offsets = [0, 32], sizes = [4, 16], strides = [1, 1]} : vector<4x64xf32> to vector<4x16xf32>
    %246 = arith.mulf %245, %245 : vector<4x16xf32>
    %cst_83 = arith.constant dense<0.000000e+00> : vector<4xf32>
    %247 = vector.multi_reduction <add>, %246, %cst_83 [1] : vector<4x16xf32> to vector<4xf32>
    %248 = vector.shape_cast %247 : vector<4xf32> to vector<4x1xf32>
    %cst_84 = arith.constant 1.600000e+01 : f32
    %249 = vector.broadcast %cst_84 : f32 to vector<4x1xf32>
    %250 = arith.divf %248, %249 : vector<4x1xf32>
    %cst_85 = arith.constant 9.99999997E-7 : f32
    %251 = vector.broadcast %cst_85 : f32 to vector<4x1xf32>
    %252 = arith.addf %250, %251 : vector<4x1xf32>
    %253 = math.rsqrt %252 : vector<4x1xf32>
    %254 = vector.broadcast %253 : vector<4x1xf32> to vector<4x16xf32>
    %255 = arith.mulf %245, %254 : vector<4x16xf32>
    %256 = vector.broadcast %4 : vector<1x16xf32> to vector<4x16xf32>
    %257 = arith.mulf %255, %256 : vector<4x16xf32>
    %258 = vector.extract_strided_slice %218 {offsets = [0, 48], sizes = [4, 16], strides = [1, 1]} : vector<4x64xf32> to vector<4x16xf32>
    %259 = arith.mulf %258, %258 : vector<4x16xf32>
    %cst_86 = arith.constant dense<0.000000e+00> : vector<4xf32>
    %260 = vector.multi_reduction <add>, %259, %cst_86 [1] : vector<4x16xf32> to vector<4xf32>
    %261 = vector.shape_cast %260 : vector<4xf32> to vector<4x1xf32>
    %cst_87 = arith.constant 1.600000e+01 : f32
    %262 = vector.broadcast %cst_87 : f32 to vector<4x1xf32>
    %263 = arith.divf %261, %262 : vector<4x1xf32>
    %cst_88 = arith.constant 9.99999997E-7 : f32
    %264 = vector.broadcast %cst_88 : f32 to vector<4x1xf32>
    %265 = arith.addf %263, %264 : vector<4x1xf32>
    %266 = math.rsqrt %265 : vector<4x1xf32>
    %267 = vector.broadcast %266 : vector<4x1xf32> to vector<4x16xf32>
    %268 = arith.mulf %258, %267 : vector<4x16xf32>
    %269 = vector.broadcast %4 : vector<1x16xf32> to vector<4x16xf32>
    %270 = arith.mulf %268, %269 : vector<4x16xf32>
    %271 = tpu.concatenate %231, %244, %257, %270 in 1 : vector<4x16xf32>, vector<4x16xf32>, vector<4x16xf32>, vector<4x16xf32> -> vector<4x64xf32>
    %272 = vector.extract_strided_slice %108 {offsets = [0, 64], sizes = [4, 64], strides = [1, 1]} : vector<4x192xf32> to vector<4x64xf32>
    %273 = vector.extract_strided_slice %272 {offsets = [0, 0], sizes = [4, 16], strides = [1, 1]} : vector<4x64xf32> to vector<4x16xf32>
    %274 = arith.mulf %273, %273 : vector<4x16xf32>
    %cst_89 = arith.constant dense<0.000000e+00> : vector<4xf32>
    %275 = vector.multi_reduction <add>, %274, %cst_89 [1] : vector<4x16xf32> to vector<4xf32>
    %276 = vector.shape_cast %275 : vector<4xf32> to vector<4x1xf32>
    %cst_90 = arith.constant 1.600000e+01 : f32
    %277 = vector.broadcast %cst_90 : f32 to vector<4x1xf32>
    %278 = arith.divf %276, %277 : vector<4x1xf32>
    %cst_91 = arith.constant 9.99999997E-7 : f32
    %279 = vector.broadcast %cst_91 : f32 to vector<4x1xf32>
    %280 = arith.addf %278, %279 : vector<4x1xf32>
    %281 = math.rsqrt %280 : vector<4x1xf32>
    %282 = vector.broadcast %281 : vector<4x1xf32> to vector<4x16xf32>
    %283 = arith.mulf %273, %282 : vector<4x16xf32>
    %284 = vector.broadcast %5 : vector<1x16xf32> to vector<4x16xf32>
    %285 = arith.mulf %283, %284 : vector<4x16xf32>
    %286 = vector.extract_strided_slice %272 {offsets = [0, 16], sizes = [4, 16], strides = [1, 1]} : vector<4x64xf32> to vector<4x16xf32>
    %287 = arith.mulf %286, %286 : vector<4x16xf32>
    %cst_92 = arith.constant dense<0.000000e+00> : vector<4xf32>
    %288 = vector.multi_reduction <add>, %287, %cst_92 [1] : vector<4x16xf32> to vector<4xf32>
    %289 = vector.shape_cast %288 : vector<4xf32> to vector<4x1xf32>
    %cst_93 = arith.constant 1.600000e+01 : f32
    %290 = vector.broadcast %cst_93 : f32 to vector<4x1xf32>
    %291 = arith.divf %289, %290 : vector<4x1xf32>
    %cst_94 = arith.constant 9.99999997E-7 : f32
    %292 = vector.broadcast %cst_94 : f32 to vector<4x1xf32>
    %293 = arith.addf %291, %292 : vector<4x1xf32>
    %294 = math.rsqrt %293 : vector<4x1xf32>
    %295 = vector.broadcast %294 : vector<4x1xf32> to vector<4x16xf32>
    %296 = arith.mulf %286, %295 : vector<4x16xf32>
    %297 = vector.broadcast %5 : vector<1x16xf32> to vector<4x16xf32>
    %298 = arith.mulf %296, %297 : vector<4x16xf32>
    %299 = vector.extract_strided_slice %272 {offsets = [0, 32], sizes = [4, 16], strides = [1, 1]} : vector<4x64xf32> to vector<4x16xf32>
    %300 = arith.mulf %299, %299 : vector<4x16xf32>
    %cst_95 = arith.constant dense<0.000000e+00> : vector<4xf32>
    %301 = vector.multi_reduction <add>, %300, %cst_95 [1] : vector<4x16xf32> to vector<4xf32>
    %302 = vector.shape_cast %301 : vector<4xf32> to vector<4x1xf32>
    %cst_96 = arith.constant 1.600000e+01 : f32
    %303 = vector.broadcast %cst_96 : f32 to vector<4x1xf32>
    %304 = arith.divf %302, %303 : vector<4x1xf32>
    %cst_97 = arith.constant 9.99999997E-7 : f32
    %305 = vector.broadcast %cst_97 : f32 to vector<4x1xf32>
    %306 = arith.addf %304, %305 : vector<4x1xf32>
    %307 = math.rsqrt %306 : vector<4x1xf32>
    %308 = vector.broadcast %307 : vector<4x1xf32> to vector<4x16xf32>
    %309 = arith.mulf %299, %308 : vector<4x16xf32>
    %310 = vector.broadcast %5 : vector<1x16xf32> to vector<4x16xf32>
    %311 = arith.mulf %309, %310 : vector<4x16xf32>
    %312 = vector.extract_strided_slice %272 {offsets = [0, 48], sizes = [4, 16], strides = [1, 1]} : vector<4x64xf32> to vector<4x16xf32>
    %313 = arith.mulf %312, %312 : vector<4x16xf32>
    %cst_98 = arith.constant dense<0.000000e+00> : vector<4xf32>
    %314 = vector.multi_reduction <add>, %313, %cst_98 [1] : vector<4x16xf32> to vector<4xf32>
    %315 = vector.shape_cast %314 : vector<4xf32> to vector<4x1xf32>
    %cst_99 = arith.constant 1.600000e+01 : f32
    %316 = vector.broadcast %cst_99 : f32 to vector<4x1xf32>
    %317 = arith.divf %315, %316 : vector<4x1xf32>
    %cst_100 = arith.constant 9.99999997E-7 : f32
    %318 = vector.broadcast %cst_100 : f32 to vector<4x1xf32>
    %319 = arith.addf %317, %318 : vector<4x1xf32>
    %320 = math.rsqrt %319 : vector<4x1xf32>
    %321 = vector.broadcast %320 : vector<4x1xf32> to vector<4x16xf32>
    %322 = arith.mulf %312, %321 : vector<4x16xf32>
    %323 = vector.broadcast %5 : vector<1x16xf32> to vector<4x16xf32>
    %324 = arith.mulf %322, %323 : vector<4x16xf32>
    %325 = tpu.concatenate %285, %298, %311, %324 in 1 : vector<4x16xf32>, vector<4x16xf32>, vector<4x16xf32>, vector<4x16xf32> -> vector<4x64xf32>
    %326 = vector.extract_strided_slice %108 {offsets = [0, 128], sizes = [4, 64], strides = [1, 1]} : vector<4x192xf32> to vector<4x64xf32>
    %327 = tpu.concatenate %271, %162 in 0 : vector<4x64xf32>, vector<8x64xf32> -> vector<12x64xf32>
    %328 = tpu.concatenate %325, %216 in 0 : vector<4x64xf32>, vector<8x64xf32> -> vector<12x64xf32>
    %329 = tpu.concatenate %326, %217 in 0 : vector<4x64xf32>, vector<8x64xf32> -> vector<12x64xf32>
    %330 = vector.extract_strided_slice %327 {offsets = [0, 0], sizes = [12, 16], strides = [1, 1]} : vector<12x64xf32> to vector<12x16xf32>
    %331 = arith.truncf %330 : vector<12x16xf32> to vector<12x16xbf16>
    %332 = vector.extract_strided_slice %328 {offsets = [0, 0], sizes = [12, 16], strides = [1, 1]} : vector<12x64xf32> to vector<12x16xf32>
    %333 = tpu.transpose %332, [1, 0] : vector<12x16xf32> -> vector<16x12xf32>
    %334 = arith.truncf %333 : vector<16x12xf32> to vector<16x12xbf16>
    %335 = vector.extract_strided_slice %329 {offsets = [0, 0], sizes = [12, 16], strides = [1, 1]} : vector<12x64xf32> to vector<12x16xf32>
    %336 = arith.truncf %335 : vector<12x16xf32> to vector<12x16xbf16>
    %cst_101 = arith.constant dense<0.000000e+00> : vector<12x12xf32>
    %337 = tpu.matmul %331, %334, %cst_101 {dimension_numbers = #tpu.dot_dimension_numbers<[1], [0], [0], [1], [0, 0, 1, 1], [], []>} : vector<12x16xbf16>, vector<16x12xbf16>, vector<12x12xf32> -> vector<12x12xf32>
    %cst_102 = arith.constant 2.500000e-01 : f32
    %338 = vector.broadcast %cst_102 : f32 to vector<12x12xf32>
    %339 = arith.mulf %337, %338 : vector<12x12xf32>
    %cst_103 = arith.constant dense<0xFF800000> : vector<12xf32>
    %340 = vector.multi_reduction <maximumf>, %339, %cst_103 [1] : vector<12x12xf32> to vector<12xf32>
    %341 = vector.shape_cast %340 : vector<12xf32> to vector<12x1xf32>
    %342 = vector.broadcast %341 : vector<12x1xf32> to vector<12x12xf32>
    %343 = arith.subf %339, %342 : vector<12x12xf32>
    %344 = math.exp %343 : vector<12x12xf32>
    %cst_104 = arith.constant dense<0.000000e+00> : vector<12xf32>
    %345 = vector.multi_reduction <add>, %344, %cst_104 [1] : vector<12x12xf32> to vector<12xf32>
    %346 = vector.shape_cast %345 : vector<12xf32> to vector<12x1xf32>
    %347 = tpu.reciprocal %346 {approx = true} : vector<12x1xf32> -> vector<12x1xf32>
    %348 = vector.broadcast %347 : vector<12x1xf32> to vector<12x12xf32>
    %349 = arith.mulf %344, %348 : vector<12x12xf32>
    %350 = arith.truncf %349 : vector<12x12xf32> to vector<12x12xbf16>
    %cst_105 = arith.constant dense<0.000000e+00> : vector<12x16xf32>
    %351 = tpu.matmul %350, %336, %cst_105 {dimension_numbers = #tpu.dot_dimension_numbers<[1], [0], [0], [1], [0, 0, 1, 1], [], []>} : vector<12x12xbf16>, vector<12x16xbf16>, vector<12x16xf32> -> vector<12x16xf32>
    %352 = vector.extract_strided_slice %327 {offsets = [0, 16], sizes = [12, 16], strides = [1, 1]} : vector<12x64xf32> to vector<12x16xf32>
    %353 = arith.truncf %352 : vector<12x16xf32> to vector<12x16xbf16>
    %354 = vector.extract_strided_slice %328 {offsets = [0, 16], sizes = [12, 16], strides = [1, 1]} : vector<12x64xf32> to vector<12x16xf32>
    %355 = tpu.transpose %354, [1, 0] : vector<12x16xf32> -> vector<16x12xf32>
    %356 = arith.truncf %355 : vector<16x12xf32> to vector<16x12xbf16>
    %357 = vector.extract_strided_slice %329 {offsets = [0, 16], sizes = [12, 16], strides = [1, 1]} : vector<12x64xf32> to vector<12x16xf32>
    %358 = arith.truncf %357 : vector<12x16xf32> to vector<12x16xbf16>
    %cst_106 = arith.constant dense<0.000000e+00> : vector<12x12xf32>
    %359 = tpu.matmul %353, %356, %cst_106 {dimension_numbers = #tpu.dot_dimension_numbers<[1], [0], [0], [1], [0, 0, 1, 1], [], []>} : vector<12x16xbf16>, vector<16x12xbf16>, vector<12x12xf32> -> vector<12x12xf32>
    %cst_107 = arith.constant 2.500000e-01 : f32
    %360 = vector.broadcast %cst_107 : f32 to vector<12x12xf32>
    %361 = arith.mulf %359, %360 : vector<12x12xf32>
    %cst_108 = arith.constant dense<0xFF800000> : vector<12xf32>
    %362 = vector.multi_reduction <maximumf>, %361, %cst_108 [1] : vector<12x12xf32> to vector<12xf32>
    %363 = vector.shape_cast %362 : vector<12xf32> to vector<12x1xf32>
    %364 = vector.broadcast %363 : vector<12x1xf32> to vector<12x12xf32>
    %365 = arith.subf %361, %364 : vector<12x12xf32>
    %366 = math.exp %365 : vector<12x12xf32>
    %cst_109 = arith.constant dense<0.000000e+00> : vector<12xf32>
    %367 = vector.multi_reduction <add>, %366, %cst_109 [1] : vector<12x12xf32> to vector<12xf32>
    %368 = vector.shape_cast %367 : vector<12xf32> to vector<12x1xf32>
    %369 = tpu.reciprocal %368 {approx = true} : vector<12x1xf32> -> vector<12x1xf32>
    %370 = vector.broadcast %369 : vector<12x1xf32> to vector<12x12xf32>
    %371 = arith.mulf %366, %370 : vector<12x12xf32>
    %372 = arith.truncf %371 : vector<12x12xf32> to vector<12x12xbf16>
    %cst_110 = arith.constant dense<0.000000e+00> : vector<12x16xf32>
    %373 = tpu.matmul %372, %358, %cst_110 {dimension_numbers = #tpu.dot_dimension_numbers<[1], [0], [0], [1], [0, 0, 1, 1], [], []>} : vector<12x12xbf16>, vector<12x16xbf16>, vector<12x16xf32> -> vector<12x16xf32>
    %374 = vector.extract_strided_slice %327 {offsets = [0, 32], sizes = [12, 16], strides = [1, 1]} : vector<12x64xf32> to vector<12x16xf32>
    %375 = arith.truncf %374 : vector<12x16xf32> to vector<12x16xbf16>
    %376 = vector.extract_strided_slice %328 {offsets = [0, 32], sizes = [12, 16], strides = [1, 1]} : vector<12x64xf32> to vector<12x16xf32>
    %377 = tpu.transpose %376, [1, 0] : vector<12x16xf32> -> vector<16x12xf32>
    %378 = arith.truncf %377 : vector<16x12xf32> to vector<16x12xbf16>
    %379 = vector.extract_strided_slice %329 {offsets = [0, 32], sizes = [12, 16], strides = [1, 1]} : vector<12x64xf32> to vector<12x16xf32>
    %380 = arith.truncf %379 : vector<12x16xf32> to vector<12x16xbf16>
    %cst_111 = arith.constant dense<0.000000e+00> : vector<12x12xf32>
    %381 = tpu.matmul %375, %378, %cst_111 {dimension_numbers = #tpu.dot_dimension_numbers<[1], [0], [0], [1], [0, 0, 1, 1], [], []>} : vector<12x16xbf16>, vector<16x12xbf16>, vector<12x12xf32> -> vector<12x12xf32>
    %cst_112 = arith.constant 2.500000e-01 : f32
    %382 = vector.broadcast %cst_112 : f32 to vector<12x12xf32>
    %383 = arith.mulf %381, %382 : vector<12x12xf32>
    %cst_113 = arith.constant dense<0xFF800000> : vector<12xf32>
    %384 = vector.multi_reduction <maximumf>, %383, %cst_113 [1] : vector<12x12xf32> to vector<12xf32>
    %385 = vector.shape_cast %384 : vector<12xf32> to vector<12x1xf32>
    %386 = vector.broadcast %385 : vector<12x1xf32> to vector<12x12xf32>
    %387 = arith.subf %383, %386 : vector<12x12xf32>
    %388 = math.exp %387 : vector<12x12xf32>
    %cst_114 = arith.constant dense<0.000000e+00> : vector<12xf32>
    %389 = vector.multi_reduction <add>, %388, %cst_114 [1] : vector<12x12xf32> to vector<12xf32>
    %390 = vector.shape_cast %389 : vector<12xf32> to vector<12x1xf32>
    %391 = tpu.reciprocal %390 {approx = true} : vector<12x1xf32> -> vector<12x1xf32>
    %392 = vector.broadcast %391 : vector<12x1xf32> to vector<12x12xf32>
    %393 = arith.mulf %388, %392 : vector<12x12xf32>
    %394 = arith.truncf %393 : vector<12x12xf32> to vector<12x12xbf16>
    %cst_115 = arith.constant dense<0.000000e+00> : vector<12x16xf32>
    %395 = tpu.matmul %394, %380, %cst_115 {dimension_numbers = #tpu.dot_dimension_numbers<[1], [0], [0], [1], [0, 0, 1, 1], [], []>} : vector<12x12xbf16>, vector<12x16xbf16>, vector<12x16xf32> -> vector<12x16xf32>
    %396 = vector.extract_strided_slice %327 {offsets = [0, 48], sizes = [12, 16], strides = [1, 1]} : vector<12x64xf32> to vector<12x16xf32>
    %397 = arith.truncf %396 : vector<12x16xf32> to vector<12x16xbf16>
    %398 = vector.extract_strided_slice %328 {offsets = [0, 48], sizes = [12, 16], strides = [1, 1]} : vector<12x64xf32> to vector<12x16xf32>
    %399 = tpu.transpose %398, [1, 0] : vector<12x16xf32> -> vector<16x12xf32>
    %400 = arith.truncf %399 : vector<16x12xf32> to vector<16x12xbf16>
    %401 = vector.extract_strided_slice %329 {offsets = [0, 48], sizes = [12, 16], strides = [1, 1]} : vector<12x64xf32> to vector<12x16xf32>
    %402 = arith.truncf %401 : vector<12x16xf32> to vector<12x16xbf16>
    %cst_116 = arith.constant dense<0.000000e+00> : vector<12x12xf32>
    %403 = tpu.matmul %397, %400, %cst_116 {dimension_numbers = #tpu.dot_dimension_numbers<[1], [0], [0], [1], [0, 0, 1, 1], [], []>} : vector<12x16xbf16>, vector<16x12xbf16>, vector<12x12xf32> -> vector<12x12xf32>
    %cst_117 = arith.constant 2.500000e-01 : f32
    %404 = vector.broadcast %cst_117 : f32 to vector<12x12xf32>
    %405 = arith.mulf %403, %404 : vector<12x12xf32>
    %cst_118 = arith.constant dense<0xFF800000> : vector<12xf32>
    %406 = vector.multi_reduction <maximumf>, %405, %cst_118 [1] : vector<12x12xf32> to vector<12xf32>
    %407 = vector.shape_cast %406 : vector<12xf32> to vector<12x1xf32>
    %408 = vector.broadcast %407 : vector<12x1xf32> to vector<12x12xf32>
    %409 = arith.subf %405, %408 : vector<12x12xf32>
    %410 = math.exp %409 : vector<12x12xf32>
    %cst_119 = arith.constant dense<0.000000e+00> : vector<12xf32>
    %411 = vector.multi_reduction <add>, %410, %cst_119 [1] : vector<12x12xf32> to vector<12xf32>
    %412 = vector.shape_cast %411 : vector<12xf32> to vector<12x1xf32>
    %413 = tpu.reciprocal %412 {approx = true} : vector<12x1xf32> -> vector<12x1xf32>
    %414 = vector.broadcast %413 : vector<12x1xf32> to vector<12x12xf32>
    %415 = arith.mulf %410, %414 : vector<12x12xf32>
    %416 = arith.truncf %415 : vector<12x12xf32> to vector<12x12xbf16>
    %cst_120 = arith.constant dense<0.000000e+00> : vector<12x16xf32>
    %417 = tpu.matmul %416, %402, %cst_120 {dimension_numbers = #tpu.dot_dimension_numbers<[1], [0], [0], [1], [0, 0, 1, 1], [], []>} : vector<12x12xbf16>, vector<12x16xbf16>, vector<12x16xf32> -> vector<12x16xf32>
    %418 = tpu.concatenate %351, %373, %395, %417 in 1 : vector<12x16xf32>, vector<12x16xf32>, vector<12x16xf32>, vector<12x16xf32> -> vector<12x64xf32>
    %419 = vector.extract_strided_slice %418 {offsets = [0, 0], sizes = [4, 64], strides = [1, 1]} : vector<12x64xf32> to vector<4x64xf32>
    %420 = vector.extract_strided_slice %418 {offsets = [4, 0], sizes = [8, 64], strides = [1, 1]} : vector<12x64xf32> to vector<8x64xf32>
    %421 = arith.truncf %420 : vector<8x64xf32> to vector<8x64xbf16>
    %c0_121 = arith.constant 0 : index
    %c0_122 = arith.constant 0 : index
    %422 = vector.load %arg17[%c0_121, %c0_122] : memref<64x64xbf16, #tpu.memory_space<vmem>>, vector<64x64xbf16>
    %cst_123 = arith.constant dense<0.000000e+00> : vector<8x64xf32>
    %423 = tpu.matmul %421, %422, %cst_123 {dimension_numbers = #tpu.dot_dimension_numbers<[1], [0], [0], [1], [0, 0, 1, 1], [], []>} : vector<8x64xbf16>, vector<64x64xbf16>, vector<8x64xf32> -> vector<8x64xf32>
    %c0_124 = arith.constant 0 : index
    %c0_125 = arith.constant 0 : index
    %424 = vector.load %arg18[%c0_124, %c0_125] : memref<1x64xf32, #tpu.memory_space<vmem>>, vector<1x64xf32>
    %425 = vector.broadcast %424 : vector<1x64xf32> to vector<8x64xf32>
    %426 = arith.addf %423, %425 : vector<8x64xf32>
    %427 = vector.broadcast %35 : vector<1x64xf32> to vector<8x64xf32>
    %428 = arith.mulf %427, %426 : vector<8x64xf32>
    %429 = arith.addf %9, %428 : vector<8x64xf32>
    %cst_126 = arith.constant 1.000000e+00 : f32
    %430 = vector.broadcast %cst_126 : f32 to vector<1x64xf32>
    %431 = arith.addf %430, %37 : vector<1x64xf32>
    %cst_127 = arith.constant dense<0.000000e+00> : vector<8xf32>
    %432 = vector.multi_reduction <add>, %429, %cst_127 [1] : vector<8x64xf32> to vector<8xf32>
    %433 = vector.shape_cast %432 : vector<8xf32> to vector<8x1xf32>
    %cst_128 = arith.constant 6.400000e+01 : f32
    %434 = vector.broadcast %cst_128 : f32 to vector<8x1xf32>
    %435 = arith.divf %433, %434 : vector<8x1xf32>
    %436 = vector.broadcast %435 : vector<8x1xf32> to vector<8x64xf32>
    %437 = arith.subf %429, %436 : vector<8x64xf32>
    %438 = vector.broadcast %435 : vector<8x1xf32> to vector<8x64xf32>
    %439 = arith.subf %429, %438 : vector<8x64xf32>
    %440 = arith.mulf %437, %439 : vector<8x64xf32>
    %cst_129 = arith.constant dense<0.000000e+00> : vector<8xf32>
    %441 = vector.multi_reduction <add>, %440, %cst_129 [1] : vector<8x64xf32> to vector<8xf32>
    %442 = vector.shape_cast %441 : vector<8xf32> to vector<8x1xf32>
    %cst_130 = arith.constant 6.400000e+01 : f32
    %443 = vector.broadcast %cst_130 : f32 to vector<8x1xf32>
    %444 = arith.divf %442, %443 : vector<8x1xf32>
    %445 = vector.broadcast %435 : vector<8x1xf32> to vector<8x64xf32>
    %446 = arith.subf %429, %445 : vector<8x64xf32>
    %cst_131 = arith.constant 9.99999997E-7 : f32
    %447 = vector.broadcast %cst_131 : f32 to vector<8x1xf32>
    %448 = arith.addf %444, %447 : vector<8x1xf32>
    %449 = math.rsqrt %448 : vector<8x1xf32>
    %450 = vector.broadcast %449 : vector<8x1xf32> to vector<8x64xf32>
    %451 = arith.mulf %446, %450 : vector<8x64xf32>
    %452 = vector.broadcast %431 : vector<1x64xf32> to vector<8x64xf32>
    %453 = arith.mulf %452, %451 : vector<8x64xf32>
    %454 = vector.broadcast %36 : vector<1x64xf32> to vector<8x64xf32>
    %455 = arith.addf %453, %454 : vector<8x64xf32>
    %456 = arith.truncf %455 : vector<8x64xf32> to vector<8x64xbf16>
    %c0_132 = arith.constant 0 : index
    %c0_133 = arith.constant 0 : index
    %457 = vector.load %arg21[%c0_132, %c0_133] : memref<64x256xbf16, #tpu.memory_space<vmem>>, vector<64x256xbf16>
    %cst_134 = arith.constant dense<0.000000e+00> : vector<8x256xf32>
    %458 = tpu.matmul %456, %457, %cst_134 {dimension_numbers = #tpu.dot_dimension_numbers<[1], [0], [0], [1], [0, 0, 1, 1], [], []>} : vector<8x64xbf16>, vector<64x256xbf16>, vector<8x256xf32> -> vector<8x256xf32>
    %c0_135 = arith.constant 0 : index
    %c0_136 = arith.constant 0 : index
    %459 = vector.load %arg22[%c0_135, %c0_136] : memref<1x256xf32, #tpu.memory_space<vmem>>, vector<1x256xf32>
    %460 = vector.broadcast %459 : vector<1x256xf32> to vector<8x256xf32>
    %461 = arith.addf %458, %460 : vector<8x256xf32>
    %cst_137 = arith.constant 5.000000e-01 : f32
    %462 = vector.broadcast %cst_137 : f32 to vector<8x256xf32>
    %463 = arith.mulf %462, %461 : vector<8x256xf32>
    %cst_138 = arith.constant 4.471500e-02 : f32
    %464 = vector.broadcast %cst_138 : f32 to vector<8x256xf32>
    %465 = arith.mulf %464, %461 : vector<8x256xf32>
    %466 = arith.mulf %465, %461 : vector<8x256xf32>
    %467 = arith.mulf %466, %461 : vector<8x256xf32>
    %468 = arith.addf %461, %467 : vector<8x256xf32>
    %cst_139 = arith.constant 0.797884583 : f32
    %469 = vector.broadcast %cst_139 : f32 to vector<8x256xf32>
    %470 = arith.mulf %469, %468 : vector<8x256xf32>
    %471 = math.tanh %470 : vector<8x256xf32>
    %cst_140 = arith.constant 1.000000e+00 : f32
    %472 = vector.broadcast %cst_140 : f32 to vector<8x256xf32>
    %473 = arith.addf %472, %471 : vector<8x256xf32>
    %474 = arith.mulf %463, %473 : vector<8x256xf32>
    %475 = arith.truncf %474 : vector<8x256xf32> to vector<8x256xbf16>
    %c0_141 = arith.constant 0 : index
    %c0_142 = arith.constant 0 : index
    %476 = vector.load %arg23[%c0_141, %c0_142] : memref<256x64xbf16, #tpu.memory_space<vmem>>, vector<256x64xbf16>
    %cst_143 = arith.constant dense<0.000000e+00> : vector<8x64xf32>
    %477 = tpu.matmul %475, %476, %cst_143 {dimension_numbers = #tpu.dot_dimension_numbers<[1], [0], [0], [1], [0, 0, 1, 1], [], []>} : vector<8x256xbf16>, vector<256x64xbf16>, vector<8x64xf32> -> vector<8x64xf32>
    %c0_144 = arith.constant 0 : index
    %c0_145 = arith.constant 0 : index
    %478 = vector.load %arg24[%c0_144, %c0_145] : memref<1x64xf32, #tpu.memory_space<vmem>>, vector<1x64xf32>
    %479 = vector.broadcast %478 : vector<1x64xf32> to vector<8x64xf32>
    %480 = arith.addf %477, %479 : vector<8x64xf32>
    %481 = vector.broadcast %38 : vector<1x64xf32> to vector<8x64xf32>
    %482 = arith.mulf %481, %480 : vector<8x64xf32>
    %483 = arith.addf %429, %482 : vector<8x64xf32>
    %c0_146 = arith.constant 0 : index
    %c0_147 = arith.constant 0 : index
    %c0_148 = arith.constant 0 : index
    %484 = vector.load %arg29[%c0_146, %c0_147, %c0_148] : memref<2x8x64xf32, #tpu.memory_space<vmem>>, vector<1x8x64xf32>
    %485 = vector.shape_cast %484 : vector<1x8x64xf32> to vector<8x64xf32>
    %486 = vector.shape_cast %483 : vector<8x64xf32> to vector<1x8x64xf32>
    tpu.vector_store %arg29[%c0_146, %c0_147, %c0_148], %486 {strides = array<i32>} : memref<2x8x64xf32, #tpu.memory_space<vmem>>, vector<1x8x64xf32>,
    %487 = arith.truncf %419 : vector<4x64xf32> to vector<4x64xbf16>
    %c0_149 = arith.constant 0 : index
    %c0_150 = arith.constant 0 : index
    %488 = vector.load %arg19[%c0_149, %c0_150] : memref<64x64xbf16, #tpu.memory_space<vmem>>, vector<64x64xbf16>
    %cst_151 = arith.constant dense<0.000000e+00> : vector<4x64xf32>
    %489 = tpu.matmul %487, %488, %cst_151 {dimension_numbers = #tpu.dot_dimension_numbers<[1], [0], [0], [1], [0, 0, 1, 1], [], []>} : vector<4x64xbf16>, vector<64x64xbf16>, vector<4x64xf32> -> vector<4x64xf32>
    %c0_152 = arith.constant 0 : index
    %c0_153 = arith.constant 0 : index
    %490 = vector.load %arg20[%c0_152, %c0_153] : memref<1x64xf32, #tpu.memory_space<vmem>>, vector<1x64xf32>
    %491 = vector.broadcast %490 : vector<1x64xf32> to vector<4x64xf32>
    %492 = arith.addf %489, %491 : vector<4x64xf32>
    %493 = vector.broadcast %41 : vector<1x64xf32> to vector<4x64xf32>
    %494 = arith.mulf %493, %492 : vector<4x64xf32>
    %495 = arith.addf %13, %494 : vector<4x64xf32>
    %cst_154 = arith.constant 1.000000e+00 : f32
    %496 = vector.broadcast %cst_154 : f32 to vector<1x64xf32>
    %497 = arith.addf %496, %43 : vector<1x64xf32>
    %cst_155 = arith.constant dense<0.000000e+00> : vector<4xf32>
    %498 = vector.multi_reduction <add>, %495, %cst_155 [1] : vector<4x64xf32> to vector<4xf32>
    %499 = vector.shape_cast %498 : vector<4xf32> to vector<4x1xf32>
    %cst_156 = arith.constant 6.400000e+01 : f32
    %500 = vector.broadcast %cst_156 : f32 to vector<4x1xf32>
    %501 = arith.divf %499, %500 : vector<4x1xf32>
    %502 = vector.broadcast %501 : vector<4x1xf32> to vector<4x64xf32>
    %503 = arith.subf %495, %502 : vector<4x64xf32>
    %504 = vector.broadcast %501 : vector<4x1xf32> to vector<4x64xf32>
    %505 = arith.subf %495, %504 : vector<4x64xf32>
    %506 = arith.mulf %503, %505 : vector<4x64xf32>
    %cst_157 = arith.constant dense<0.000000e+00> : vector<4xf32>
    %507 = vector.multi_reduction <add>, %506, %cst_157 [1] : vector<4x64xf32> to vector<4xf32>
    %508 = vector.shape_cast %507 : vector<4xf32> to vector<4x1xf32>
    %cst_158 = arith.constant 6.400000e+01 : f32
    %509 = vector.broadcast %cst_158 : f32 to vector<4x1xf32>
    %510 = arith.divf %508, %509 : vector<4x1xf32>
    %511 = vector.broadcast %501 : vector<4x1xf32> to vector<4x64xf32>
    %512 = arith.subf %495, %511 : vector<4x64xf32>
    %cst_159 = arith.constant 9.99999997E-7 : f32
    %513 = vector.broadcast %cst_159 : f32 to vector<4x1xf32>
    %514 = arith.addf %510, %513 : vector<4x1xf32>
    %515 = math.rsqrt %514 : vector<4x1xf32>
    %516 = vector.broadcast %515 : vector<4x1xf32> to vector<4x64xf32>
    %517 = arith.mulf %512, %516 : vector<4x64xf32>
    %518 = vector.broadcast %497 : vector<1x64xf32> to vector<4x64xf32>
    %519 = arith.mulf %518, %517 : vector<4x64xf32>
    %520 = vector.broadcast %42 : vector<1x64xf32> to vector<4x64xf32>
    %521 = arith.addf %519, %520 : vector<4x64xf32>
    %522 = arith.truncf %521 : vector<4x64xf32> to vector<4x64xbf16>
    %c0_160 = arith.constant 0 : index
    %c0_161 = arith.constant 0 : index
    %523 = vector.load %arg25[%c0_160, %c0_161] : memref<64x256xbf16, #tpu.memory_space<vmem>>, vector<64x256xbf16>
    %cst_162 = arith.constant dense<0.000000e+00> : vector<4x256xf32>
    %524 = tpu.matmul %522, %523, %cst_162 {dimension_numbers = #tpu.dot_dimension_numbers<[1], [0], [0], [1], [0, 0, 1, 1], [], []>} : vector<4x64xbf16>, vector<64x256xbf16>, vector<4x256xf32> -> vector<4x256xf32>
    %c0_163 = arith.constant 0 : index
    %c0_164 = arith.constant 0 : index
    %525 = vector.load %arg26[%c0_163, %c0_164] : memref<1x256xf32, #tpu.memory_space<vmem>>, vector<1x256xf32>
    %526 = vector.broadcast %525 : vector<1x256xf32> to vector<4x256xf32>
    %527 = arith.addf %524, %526 : vector<4x256xf32>
    %cst_165 = arith.constant 5.000000e-01 : f32
    %528 = vector.broadcast %cst_165 : f32 to vector<4x256xf32>
    %529 = arith.mulf %528, %527 : vector<4x256xf32>
    %cst_166 = arith.constant 4.471500e-02 : f32
    %530 = vector.broadcast %cst_166 : f32 to vector<4x256xf32>
    %531 = arith.mulf %530, %527 : vector<4x256xf32>
    %532 = arith.mulf %531, %527 : vector<4x256xf32>
    %533 = arith.mulf %532, %527 : vector<4x256xf32>
    %534 = arith.addf %527, %533 : vector<4x256xf32>
    %cst_167 = arith.constant 0.797884583 : f32
    %535 = vector.broadcast %cst_167 : f32 to vector<4x256xf32>
    %536 = arith.mulf %535, %534 : vector<4x256xf32>
    %537 = math.tanh %536 : vector<4x256xf32>
    %cst_168 = arith.constant 1.000000e+00 : f32
    %538 = vector.broadcast %cst_168 : f32 to vector<4x256xf32>
    %539 = arith.addf %538, %537 : vector<4x256xf32>
    %540 = arith.mulf %529, %539 : vector<4x256xf32>
    %541 = arith.truncf %540 : vector<4x256xf32> to vector<4x256xbf16>
    %c0_169 = arith.constant 0 : index
    %c0_170 = arith.constant 0 : index
    %542 = vector.load %arg27[%c0_169, %c0_170] : memref<256x64xbf16, #tpu.memory_space<vmem>>, vector<256x64xbf16>
    %cst_171 = arith.constant dense<0.000000e+00> : vector<4x64xf32>
    %543 = tpu.matmul %541, %542, %cst_171 {dimension_numbers = #tpu.dot_dimension_numbers<[1], [0], [0], [1], [0, 0, 1, 1], [], []>} : vector<4x256xbf16>, vector<256x64xbf16>, vector<4x64xf32> -> vector<4x64xf32>
    %c0_172 = arith.constant 0 : index
    %c0_173 = arith.constant 0 : index
    %544 = vector.load %arg28[%c0_172, %c0_173] : memref<1x64xf32, #tpu.memory_space<vmem>>, vector<1x64xf32>
    %545 = vector.broadcast %544 : vector<1x64xf32> to vector<4x64xf32>
    %546 = arith.addf %543, %545 : vector<4x64xf32>
    %547 = vector.broadcast %44 : vector<1x64xf32> to vector<4x64xf32>
    %548 = arith.mulf %547, %546 : vector<4x64xf32>
    %549 = arith.addf %495, %548 : vector<4x64xf32>
    %c0_174 = arith.constant 0 : index
    %c0_175 = arith.constant 0 : index
    %c0_176 = arith.constant 0 : index
    %550 = vector.load %arg30[%c0_174, %c0_175, %c0_176] : memref<2x4x64xf32, #tpu.memory_space<vmem>>, vector<1x4x64xf32>
    %551 = vector.shape_cast %550 : vector<1x4x64xf32> to vector<4x64xf32>
    %552 = vector.shape_cast %549 : vector<4x64xf32> to vector<1x4x64xf32>
    tpu.vector_store %arg30[%c0_174, %c0_175, %c0_176], %552 {strides = array<i32>} : memref<2x4x64xf32, #tpu.memory_space<vmem>>, vector<1x4x64xf32>,
    %c1 = arith.constant 1 : index
    %c0_177 = arith.constant 0 : index
    %c0_178 = arith.constant 0 : index
    %553 = vector.load %arg0[%c1, %c0_177, %c0_178] : memref<2x8x64xf32, #tpu.memory_space<vmem>>, vector<1x8x64xf32>
    %554 = vector.shape_cast %553 : vector<1x8x64xf32> to vector<8x64xf32>
    %555 = vector.broadcast %0 : vector<1x64xf32> to vector<8x64xf32>
    %556 = arith.addf %554, %555 : vector<8x64xf32>
    %c1_179 = arith.constant 1 : index
    %c0_180 = arith.constant 0 : index
    %c0_181 = arith.constant 0 : index
    %557 = vector.load %arg1[%c1_179, %c0_180, %c0_181] : memref<2x4x64xf32, #tpu.memory_space<vmem>>, vector<1x4x64xf32>
    %558 = vector.shape_cast %557 : vector<1x4x64xf32> to vector<4x64xf32>
    %559 = vector.broadcast %1 : vector<1x64xf32> to vector<4x64xf32>
    %560 = arith.addf %558, %559 : vector<4x64xf32>
    %c1_182 = arith.constant 1 : index
    %c0_183 = arith.constant 0 : index
    %561 = vector.load %arg2[%c1_182, %c0_183] : memref<2x64xf32, #tpu.memory_space<vmem>>, vector<1x64xf32>
    %cst_184 = arith.constant 0.000000e+00 : f32
    %562 = vector.broadcast %cst_184 : f32 to vector<1x64xf32>
    %563 = arith.subf %562, %561 : vector<1x64xf32>
    %564 = math.exp %563 : vector<1x64xf32>
    %cst_185 = arith.constant 1.000000e+00 : f32
    %565 = vector.broadcast %cst_185 : f32 to vector<1x64xf32>
    %566 = arith.addf %565, %564 : vector<1x64xf32>
    %cst_186 = arith.constant 1.000000e+00 : f32
    %567 = vector.broadcast %cst_186 : f32 to vector<1x64xf32>
    %568 = arith.divf %567, %566 : vector<1x64xf32>
    %569 = arith.mulf %561, %568 : vector<1x64xf32>
    %570 = arith.truncf %569 : vector<1x64xf32> to vector<1x64xbf16>
    %c0_187 = arith.constant 0 : index
    %c0_188 = arith.constant 0 : index
    %571 = vector.load %arg5[%c0_187, %c0_188] : memref<64x384xbf16, #tpu.memory_space<vmem>>, vector<64x384xbf16>
    %cst_189 = arith.constant dense<0.000000e+00> : vector<1x384xf32>
    %572 = tpu.matmul %570, %571, %cst_189 {dimension_numbers = #tpu.dot_dimension_numbers<[1], [0], [0], [1], [0, 0, 1, 1], [], []>} : vector<1x64xbf16>, vector<64x384xbf16>, vector<1x384xf32> -> vector<1x384xf32>
    %c0_190 = arith.constant 0 : index
    %c0_191 = arith.constant 0 : index
    %573 = vector.load %arg6[%c0_190, %c0_191] : memref<1x384xf32, #tpu.memory_space<vmem>>, vector<1x384xf32>
    %574 = arith.addf %572, %573 : vector<1x384xf32>
    %575 = arith.truncf %569 : vector<1x64xf32> to vector<1x64xbf16>
    %c0_192 = arith.constant 0 : index
    %c0_193 = arith.constant 0 : index
    %576 = vector.load %arg7[%c0_192, %c0_193] : memref<64x384xbf16, #tpu.memory_space<vmem>>, vector<64x384xbf16>
    %cst_194 = arith.constant dense<0.000000e+00> : vector<1x384xf32>
    %577 = tpu.matmul %575, %576, %cst_194 {dimension_numbers = #tpu.dot_dimension_numbers<[1], [0], [0], [1], [0, 0, 1, 1], [], []>} : vector<1x64xbf16>, vector<64x384xbf16>, vector<1x384xf32> -> vector<1x384xf32>
    %c0_195 = arith.constant 0 : index
    %c0_196 = arith.constant 0 : index
    %578 = vector.load %arg8[%c0_195, %c0_196] : memref<1x384xf32, #tpu.memory_space<vmem>>, vector<1x384xf32>
    %579 = arith.addf %577, %578 : vector<1x384xf32>
    %580 = vector.extract_strided_slice %574 {offsets = [0, 0], sizes = [1, 64], strides = [1, 1]} : vector<1x384xf32> to vector<1x64xf32>
    %581 = vector.extract_strided_slice %574 {offsets = [0, 64], sizes = [1, 64], strides = [1, 1]} : vector<1x384xf32> to vector<1x64xf32>
    %582 = vector.extract_strided_slice %574 {offsets = [0, 128], sizes = [1, 64], strides = [1, 1]} : vector<1x384xf32> to vector<1x64xf32>
    %583 = vector.extract_strided_slice %574 {offsets = [0, 192], sizes = [1, 64], strides = [1, 1]} : vector<1x384xf32> to vector<1x64xf32>
    %584 = vector.extract_strided_slice %574 {offsets = [0, 256], sizes = [1, 64], strides = [1, 1]} : vector<1x384xf32> to vector<1x64xf32>
    %585 = vector.extract_strided_slice %574 {offsets = [0, 320], sizes = [1, 64], strides = [1, 1]} : vector<1x384xf32> to vector<1x64xf32>
    %586 = vector.extract_strided_slice %579 {offsets = [0, 0], sizes = [1, 64], strides = [1, 1]} : vector<1x384xf32> to vector<1x64xf32>
    %587 = vector.extract_strided_slice %579 {offsets = [0, 64], sizes = [1, 64], strides = [1, 1]} : vector<1x384xf32> to vector<1x64xf32>
    %588 = vector.extract_strided_slice %579 {offsets = [0, 128], sizes = [1, 64], strides = [1, 1]} : vector<1x384xf32> to vector<1x64xf32>
    %589 = vector.extract_strided_slice %579 {offsets = [0, 192], sizes = [1, 64], strides = [1, 1]} : vector<1x384xf32> to vector<1x64xf32>
    %590 = vector.extract_strided_slice %579 {offsets = [0, 256], sizes = [1, 64], strides = [1, 1]} : vector<1x384xf32> to vector<1x64xf32>
    %591 = vector.extract_strided_slice %579 {offsets = [0, 320], sizes = [1, 64], strides = [1, 1]} : vector<1x384xf32> to vector<1x64xf32>
    %cst_197 = arith.constant 1.000000e+00 : f32
    %592 = vector.broadcast %cst_197 : f32 to vector<1x64xf32>
    %593 = arith.addf %592, %581 : vector<1x64xf32>
    %cst_198 = arith.constant dense<0.000000e+00> : vector<8xf32>
    %594 = vector.multi_reduction <add>, %556, %cst_198 [1] : vector<8x64xf32> to vector<8xf32>
    %595 = vector.shape_cast %594 : vector<8xf32> to vector<8x1xf32>
    %cst_199 = arith.constant 6.400000e+01 : f32
    %596 = vector.broadcast %cst_199 : f32 to vector<8x1xf32>
    %597 = arith.divf %595, %596 : vector<8x1xf32>
    %598 = vector.broadcast %597 : vector<8x1xf32> to vector<8x64xf32>
    %599 = arith.subf %556, %598 : vector<8x64xf32>
    %600 = vector.broadcast %597 : vector<8x1xf32> to vector<8x64xf32>
    %601 = arith.subf %556, %600 : vector<8x64xf32>
    %602 = arith.mulf %599, %601 : vector<8x64xf32>
    %cst_200 = arith.constant dense<0.000000e+00> : vector<8xf32>
    %603 = vector.multi_reduction <add>, %602, %cst_200 [1] : vector<8x64xf32> to vector<8xf32>
    %604 = vector.shape_cast %603 : vector<8xf32> to vector<8x1xf32>
    %cst_201 = arith.constant 6.400000e+01 : f32
    %605 = vector.broadcast %cst_201 : f32 to vector<8x1xf32>
    %606 = arith.divf %604, %605 : vector<8x1xf32>
    %607 = vector.broadcast %597 : vector<8x1xf32> to vector<8x64xf32>
    %608 = arith.subf %556, %607 : vector<8x64xf32>
    %cst_202 = arith.constant 9.99999997E-7 : f32
    %609 = vector.broadcast %cst_202 : f32 to vector<8x1xf32>
    %610 = arith.addf %606, %609 : vector<8x1xf32>
    %611 = math.rsqrt %610 : vector<8x1xf32>
    %612 = vector.broadcast %611 : vector<8x1xf32> to vector<8x64xf32>
    %613 = arith.mulf %608, %612 : vector<8x64xf32>
    %614 = vector.broadcast %593 : vector<1x64xf32> to vector<8x64xf32>
    %615 = arith.mulf %614, %613 : vector<8x64xf32>
    %616 = vector.broadcast %580 : vector<1x64xf32> to vector<8x64xf32>
    %617 = arith.addf %615, %616 : vector<8x64xf32>
    %618 = arith.truncf %617 : vector<8x64xf32> to vector<8x64xbf16>
    %c0_203 = arith.constant 0 : index
    %c0_204 = arith.constant 0 : index
    %619 = vector.load %arg9[%c0_203, %c0_204] : memref<64x192xbf16, #tpu.memory_space<vmem>>, vector<64x192xbf16>
    %cst_205 = arith.constant dense<0.000000e+00> : vector<8x192xf32>
    %620 = tpu.matmul %618, %619, %cst_205 {dimension_numbers = #tpu.dot_dimension_numbers<[1], [0], [0], [1], [0, 0, 1, 1], [], []>} : vector<8x64xbf16>, vector<64x192xbf16>, vector<8x192xf32> -> vector<8x192xf32>
    %c0_206 = arith.constant 0 : index
    %c0_207 = arith.constant 0 : index
    %621 = vector.load %arg10[%c0_206, %c0_207] : memref<1x192xf32, #tpu.memory_space<vmem>>, vector<1x192xf32>
    %622 = vector.broadcast %621 : vector<1x192xf32> to vector<8x192xf32>
    %623 = arith.addf %620, %622 : vector<8x192xf32>
    %cst_208 = arith.constant 1.000000e+00 : f32
    %624 = vector.broadcast %cst_208 : f32 to vector<1x64xf32>
    %625 = arith.addf %624, %587 : vector<1x64xf32>
    %cst_209 = arith.constant dense<0.000000e+00> : vector<4xf32>
    %626 = vector.multi_reduction <add>, %560, %cst_209 [1] : vector<4x64xf32> to vector<4xf32>
    %627 = vector.shape_cast %626 : vector<4xf32> to vector<4x1xf32>
    %cst_210 = arith.constant 6.400000e+01 : f32
    %628 = vector.broadcast %cst_210 : f32 to vector<4x1xf32>
    %629 = arith.divf %627, %628 : vector<4x1xf32>
    %630 = vector.broadcast %629 : vector<4x1xf32> to vector<4x64xf32>
    %631 = arith.subf %560, %630 : vector<4x64xf32>
    %632 = vector.broadcast %629 : vector<4x1xf32> to vector<4x64xf32>
    %633 = arith.subf %560, %632 : vector<4x64xf32>
    %634 = arith.mulf %631, %633 : vector<4x64xf32>
    %cst_211 = arith.constant dense<0.000000e+00> : vector<4xf32>
    %635 = vector.multi_reduction <add>, %634, %cst_211 [1] : vector<4x64xf32> to vector<4xf32>
    %636 = vector.shape_cast %635 : vector<4xf32> to vector<4x1xf32>
    %cst_212 = arith.constant 6.400000e+01 : f32
    %637 = vector.broadcast %cst_212 : f32 to vector<4x1xf32>
    %638 = arith.divf %636, %637 : vector<4x1xf32>
    %639 = vector.broadcast %629 : vector<4x1xf32> to vector<4x64xf32>
    %640 = arith.subf %560, %639 : vector<4x64xf32>
    %cst_213 = arith.constant 9.99999997E-7 : f32
    %641 = vector.broadcast %cst_213 : f32 to vector<4x1xf32>
    %642 = arith.addf %638, %641 : vector<4x1xf32>
    %643 = math.rsqrt %642 : vector<4x1xf32>
    %644 = vector.broadcast %643 : vector<4x1xf32> to vector<4x64xf32>
    %645 = arith.mulf %640, %644 : vector<4x64xf32>
    %646 = vector.broadcast %625 : vector<1x64xf32> to vector<4x64xf32>
    %647 = arith.mulf %646, %645 : vector<4x64xf32>
    %648 = vector.broadcast %586 : vector<1x64xf32> to vector<4x64xf32>
    %649 = arith.addf %647, %648 : vector<4x64xf32>
    %650 = arith.truncf %649 : vector<4x64xf32> to vector<4x64xbf16>
    %c0_214 = arith.constant 0 : index
    %c0_215 = arith.constant 0 : index
    %651 = vector.load %arg11[%c0_214, %c0_215] : memref<64x192xbf16, #tpu.memory_space<vmem>>, vector<64x192xbf16>
    %cst_216 = arith.constant dense<0.000000e+00> : vector<4x192xf32>
    %652 = tpu.matmul %650, %651, %cst_216 {dimension_numbers = #tpu.dot_dimension_numbers<[1], [0], [0], [1], [0, 0, 1, 1], [], []>} : vector<4x64xbf16>, vector<64x192xbf16>, vector<4x192xf32> -> vector<4x192xf32>
    %c0_217 = arith.constant 0 : index
    %c0_218 = arith.constant 0 : index
    %653 = vector.load %arg12[%c0_217, %c0_218] : memref<1x192xf32, #tpu.memory_space<vmem>>, vector<1x192xf32>
    %654 = vector.broadcast %653 : vector<1x192xf32> to vector<4x192xf32>
    %655 = arith.addf %652, %654 : vector<4x192xf32>
    %656 = vector.extract_strided_slice %623 {offsets = [0, 0], sizes = [8, 64], strides = [1, 1]} : vector<8x192xf32> to vector<8x64xf32>
    %657 = vector.extract_strided_slice %656 {offsets = [0, 0], sizes = [8, 16], strides = [1, 1]} : vector<8x64xf32> to vector<8x16xf32>
    %658 = arith.mulf %657, %657 : vector<8x16xf32>
    %cst_219 = arith.constant dense<0.000000e+00> : vector<8xf32>
    %659 = vector.multi_reduction <add>, %658, %cst_219 [1] : vector<8x16xf32> to vector<8xf32>
    %660 = vector.shape_cast %659 : vector<8xf32> to vector<8x1xf32>
    %cst_220 = arith.constant 1.600000e+01 : f32
    %661 = vector.broadcast %cst_220 : f32 to vector<8x1xf32>
    %662 = arith.divf %660, %661 : vector<8x1xf32>
    %cst_221 = arith.constant 9.99999997E-7 : f32
    %663 = vector.broadcast %cst_221 : f32 to vector<8x1xf32>
    %664 = arith.addf %662, %663 : vector<8x1xf32>
    %665 = math.rsqrt %664 : vector<8x1xf32>
    %666 = vector.broadcast %665 : vector<8x1xf32> to vector<8x16xf32>
    %667 = arith.mulf %657, %666 : vector<8x16xf32>
    %668 = vector.broadcast %2 : vector<1x16xf32> to vector<8x16xf32>
    %669 = arith.mulf %667, %668 : vector<8x16xf32>
    %670 = vector.extract_strided_slice %656 {offsets = [0, 16], sizes = [8, 16], strides = [1, 1]} : vector<8x64xf32> to vector<8x16xf32>
    %671 = arith.mulf %670, %670 : vector<8x16xf32>
    %cst_222 = arith.constant dense<0.000000e+00> : vector<8xf32>
    %672 = vector.multi_reduction <add>, %671, %cst_222 [1] : vector<8x16xf32> to vector<8xf32>
    %673 = vector.shape_cast %672 : vector<8xf32> to vector<8x1xf32>
    %cst_223 = arith.constant 1.600000e+01 : f32
    %674 = vector.broadcast %cst_223 : f32 to vector<8x1xf32>
    %675 = arith.divf %673, %674 : vector<8x1xf32>
    %cst_224 = arith.constant 9.99999997E-7 : f32
    %676 = vector.broadcast %cst_224 : f32 to vector<8x1xf32>
    %677 = arith.addf %675, %676 : vector<8x1xf32>
    %678 = math.rsqrt %677 : vector<8x1xf32>
    %679 = vector.broadcast %678 : vector<8x1xf32> to vector<8x16xf32>
    %680 = arith.mulf %670, %679 : vector<8x16xf32>
    %681 = vector.broadcast %2 : vector<1x16xf32> to vector<8x16xf32>
    %682 = arith.mulf %680, %681 : vector<8x16xf32>
    %683 = vector.extract_strided_slice %656 {offsets = [0, 32], sizes = [8, 16], strides = [1, 1]} : vector<8x64xf32> to vector<8x16xf32>
    %684 = arith.mulf %683, %683 : vector<8x16xf32>
    %cst_225 = arith.constant dense<0.000000e+00> : vector<8xf32>
    %685 = vector.multi_reduction <add>, %684, %cst_225 [1] : vector<8x16xf32> to vector<8xf32>
    %686 = vector.shape_cast %685 : vector<8xf32> to vector<8x1xf32>
    %cst_226 = arith.constant 1.600000e+01 : f32
    %687 = vector.broadcast %cst_226 : f32 to vector<8x1xf32>
    %688 = arith.divf %686, %687 : vector<8x1xf32>
    %cst_227 = arith.constant 9.99999997E-7 : f32
    %689 = vector.broadcast %cst_227 : f32 to vector<8x1xf32>
    %690 = arith.addf %688, %689 : vector<8x1xf32>
    %691 = math.rsqrt %690 : vector<8x1xf32>
    %692 = vector.broadcast %691 : vector<8x1xf32> to vector<8x16xf32>
    %693 = arith.mulf %683, %692 : vector<8x16xf32>
    %694 = vector.broadcast %2 : vector<1x16xf32> to vector<8x16xf32>
    %695 = arith.mulf %693, %694 : vector<8x16xf32>
    %696 = vector.extract_strided_slice %656 {offsets = [0, 48], sizes = [8, 16], strides = [1, 1]} : vector<8x64xf32> to vector<8x16xf32>
    %697 = arith.mulf %696, %696 : vector<8x16xf32>
    %cst_228 = arith.constant dense<0.000000e+00> : vector<8xf32>
    %698 = vector.multi_reduction <add>, %697, %cst_228 [1] : vector<8x16xf32> to vector<8xf32>
    %699 = vector.shape_cast %698 : vector<8xf32> to vector<8x1xf32>
    %cst_229 = arith.constant 1.600000e+01 : f32
    %700 = vector.broadcast %cst_229 : f32 to vector<8x1xf32>
    %701 = arith.divf %699, %700 : vector<8x1xf32>
    %cst_230 = arith.constant 9.99999997E-7 : f32
    %702 = vector.broadcast %cst_230 : f32 to vector<8x1xf32>
    %703 = arith.addf %701, %702 : vector<8x1xf32>
    %704 = math.rsqrt %703 : vector<8x1xf32>
    %705 = vector.broadcast %704 : vector<8x1xf32> to vector<8x16xf32>
    %706 = arith.mulf %696, %705 : vector<8x16xf32>
    %707 = vector.broadcast %2 : vector<1x16xf32> to vector<8x16xf32>
    %708 = arith.mulf %706, %707 : vector<8x16xf32>
    %709 = tpu.concatenate %669, %682, %695, %708 in 1 : vector<8x16xf32>, vector<8x16xf32>, vector<8x16xf32>, vector<8x16xf32> -> vector<8x64xf32>
    %710 = vector.extract_strided_slice %623 {offsets = [0, 64], sizes = [8, 64], strides = [1, 1]} : vector<8x192xf32> to vector<8x64xf32>
    %711 = vector.extract_strided_slice %710 {offsets = [0, 0], sizes = [8, 16], strides = [1, 1]} : vector<8x64xf32> to vector<8x16xf32>
    %712 = arith.mulf %711, %711 : vector<8x16xf32>
    %cst_231 = arith.constant dense<0.000000e+00> : vector<8xf32>
    %713 = vector.multi_reduction <add>, %712, %cst_231 [1] : vector<8x16xf32> to vector<8xf32>
    %714 = vector.shape_cast %713 : vector<8xf32> to vector<8x1xf32>
    %cst_232 = arith.constant 1.600000e+01 : f32
    %715 = vector.broadcast %cst_232 : f32 to vector<8x1xf32>
    %716 = arith.divf %714, %715 : vector<8x1xf32>
    %cst_233 = arith.constant 9.99999997E-7 : f32
    %717 = vector.broadcast %cst_233 : f32 to vector<8x1xf32>
    %718 = arith.addf %716, %717 : vector<8x1xf32>
    %719 = math.rsqrt %718 : vector<8x1xf32>
    %720 = vector.broadcast %719 : vector<8x1xf32> to vector<8x16xf32>
    %721 = arith.mulf %711, %720 : vector<8x16xf32>
    %722 = vector.broadcast %3 : vector<1x16xf32> to vector<8x16xf32>
    %723 = arith.mulf %721, %722 : vector<8x16xf32>
    %724 = vector.extract_strided_slice %710 {offsets = [0, 16], sizes = [8, 16], strides = [1, 1]} : vector<8x64xf32> to vector<8x16xf32>
    %725 = arith.mulf %724, %724 : vector<8x16xf32>
    %cst_234 = arith.constant dense<0.000000e+00> : vector<8xf32>
    %726 = vector.multi_reduction <add>, %725, %cst_234 [1] : vector<8x16xf32> to vector<8xf32>
    %727 = vector.shape_cast %726 : vector<8xf32> to vector<8x1xf32>
    %cst_235 = arith.constant 1.600000e+01 : f32
    %728 = vector.broadcast %cst_235 : f32 to vector<8x1xf32>
    %729 = arith.divf %727, %728 : vector<8x1xf32>
    %cst_236 = arith.constant 9.99999997E-7 : f32
    %730 = vector.broadcast %cst_236 : f32 to vector<8x1xf32>
    %731 = arith.addf %729, %730 : vector<8x1xf32>
    %732 = math.rsqrt %731 : vector<8x1xf32>
    %733 = vector.broadcast %732 : vector<8x1xf32> to vector<8x16xf32>
    %734 = arith.mulf %724, %733 : vector<8x16xf32>
    %735 = vector.broadcast %3 : vector<1x16xf32> to vector<8x16xf32>
    %736 = arith.mulf %734, %735 : vector<8x16xf32>
    %737 = vector.extract_strided_slice %710 {offsets = [0, 32], sizes = [8, 16], strides = [1, 1]} : vector<8x64xf32> to vector<8x16xf32>
    %738 = arith.mulf %737, %737 : vector<8x16xf32>
    %cst_237 = arith.constant dense<0.000000e+00> : vector<8xf32>
    %739 = vector.multi_reduction <add>, %738, %cst_237 [1] : vector<8x16xf32> to vector<8xf32>
    %740 = vector.shape_cast %739 : vector<8xf32> to vector<8x1xf32>
    %cst_238 = arith.constant 1.600000e+01 : f32
    %741 = vector.broadcast %cst_238 : f32 to vector<8x1xf32>
    %742 = arith.divf %740, %741 : vector<8x1xf32>
    %cst_239 = arith.constant 9.99999997E-7 : f32
    %743 = vector.broadcast %cst_239 : f32 to vector<8x1xf32>
    %744 = arith.addf %742, %743 : vector<8x1xf32>
    %745 = math.rsqrt %744 : vector<8x1xf32>
    %746 = vector.broadcast %745 : vector<8x1xf32> to vector<8x16xf32>
    %747 = arith.mulf %737, %746 : vector<8x16xf32>
    %748 = vector.broadcast %3 : vector<1x16xf32> to vector<8x16xf32>
    %749 = arith.mulf %747, %748 : vector<8x16xf32>
    %750 = vector.extract_strided_slice %710 {offsets = [0, 48], sizes = [8, 16], strides = [1, 1]} : vector<8x64xf32> to vector<8x16xf32>
    %751 = arith.mulf %750, %750 : vector<8x16xf32>
    %cst_240 = arith.constant dense<0.000000e+00> : vector<8xf32>
    %752 = vector.multi_reduction <add>, %751, %cst_240 [1] : vector<8x16xf32> to vector<8xf32>
    %753 = vector.shape_cast %752 : vector<8xf32> to vector<8x1xf32>
    %cst_241 = arith.constant 1.600000e+01 : f32
    %754 = vector.broadcast %cst_241 : f32 to vector<8x1xf32>
    %755 = arith.divf %753, %754 : vector<8x1xf32>
    %cst_242 = arith.constant 9.99999997E-7 : f32
    %756 = vector.broadcast %cst_242 : f32 to vector<8x1xf32>
    %757 = arith.addf %755, %756 : vector<8x1xf32>
    %758 = math.rsqrt %757 : vector<8x1xf32>
    %759 = vector.broadcast %758 : vector<8x1xf32> to vector<8x16xf32>
    %760 = arith.mulf %750, %759 : vector<8x16xf32>
    %761 = vector.broadcast %3 : vector<1x16xf32> to vector<8x16xf32>
    %762 = arith.mulf %760, %761 : vector<8x16xf32>
    %763 = tpu.concatenate %723, %736, %749, %762 in 1 : vector<8x16xf32>, vector<8x16xf32>, vector<8x16xf32>, vector<8x16xf32> -> vector<8x64xf32>
    %764 = vector.extract_strided_slice %623 {offsets = [0, 128], sizes = [8, 64], strides = [1, 1]} : vector<8x192xf32> to vector<8x64xf32>
    %765 = vector.extract_strided_slice %655 {offsets = [0, 0], sizes = [4, 64], strides = [1, 1]} : vector<4x192xf32> to vector<4x64xf32>
    %766 = vector.extract_strided_slice %765 {offsets = [0, 0], sizes = [4, 16], strides = [1, 1]} : vector<4x64xf32> to vector<4x16xf32>
    %767 = arith.mulf %766, %766 : vector<4x16xf32>
    %cst_243 = arith.constant dense<0.000000e+00> : vector<4xf32>
    %768 = vector.multi_reduction <add>, %767, %cst_243 [1] : vector<4x16xf32> to vector<4xf32>
    %769 = vector.shape_cast %768 : vector<4xf32> to vector<4x1xf32>
    %cst_244 = arith.constant 1.600000e+01 : f32
    %770 = vector.broadcast %cst_244 : f32 to vector<4x1xf32>
    %771 = arith.divf %769, %770 : vector<4x1xf32>
    %cst_245 = arith.constant 9.99999997E-7 : f32
    %772 = vector.broadcast %cst_245 : f32 to vector<4x1xf32>
    %773 = arith.addf %771, %772 : vector<4x1xf32>
    %774 = math.rsqrt %773 : vector<4x1xf32>
    %775 = vector.broadcast %774 : vector<4x1xf32> to vector<4x16xf32>
    %776 = arith.mulf %766, %775 : vector<4x16xf32>
    %777 = vector.broadcast %4 : vector<1x16xf32> to vector<4x16xf32>
    %778 = arith.mulf %776, %777 : vector<4x16xf32>
    %779 = vector.extract_strided_slice %765 {offsets = [0, 16], sizes = [4, 16], strides = [1, 1]} : vector<4x64xf32> to vector<4x16xf32>
    %780 = arith.mulf %779, %779 : vector<4x16xf32>
    %cst_246 = arith.constant dense<0.000000e+00> : vector<4xf32>
    %781 = vector.multi_reduction <add>, %780, %cst_246 [1] : vector<4x16xf32> to vector<4xf32>
    %782 = vector.shape_cast %781 : vector<4xf32> to vector<4x1xf32>
    %cst_247 = arith.constant 1.600000e+01 : f32
    %783 = vector.broadcast %cst_247 : f32 to vector<4x1xf32>
    %784 = arith.divf %782, %783 : vector<4x1xf32>
    %cst_248 = arith.constant 9.99999997E-7 : f32
    %785 = vector.broadcast %cst_248 : f32 to vector<4x1xf32>
    %786 = arith.addf %784, %785 : vector<4x1xf32>
    %787 = math.rsqrt %786 : vector<4x1xf32>
    %788 = vector.broadcast %787 : vector<4x1xf32> to vector<4x16xf32>
    %789 = arith.mulf %779, %788 : vector<4x16xf32>
    %790 = vector.broadcast %4 : vector<1x16xf32> to vector<4x16xf32>
    %791 = arith.mulf %789, %790 : vector<4x16xf32>
    %792 = vector.extract_strided_slice %765 {offsets = [0, 32], sizes = [4, 16], strides = [1, 1]} : vector<4x64xf32> to vector<4x16xf32>
    %793 = arith.mulf %792, %792 : vector<4x16xf32>
    %cst_249 = arith.constant dense<0.000000e+00> : vector<4xf32>
    %794 = vector.multi_reduction <add>, %793, %cst_249 [1] : vector<4x16xf32> to vector<4xf32>
    %795 = vector.shape_cast %794 : vector<4xf32> to vector<4x1xf32>
    %cst_250 = arith.constant 1.600000e+01 : f32
    %796 = vector.broadcast %cst_250 : f32 to vector<4x1xf32>
    %797 = arith.divf %795, %796 : vector<4x1xf32>
    %cst_251 = arith.constant 9.99999997E-7 : f32
    %798 = vector.broadcast %cst_251 : f32 to vector<4x1xf32>
    %799 = arith.addf %797, %798 : vector<4x1xf32>
    %800 = math.rsqrt %799 : vector<4x1xf32>
    %801 = vector.broadcast %800 : vector<4x1xf32> to vector<4x16xf32>
    %802 = arith.mulf %792, %801 : vector<4x16xf32>
    %803 = vector.broadcast %4 : vector<1x16xf32> to vector<4x16xf32>
    %804 = arith.mulf %802, %803 : vector<4x16xf32>
    %805 = vector.extract_strided_slice %765 {offsets = [0, 48], sizes = [4, 16], strides = [1, 1]} : vector<4x64xf32> to vector<4x16xf32>
    %806 = arith.mulf %805, %805 : vector<4x16xf32>
    %cst_252 = arith.constant dense<0.000000e+00> : vector<4xf32>
    %807 = vector.multi_reduction <add>, %806, %cst_252 [1] : vector<4x16xf32> to vector<4xf32>
    %808 = vector.shape_cast %807 : vector<4xf32> to vector<4x1xf32>
    %cst_253 = arith.constant 1.600000e+01 : f32
    %809 = vector.broadcast %cst_253 : f32 to vector<4x1xf32>
    %810 = arith.divf %808, %809 : vector<4x1xf32>
    %cst_254 = arith.constant 9.99999997E-7 : f32
    %811 = vector.broadcast %cst_254 : f32 to vector<4x1xf32>
    %812 = arith.addf %810, %811 : vector<4x1xf32>
    %813 = math.rsqrt %812 : vector<4x1xf32>
    %814 = vector.broadcast %813 : vector<4x1xf32> to vector<4x16xf32>
    %815 = arith.mulf %805, %814 : vector<4x16xf32>
    %816 = vector.broadcast %4 : vector<1x16xf32> to vector<4x16xf32>
    %817 = arith.mulf %815, %816 : vector<4x16xf32>
    %818 = tpu.concatenate %778, %791, %804, %817 in 1 : vector<4x16xf32>, vector<4x16xf32>, vector<4x16xf32>, vector<4x16xf32> -> vector<4x64xf32>
    %819 = vector.extract_strided_slice %655 {offsets = [0, 64], sizes = [4, 64], strides = [1, 1]} : vector<4x192xf32> to vector<4x64xf32>
    %820 = vector.extract_strided_slice %819 {offsets = [0, 0], sizes = [4, 16], strides = [1, 1]} : vector<4x64xf32> to vector<4x16xf32>
    %821 = arith.mulf %820, %820 : vector<4x16xf32>
    %cst_255 = arith.constant dense<0.000000e+00> : vector<4xf32>
    %822 = vector.multi_reduction <add>, %821, %cst_255 [1] : vector<4x16xf32> to vector<4xf32>
    %823 = vector.shape_cast %822 : vector<4xf32> to vector<4x1xf32>
    %cst_256 = arith.constant 1.600000e+01 : f32
    %824 = vector.broadcast %cst_256 : f32 to vector<4x1xf32>
    %825 = arith.divf %823, %824 : vector<4x1xf32>
    %cst_257 = arith.constant 9.99999997E-7 : f32
    %826 = vector.broadcast %cst_257 : f32 to vector<4x1xf32>
    %827 = arith.addf %825, %826 : vector<4x1xf32>
    %828 = math.rsqrt %827 : vector<4x1xf32>
    %829 = vector.broadcast %828 : vector<4x1xf32> to vector<4x16xf32>
    %830 = arith.mulf %820, %829 : vector<4x16xf32>
    %831 = vector.broadcast %5 : vector<1x16xf32> to vector<4x16xf32>
    %832 = arith.mulf %830, %831 : vector<4x16xf32>
    %833 = vector.extract_strided_slice %819 {offsets = [0, 16], sizes = [4, 16], strides = [1, 1]} : vector<4x64xf32> to vector<4x16xf32>
    %834 = arith.mulf %833, %833 : vector<4x16xf32>
    %cst_258 = arith.constant dense<0.000000e+00> : vector<4xf32>
    %835 = vector.multi_reduction <add>, %834, %cst_258 [1] : vector<4x16xf32> to vector<4xf32>
    %836 = vector.shape_cast %835 : vector<4xf32> to vector<4x1xf32>
    %cst_259 = arith.constant 1.600000e+01 : f32
    %837 = vector.broadcast %cst_259 : f32 to vector<4x1xf32>
    %838 = arith.divf %836, %837 : vector<4x1xf32>
    %cst_260 = arith.constant 9.99999997E-7 : f32
    %839 = vector.broadcast %cst_260 : f32 to vector<4x1xf32>
    %840 = arith.addf %838, %839 : vector<4x1xf32>
    %841 = math.rsqrt %840 : vector<4x1xf32>
    %842 = vector.broadcast %841 : vector<4x1xf32> to vector<4x16xf32>
    %843 = arith.mulf %833, %842 : vector<4x16xf32>
    %844 = vector.broadcast %5 : vector<1x16xf32> to vector<4x16xf32>
    %845 = arith.mulf %843, %844 : vector<4x16xf32>
    %846 = vector.extract_strided_slice %819 {offsets = [0, 32], sizes = [4, 16], strides = [1, 1]} : vector<4x64xf32> to vector<4x16xf32>
    %847 = arith.mulf %846, %846 : vector<4x16xf32>
    %cst_261 = arith.constant dense<0.000000e+00> : vector<4xf32>
    %848 = vector.multi_reduction <add>, %847, %cst_261 [1] : vector<4x16xf32> to vector<4xf32>
    %849 = vector.shape_cast %848 : vector<4xf32> to vector<4x1xf32>
    %cst_262 = arith.constant 1.600000e+01 : f32
    %850 = vector.broadcast %cst_262 : f32 to vector<4x1xf32>
    %851 = arith.divf %849, %850 : vector<4x1xf32>
    %cst_263 = arith.constant 9.99999997E-7 : f32
    %852 = vector.broadcast %cst_263 : f32 to vector<4x1xf32>
    %853 = arith.addf %851, %852 : vector<4x1xf32>
    %854 = math.rsqrt %853 : vector<4x1xf32>
    %855 = vector.broadcast %854 : vector<4x1xf32> to vector<4x16xf32>
    %856 = arith.mulf %846, %855 : vector<4x16xf32>
    %857 = vector.broadcast %5 : vector<1x16xf32> to vector<4x16xf32>
    %858 = arith.mulf %856, %857 : vector<4x16xf32>
    %859 = vector.extract_strided_slice %819 {offsets = [0, 48], sizes = [4, 16], strides = [1, 1]} : vector<4x64xf32> to vector<4x16xf32>
    %860 = arith.mulf %859, %859 : vector<4x16xf32>
    %cst_264 = arith.constant dense<0.000000e+00> : vector<4xf32>
    %861 = vector.multi_reduction <add>, %860, %cst_264 [1] : vector<4x16xf32> to vector<4xf32>
    %862 = vector.shape_cast %861 : vector<4xf32> to vector<4x1xf32>
    %cst_265 = arith.constant 1.600000e+01 : f32
    %863 = vector.broadcast %cst_265 : f32 to vector<4x1xf32>
    %864 = arith.divf %862, %863 : vector<4x1xf32>
    %cst_266 = arith.constant 9.99999997E-7 : f32
    %865 = vector.broadcast %cst_266 : f32 to vector<4x1xf32>
    %866 = arith.addf %864, %865 : vector<4x1xf32>
    %867 = math.rsqrt %866 : vector<4x1xf32>
    %868 = vector.broadcast %867 : vector<4x1xf32> to vector<4x16xf32>
    %869 = arith.mulf %859, %868 : vector<4x16xf32>
    %870 = vector.broadcast %5 : vector<1x16xf32> to vector<4x16xf32>
    %871 = arith.mulf %869, %870 : vector<4x16xf32>
    %872 = tpu.concatenate %832, %845, %858, %871 in 1 : vector<4x16xf32>, vector<4x16xf32>, vector<4x16xf32>, vector<4x16xf32> -> vector<4x64xf32>
    %873 = vector.extract_strided_slice %655 {offsets = [0, 128], sizes = [4, 64], strides = [1, 1]} : vector<4x192xf32> to vector<4x64xf32>
    %874 = tpu.concatenate %818, %709 in 0 : vector<4x64xf32>, vector<8x64xf32> -> vector<12x64xf32>
    %875 = tpu.concatenate %872, %763 in 0 : vector<4x64xf32>, vector<8x64xf32> -> vector<12x64xf32>
    %876 = tpu.concatenate %873, %764 in 0 : vector<4x64xf32>, vector<8x64xf32> -> vector<12x64xf32>
    %877 = vector.extract_strided_slice %874 {offsets = [0, 0], sizes = [12, 16], strides = [1, 1]} : vector<12x64xf32> to vector<12x16xf32>
    %878 = arith.truncf %877 : vector<12x16xf32> to vector<12x16xbf16>
    %879 = vector.extract_strided_slice %875 {offsets = [0, 0], sizes = [12, 16], strides = [1, 1]} : vector<12x64xf32> to vector<12x16xf32>
    %880 = tpu.transpose %879, [1, 0] : vector<12x16xf32> -> vector<16x12xf32>
    %881 = arith.truncf %880 : vector<16x12xf32> to vector<16x12xbf16>
    %882 = vector.extract_strided_slice %876 {offsets = [0, 0], sizes = [12, 16], strides = [1, 1]} : vector<12x64xf32> to vector<12x16xf32>
    %883 = arith.truncf %882 : vector<12x16xf32> to vector<12x16xbf16>
    %cst_267 = arith.constant dense<0.000000e+00> : vector<12x12xf32>
    %884 = tpu.matmul %878, %881, %cst_267 {dimension_numbers = #tpu.dot_dimension_numbers<[1], [0], [0], [1], [0, 0, 1, 1], [], []>} : vector<12x16xbf16>, vector<16x12xbf16>, vector<12x12xf32> -> vector<12x12xf32>
    %cst_268 = arith.constant 2.500000e-01 : f32
    %885 = vector.broadcast %cst_268 : f32 to vector<12x12xf32>
    %886 = arith.mulf %884, %885 : vector<12x12xf32>
    %cst_269 = arith.constant dense<0xFF800000> : vector<12xf32>
    %887 = vector.multi_reduction <maximumf>, %886, %cst_269 [1] : vector<12x12xf32> to vector<12xf32>
    %888 = vector.shape_cast %887 : vector<12xf32> to vector<12x1xf32>
    %889 = vector.broadcast %888 : vector<12x1xf32> to vector<12x12xf32>
    %890 = arith.subf %886, %889 : vector<12x12xf32>
    %891 = math.exp %890 : vector<12x12xf32>
    %cst_270 = arith.constant dense<0.000000e+00> : vector<12xf32>
    %892 = vector.multi_reduction <add>, %891, %cst_270 [1] : vector<12x12xf32> to vector<12xf32>
    %893 = vector.shape_cast %892 : vector<12xf32> to vector<12x1xf32>
    %894 = tpu.reciprocal %893 {approx = true} : vector<12x1xf32> -> vector<12x1xf32>
    %895 = vector.broadcast %894 : vector<12x1xf32> to vector<12x12xf32>
    %896 = arith.mulf %891, %895 : vector<12x12xf32>
    %897 = arith.truncf %896 : vector<12x12xf32> to vector<12x12xbf16>
    %cst_271 = arith.constant dense<0.000000e+00> : vector<12x16xf32>
    %898 = tpu.matmul %897, %883, %cst_271 {dimension_numbers = #tpu.dot_dimension_numbers<[1], [0], [0], [1], [0, 0, 1, 1], [], []>} : vector<12x12xbf16>, vector<12x16xbf16>, vector<12x16xf32> -> vector<12x16xf32>
    %899 = vector.extract_strided_slice %874 {offsets = [0, 16], sizes = [12, 16], strides = [1, 1]} : vector<12x64xf32> to vector<12x16xf32>
    %900 = arith.truncf %899 : vector<12x16xf32> to vector<12x16xbf16>
    %901 = vector.extract_strided_slice %875 {offsets = [0, 16], sizes = [12, 16], strides = [1, 1]} : vector<12x64xf32> to vector<12x16xf32>
    %902 = tpu.transpose %901, [1, 0] : vector<12x16xf32> -> vector<16x12xf32>
    %903 = arith.truncf %902 : vector<16x12xf32> to vector<16x12xbf16>
    %904 = vector.extract_strided_slice %876 {offsets = [0, 16], sizes = [12, 16], strides = [1, 1]} : vector<12x64xf32> to vector<12x16xf32>
    %905 = arith.truncf %904 : vector<12x16xf32> to vector<12x16xbf16>
    %cst_272 = arith.constant dense<0.000000e+00> : vector<12x12xf32>
    %906 = tpu.matmul %900, %903, %cst_272 {dimension_numbers = #tpu.dot_dimension_numbers<[1], [0], [0], [1], [0, 0, 1, 1], [], []>} : vector<12x16xbf16>, vector<16x12xbf16>, vector<12x12xf32> -> vector<12x12xf32>
    %cst_273 = arith.constant 2.500000e-01 : f32
    %907 = vector.broadcast %cst_273 : f32 to vector<12x12xf32>
    %908 = arith.mulf %906, %907 : vector<12x12xf32>
    %cst_274 = arith.constant dense<0xFF800000> : vector<12xf32>
    %909 = vector.multi_reduction <maximumf>, %908, %cst_274 [1] : vector<12x12xf32> to vector<12xf32>
    %910 = vector.shape_cast %909 : vector<12xf32> to vector<12x1xf32>
    %911 = vector.broadcast %910 : vector<12x1xf32> to vector<12x12xf32>
    %912 = arith.subf %908, %911 : vector<12x12xf32>
    %913 = math.exp %912 : vector<12x12xf32>
    %cst_275 = arith.constant dense<0.000000e+00> : vector<12xf32>
    %914 = vector.multi_reduction <add>, %913, %cst_275 [1] : vector<12x12xf32> to vector<12xf32>
    %915 = vector.shape_cast %914 : vector<12xf32> to vector<12x1xf32>
    %916 = tpu.reciprocal %915 {approx = true} : vector<12x1xf32> -> vector<12x1xf32>
    %917 = vector.broadcast %916 : vector<12x1xf32> to vector<12x12xf32>
    %918 = arith.mulf %913, %917 : vector<12x12xf32>
    %919 = arith.truncf %918 : vector<12x12xf32> to vector<12x12xbf16>
    %cst_276 = arith.constant dense<0.000000e+00> : vector<12x16xf32>
    %920 = tpu.matmul %919, %905, %cst_276 {dimension_numbers = #tpu.dot_dimension_numbers<[1], [0], [0], [1], [0, 0, 1, 1], [], []>} : vector<12x12xbf16>, vector<12x16xbf16>, vector<12x16xf32> -> vector<12x16xf32>
    %921 = vector.extract_strided_slice %874 {offsets = [0, 32], sizes = [12, 16], strides = [1, 1]} : vector<12x64xf32> to vector<12x16xf32>
    %922 = arith.truncf %921 : vector<12x16xf32> to vector<12x16xbf16>
    %923 = vector.extract_strided_slice %875 {offsets = [0, 32], sizes = [12, 16], strides = [1, 1]} : vector<12x64xf32> to vector<12x16xf32>
    %924 = tpu.transpose %923, [1, 0] : vector<12x16xf32> -> vector<16x12xf32>
    %925 = arith.truncf %924 : vector<16x12xf32> to vector<16x12xbf16>
    %926 = vector.extract_strided_slice %876 {offsets = [0, 32], sizes = [12, 16], strides = [1, 1]} : vector<12x64xf32> to vector<12x16xf32>
    %927 = arith.truncf %926 : vector<12x16xf32> to vector<12x16xbf16>
    %cst_277 = arith.constant dense<0.000000e+00> : vector<12x12xf32>
    %928 = tpu.matmul %922, %925, %cst_277 {dimension_numbers = #tpu.dot_dimension_numbers<[1], [0], [0], [1], [0, 0, 1, 1], [], []>} : vector<12x16xbf16>, vector<16x12xbf16>, vector<12x12xf32> -> vector<12x12xf32>
    %cst_278 = arith.constant 2.500000e-01 : f32
    %929 = vector.broadcast %cst_278 : f32 to vector<12x12xf32>
    %930 = arith.mulf %928, %929 : vector<12x12xf32>
    %cst_279 = arith.constant dense<0xFF800000> : vector<12xf32>
    %931 = vector.multi_reduction <maximumf>, %930, %cst_279 [1] : vector<12x12xf32> to vector<12xf32>
    %932 = vector.shape_cast %931 : vector<12xf32> to vector<12x1xf32>
    %933 = vector.broadcast %932 : vector<12x1xf32> to vector<12x12xf32>
    %934 = arith.subf %930, %933 : vector<12x12xf32>
    %935 = math.exp %934 : vector<12x12xf32>
    %cst_280 = arith.constant dense<0.000000e+00> : vector<12xf32>
    %936 = vector.multi_reduction <add>, %935, %cst_280 [1] : vector<12x12xf32> to vector<12xf32>
    %937 = vector.shape_cast %936 : vector<12xf32> to vector<12x1xf32>
    %938 = tpu.reciprocal %937 {approx = true} : vector<12x1xf32> -> vector<12x1xf32>
    %939 = vector.broadcast %938 : vector<12x1xf32> to vector<12x12xf32>
    %940 = arith.mulf %935, %939 : vector<12x12xf32>
    %941 = arith.truncf %940 : vector<12x12xf32> to vector<12x12xbf16>
    %cst_281 = arith.constant dense<0.000000e+00> : vector<12x16xf32>
    %942 = tpu.matmul %941, %927, %cst_281 {dimension_numbers = #tpu.dot_dimension_numbers<[1], [0], [0], [1], [0, 0, 1, 1], [], []>} : vector<12x12xbf16>, vector<12x16xbf16>, vector<12x16xf32> -> vector<12x16xf32>
    %943 = vector.extract_strided_slice %874 {offsets = [0, 48], sizes = [12, 16], strides = [1, 1]} : vector<12x64xf32> to vector<12x16xf32>
    %944 = arith.truncf %943 : vector<12x16xf32> to vector<12x16xbf16>
    %945 = vector.extract_strided_slice %875 {offsets = [0, 48], sizes = [12, 16], strides = [1, 1]} : vector<12x64xf32> to vector<12x16xf32>
    %946 = tpu.transpose %945, [1, 0] : vector<12x16xf32> -> vector<16x12xf32>
    %947 = arith.truncf %946 : vector<16x12xf32> to vector<16x12xbf16>
    %948 = vector.extract_strided_slice %876 {offsets = [0, 48], sizes = [12, 16], strides = [1, 1]} : vector<12x64xf32> to vector<12x16xf32>
    %949 = arith.truncf %948 : vector<12x16xf32> to vector<12x16xbf16>
    %cst_282 = arith.constant dense<0.000000e+00> : vector<12x12xf32>
    %950 = tpu.matmul %944, %947, %cst_282 {dimension_numbers = #tpu.dot_dimension_numbers<[1], [0], [0], [1], [0, 0, 1, 1], [], []>} : vector<12x16xbf16>, vector<16x12xbf16>, vector<12x12xf32> -> vector<12x12xf32>
    %cst_283 = arith.constant 2.500000e-01 : f32
    %951 = vector.broadcast %cst_283 : f32 to vector<12x12xf32>
    %952 = arith.mulf %950, %951 : vector<12x12xf32>
    %cst_284 = arith.constant dense<0xFF800000> : vector<12xf32>
    %953 = vector.multi_reduction <maximumf>, %952, %cst_284 [1] : vector<12x12xf32> to vector<12xf32>
    %954 = vector.shape_cast %953 : vector<12xf32> to vector<12x1xf32>
    %955 = vector.broadcast %954 : vector<12x1xf32> to vector<12x12xf32>
    %956 = arith.subf %952, %955 : vector<12x12xf32>
    %957 = math.exp %956 : vector<12x12xf32>
    %cst_285 = arith.constant dense<0.000000e+00> : vector<12xf32>
    %958 = vector.multi_reduction <add>, %957, %cst_285 [1] : vector<12x12xf32> to vector<12xf32>
    %959 = vector.shape_cast %958 : vector<12xf32> to vector<12x1xf32>
    %960 = tpu.reciprocal %959 {approx = true} : vector<12x1xf32> -> vector<12x1xf32>
    %961 = vector.broadcast %960 : vector<12x1xf32> to vector<12x12xf32>
    %962 = arith.mulf %957, %961 : vector<12x12xf32>
    %963 = arith.truncf %962 : vector<12x12xf32> to vector<12x12xbf16>
    %cst_286 = arith.constant dense<0.000000e+00> : vector<12x16xf32>
    %964 = tpu.matmul %963, %949, %cst_286 {dimension_numbers = #tpu.dot_dimension_numbers<[1], [0], [0], [1], [0, 0, 1, 1], [], []>} : vector<12x12xbf16>, vector<12x16xbf16>, vector<12x16xf32> -> vector<12x16xf32>
    %965 = tpu.concatenate %898, %920, %942, %964 in 1 : vector<12x16xf32>, vector<12x16xf32>, vector<12x16xf32>, vector<12x16xf32> -> vector<12x64xf32>
    %966 = vector.extract_strided_slice %965 {offsets = [0, 0], sizes = [4, 64], strides = [1, 1]} : vector<12x64xf32> to vector<4x64xf32>
    %967 = vector.extract_strided_slice %965 {offsets = [4, 0], sizes = [8, 64], strides = [1, 1]} : vector<12x64xf32> to vector<8x64xf32>
    %968 = arith.truncf %967 : vector<8x64xf32> to vector<8x64xbf16>
    %c0_287 = arith.constant 0 : index
    %c0_288 = arith.constant 0 : index
    %969 = vector.load %arg17[%c0_287, %c0_288] : memref<64x64xbf16, #tpu.memory_space<vmem>>, vector<64x64xbf16>
    %cst_289 = arith.constant dense<0.000000e+00> : vector<8x64xf32>
    %970 = tpu.matmul %968, %969, %cst_289 {dimension_numbers = #tpu.dot_dimension_numbers<[1], [0], [0], [1], [0, 0, 1, 1], [], []>} : vector<8x64xbf16>, vector<64x64xbf16>, vector<8x64xf32> -> vector<8x64xf32>
    %c0_290 = arith.constant 0 : index
    %c0_291 = arith.constant 0 : index
    %971 = vector.load %arg18[%c0_290, %c0_291] : memref<1x64xf32, #tpu.memory_space<vmem>>, vector<1x64xf32>
    %972 = vector.broadcast %971 : vector<1x64xf32> to vector<8x64xf32>
    %973 = arith.addf %970, %972 : vector<8x64xf32>
    %974 = vector.broadcast %582 : vector<1x64xf32> to vector<8x64xf32>
    %975 = arith.mulf %974, %973 : vector<8x64xf32>
    %976 = arith.addf %556, %975 : vector<8x64xf32>
    %cst_292 = arith.constant 1.000000e+00 : f32
    %977 = vector.broadcast %cst_292 : f32 to vector<1x64xf32>
    %978 = arith.addf %977, %584 : vector<1x64xf32>
    %cst_293 = arith.constant dense<0.000000e+00> : vector<8xf32>
    %979 = vector.multi_reduction <add>, %976, %cst_293 [1] : vector<8x64xf32> to vector<8xf32>
    %980 = vector.shape_cast %979 : vector<8xf32> to vector<8x1xf32>
    %cst_294 = arith.constant 6.400000e+01 : f32
    %981 = vector.broadcast %cst_294 : f32 to vector<8x1xf32>
    %982 = arith.divf %980, %981 : vector<8x1xf32>
    %983 = vector.broadcast %982 : vector<8x1xf32> to vector<8x64xf32>
    %984 = arith.subf %976, %983 : vector<8x64xf32>
    %985 = vector.broadcast %982 : vector<8x1xf32> to vector<8x64xf32>
    %986 = arith.subf %976, %985 : vector<8x64xf32>
    %987 = arith.mulf %984, %986 : vector<8x64xf32>
    %cst_295 = arith.constant dense<0.000000e+00> : vector<8xf32>
    %988 = vector.multi_reduction <add>, %987, %cst_295 [1] : vector<8x64xf32> to vector<8xf32>
    %989 = vector.shape_cast %988 : vector<8xf32> to vector<8x1xf32>
    %cst_296 = arith.constant 6.400000e+01 : f32
    %990 = vector.broadcast %cst_296 : f32 to vector<8x1xf32>
    %991 = arith.divf %989, %990 : vector<8x1xf32>
    %992 = vector.broadcast %982 : vector<8x1xf32> to vector<8x64xf32>
    %993 = arith.subf %976, %992 : vector<8x64xf32>
    %cst_297 = arith.constant 9.99999997E-7 : f32
    %994 = vector.broadcast %cst_297 : f32 to vector<8x1xf32>
    %995 = arith.addf %991, %994 : vector<8x1xf32>
    %996 = math.rsqrt %995 : vector<8x1xf32>
    %997 = vector.broadcast %996 : vector<8x1xf32> to vector<8x64xf32>
    %998 = arith.mulf %993, %997 : vector<8x64xf32>
    %999 = vector.broadcast %978 : vector<1x64xf32> to vector<8x64xf32>
    %1000 = arith.mulf %999, %998 : vector<8x64xf32>
    %1001 = vector.broadcast %583 : vector<1x64xf32> to vector<8x64xf32>
    %1002 = arith.addf %1000, %1001 : vector<8x64xf32>
    %1003 = arith.truncf %1002 : vector<8x64xf32> to vector<8x64xbf16>
    %c0_298 = arith.constant 0 : index
    %c0_299 = arith.constant 0 : index
    %1004 = vector.load %arg21[%c0_298, %c0_299] : memref<64x256xbf16, #tpu.memory_space<vmem>>, vector<64x256xbf16>
    %cst_300 = arith.constant dense<0.000000e+00> : vector<8x256xf32>
    %1005 = tpu.matmul %1003, %1004, %cst_300 {dimension_numbers = #tpu.dot_dimension_numbers<[1], [0], [0], [1], [0, 0, 1, 1], [], []>} : vector<8x64xbf16>, vector<64x256xbf16>, vector<8x256xf32> -> vector<8x256xf32>
    %c0_301 = arith.constant 0 : index
    %c0_302 = arith.constant 0 : index
    %1006 = vector.load %arg22[%c0_301, %c0_302] : memref<1x256xf32, #tpu.memory_space<vmem>>, vector<1x256xf32>
    %1007 = vector.broadcast %1006 : vector<1x256xf32> to vector<8x256xf32>
    %1008 = arith.addf %1005, %1007 : vector<8x256xf32>
    %cst_303 = arith.constant 5.000000e-01 : f32
    %1009 = vector.broadcast %cst_303 : f32 to vector<8x256xf32>
    %1010 = arith.mulf %1009, %1008 : vector<8x256xf32>
    %cst_304 = arith.constant 4.471500e-02 : f32
    %1011 = vector.broadcast %cst_304 : f32 to vector<8x256xf32>
    %1012 = arith.mulf %1011, %1008 : vector<8x256xf32>
    %1013 = arith.mulf %1012, %1008 : vector<8x256xf32>
    %1014 = arith.mulf %1013, %1008 : vector<8x256xf32>
    %1015 = arith.addf %1008, %1014 : vector<8x256xf32>
    %cst_305 = arith.constant 0.797884583 : f32
    %1016 = vector.broadcast %cst_305 : f32 to vector<8x256xf32>
    %1017 = arith.mulf %1016, %1015 : vector<8x256xf32>
    %1018 = math.tanh %1017 : vector<8x256xf32>
    %cst_306 = arith.constant 1.000000e+00 : f32
    %1019 = vector.broadcast %cst_306 : f32 to vector<8x256xf32>
    %1020 = arith.addf %1019, %1018 : vector<8x256xf32>
    %1021 = arith.mulf %1010, %1020 : vector<8x256xf32>
    %1022 = arith.truncf %1021 : vector<8x256xf32> to vector<8x256xbf16>
    %c0_307 = arith.constant 0 : index
    %c0_308 = arith.constant 0 : index
    %1023 = vector.load %arg23[%c0_307, %c0_308] : memref<256x64xbf16, #tpu.memory_space<vmem>>, vector<256x64xbf16>
    %cst_309 = arith.constant dense<0.000000e+00> : vector<8x64xf32>
    %1024 = tpu.matmul %1022, %1023, %cst_309 {dimension_numbers = #tpu.dot_dimension_numbers<[1], [0], [0], [1], [0, 0, 1, 1], [], []>} : vector<8x256xbf16>, vector<256x64xbf16>, vector<8x64xf32> -> vector<8x64xf32>
    %c0_310 = arith.constant 0 : index
    %c0_311 = arith.constant 0 : index
    %1025 = vector.load %arg24[%c0_310, %c0_311] : memref<1x64xf32, #tpu.memory_space<vmem>>, vector<1x64xf32>
    %1026 = vector.broadcast %1025 : vector<1x64xf32> to vector<8x64xf32>
    %1027 = arith.addf %1024, %1026 : vector<8x64xf32>
    %1028 = vector.broadcast %585 : vector<1x64xf32> to vector<8x64xf32>
    %1029 = arith.mulf %1028, %1027 : vector<8x64xf32>
    %1030 = arith.addf %976, %1029 : vector<8x64xf32>
    %c1_312 = arith.constant 1 : index
    %c0_313 = arith.constant 0 : index
    %c0_314 = arith.constant 0 : index
    %1031 = vector.load %arg29[%c1_312, %c0_313, %c0_314] : memref<2x8x64xf32, #tpu.memory_space<vmem>>, vector<1x8x64xf32>
    %1032 = vector.shape_cast %1031 : vector<1x8x64xf32> to vector<8x64xf32>
    %1033 = vector.shape_cast %1030 : vector<8x64xf32> to vector<1x8x64xf32>
    tpu.vector_store %arg29[%c1_312, %c0_313, %c0_314], %1033 {strides = array<i32>} : memref<2x8x64xf32, #tpu.memory_space<vmem>>, vector<1x8x64xf32>,
    %1034 = arith.truncf %966 : vector<4x64xf32> to vector<4x64xbf16>
    %c0_315 = arith.constant 0 : index
    %c0_316 = arith.constant 0 : index
    %1035 = vector.load %arg19[%c0_315, %c0_316] : memref<64x64xbf16, #tpu.memory_space<vmem>>, vector<64x64xbf16>
    %cst_317 = arith.constant dense<0.000000e+00> : vector<4x64xf32>
    %1036 = tpu.matmul %1034, %1035, %cst_317 {dimension_numbers = #tpu.dot_dimension_numbers<[1], [0], [0], [1], [0, 0, 1, 1], [], []>} : vector<4x64xbf16>, vector<64x64xbf16>, vector<4x64xf32> -> vector<4x64xf32>
    %c0_318 = arith.constant 0 : index
    %c0_319 = arith.constant 0 : index
    %1037 = vector.load %arg20[%c0_318, %c0_319] : memref<1x64xf32, #tpu.memory_space<vmem>>, vector<1x64xf32>
    %1038 = vector.broadcast %1037 : vector<1x64xf32> to vector<4x64xf32>
    %1039 = arith.addf %1036, %1038 : vector<4x64xf32>
    %1040 = vector.broadcast %588 : vector<1x64xf32> to vector<4x64xf32>
    %1041 = arith.mulf %1040, %1039 : vector<4x64xf32>
    %1042 = arith.addf %560, %1041 : vector<4x64xf32>
    %cst_320 = arith.constant 1.000000e+00 : f32
    %1043 = vector.broadcast %cst_320 : f32 to vector<1x64xf32>
    %1044 = arith.addf %1043, %590 : vector<1x64xf32>
    %cst_321 = arith.constant dense<0.000000e+00> : vector<4xf32>
    %1045 = vector.multi_reduction <add>, %1042, %cst_321 [1] : vector<4x64xf32> to vector<4xf32>
    %1046 = vector.shape_cast %1045 : vector<4xf32> to vector<4x1xf32>
    %cst_322 = arith.constant 6.400000e+01 : f32
    %1047 = vector.broadcast %cst_322 : f32 to vector<4x1xf32>
    %1048 = arith.divf %1046, %1047 : vector<4x1xf32>
    %1049 = vector.broadcast %1048 : vector<4x1xf32> to vector<4x64xf32>
    %1050 = arith.subf %1042, %1049 : vector<4x64xf32>
    %1051 = vector.broadcast %1048 : vector<4x1xf32> to vector<4x64xf32>
    %1052 = arith.subf %1042, %1051 : vector<4x64xf32>
    %1053 = arith.mulf %1050, %1052 : vector<4x64xf32>
    %cst_323 = arith.constant dense<0.000000e+00> : vector<4xf32>
    %1054 = vector.multi_reduction <add>, %1053, %cst_323 [1] : vector<4x64xf32> to vector<4xf32>
    %1055 = vector.shape_cast %1054 : vector<4xf32> to vector<4x1xf32>
    %cst_324 = arith.constant 6.400000e+01 : f32
    %1056 = vector.broadcast %cst_324 : f32 to vector<4x1xf32>
    %1057 = arith.divf %1055, %1056 : vector<4x1xf32>
    %1058 = vector.broadcast %1048 : vector<4x1xf32> to vector<4x64xf32>
    %1059 = arith.subf %1042, %1058 : vector<4x64xf32>
    %cst_325 = arith.constant 9.99999997E-7 : f32
    %1060 = vector.broadcast %cst_325 : f32 to vector<4x1xf32>
    %1061 = arith.addf %1057, %1060 : vector<4x1xf32>
    %1062 = math.rsqrt %1061 : vector<4x1xf32>
    %1063 = vector.broadcast %1062 : vector<4x1xf32> to vector<4x64xf32>
    %1064 = arith.mulf %1059, %1063 : vector<4x64xf32>
    %1065 = vector.broadcast %1044 : vector<1x64xf32> to vector<4x64xf32>
    %1066 = arith.mulf %1065, %1064 : vector<4x64xf32>
    %1067 = vector.broadcast %589 : vector<1x64xf32> to vector<4x64xf32>
    %1068 = arith.addf %1066, %1067 : vector<4x64xf32>
    %1069 = arith.truncf %1068 : vector<4x64xf32> to vector<4x64xbf16>
    %c0_326 = arith.constant 0 : index
    %c0_327 = arith.constant 0 : index
    %1070 = vector.load %arg25[%c0_326, %c0_327] : memref<64x256xbf16, #tpu.memory_space<vmem>>, vector<64x256xbf16>
    %cst_328 = arith.constant dense<0.000000e+00> : vector<4x256xf32>
    %1071 = tpu.matmul %1069, %1070, %cst_328 {dimension_numbers = #tpu.dot_dimension_numbers<[1], [0], [0], [1], [0, 0, 1, 1], [], []>} : vector<4x64xbf16>, vector<64x256xbf16>, vector<4x256xf32> -> vector<4x256xf32>
    %c0_329 = arith.constant 0 : index
    %c0_330 = arith.constant 0 : index
    %1072 = vector.load %arg26[%c0_329, %c0_330] : memref<1x256xf32, #tpu.memory_space<vmem>>, vector<1x256xf32>
    %1073 = vector.broadcast %1072 : vector<1x256xf32> to vector<4x256xf32>
    %1074 = arith.addf %1071, %1073 : vector<4x256xf32>
    %cst_331 = arith.constant 5.000000e-01 : f32
    %1075 = vector.broadcast %cst_331 : f32 to vector<4x256xf32>
    %1076 = arith.mulf %1075, %1074 : vector<4x256xf32>
    %cst_332 = arith.constant 4.471500e-02 : f32
    %1077 = vector.broadcast %cst_332 : f32 to vector<4x256xf32>
    %1078 = arith.mulf %1077, %1074 : vector<4x256xf32>
    %1079 = arith.mulf %1078, %1074 : vector<4x256xf32>
    %1080 = arith.mulf %1079, %1074 : vector<4x256xf32>
    %1081 = arith.addf %1074, %1080 : vector<4x256xf32>
    %cst_333 = arith.constant 0.797884583 : f32
    %1082 = vector.broadcast %cst_333 : f32 to vector<4x256xf32>
    %1083 = arith.mulf %1082, %1081 : vector<4x256xf32>
    %1084 = math.tanh %1083 : vector<4x256xf32>
    %cst_334 = arith.constant 1.000000e+00 : f32
    %1085 = vector.broadcast %cst_334 : f32 to vector<4x256xf32>
    %1086 = arith.addf %1085, %1084 : vector<4x256xf32>
    %1087 = arith.mulf %1076, %1086 : vector<4x256xf32>
    %1088 = arith.truncf %1087 : vector<4x256xf32> to vector<4x256xbf16>
    %c0_335 = arith.constant 0 : index
    %c0_336 = arith.constant 0 : index
    %1089 = vector.load %arg27[%c0_335, %c0_336] : memref<256x64xbf16, #tpu.memory_space<vmem>>, vector<256x64xbf16>
    %cst_337 = arith.constant dense<0.000000e+00> : vector<4x64xf32>
    %1090 = tpu.matmul %1088, %1089, %cst_337 {dimension_numbers = #tpu.dot_dimension_numbers<[1], [0], [0], [1], [0, 0, 1, 1], [], []>} : vector<4x256xbf16>, vector<256x64xbf16>, vector<4x64xf32> -> vector<4x64xf32>
    %c0_338 = arith.constant 0 : index
    %c0_339 = arith.constant 0 : index
    %1091 = vector.load %arg28[%c0_338, %c0_339] : memref<1x64xf32, #tpu.memory_space<vmem>>, vector<1x64xf32>
    %1092 = vector.broadcast %1091 : vector<1x64xf32> to vector<4x64xf32>
    %1093 = arith.addf %1090, %1092 : vector<4x64xf32>
    %1094 = vector.broadcast %591 : vector<1x64xf32> to vector<4x64xf32>
    %1095 = arith.mulf %1094, %1093 : vector<4x64xf32>
    %1096 = arith.addf %1042, %1095 : vector<4x64xf32>
    %c1_340 = arith.constant 1 : index
    %c0_341 = arith.constant 0 : index
    %c0_342 = arith.constant 0 : index
    %1097 = vector.load %arg30[%c1_340, %c0_341, %c0_342] : memref<2x4x64xf32, #tpu.memory_space<vmem>>, vector<1x4x64xf32>
    %1098 = vector.shape_cast %1097 : vector<1x4x64xf32> to vector<4x64xf32>
    %1099 = vector.shape_cast %1096 : vector<4x64xf32> to vector<1x4x64xf32>
    tpu.vector_store %arg30[%c1_340, %c0_341, %c0_342], %1099 {strides = array<i32>} : memref<2x4x64xf32, #tpu.memory_space<vmem>>, vector<1x4x64xf32>,
    return
  }
}

</mosaic_0001>

<llo_original>
// kernel: double_stream_block.1
$region0: #{double_stream_block.1}
  #allocation0 [shape = 'u32[]', space=smem, size = 0x4, offset = 0x4, fixed_abs, tag = 'smem constant byte address 0x4 - core index']
  #allocation1 [shape = 'u32[72,128]{1,0:T(1,128)}', space=vmem, size = 0x9000, scoped, tag = 'internal scratch']
  %s0 = inlined_call_operand.smem [shape: u32[31], index: -1, kind: input, shape index: {}]
  %s1 = sld [smem:[%s0]]
  %s2 = scalar_lea.smem %s0, 1
  %s3 = sld [smem:[%s2]]
  %s4 = scalar_lea.smem %s0, 2
  %s5 = sld [smem:[%s4]]
  %s6 = scalar_lea.smem %s0, 3
  %s7 = sld [smem:[%s6]]
  %s8 = scalar_lea.smem %s0, 4
  %s9 = sld [smem:[%s8]]
  %s10 = scalar_lea.smem %s0, 5
  %s11 = sld [smem:[%s10]]
  %s12 = scalar_lea.smem %s0, 6
  %s13 = sld [smem:[%s12]]
  %s14 = scalar_lea.smem %s0, 7
  %s15 = sld [smem:[%s14]]
  %s16 = scalar_lea.smem %s0, 8
  %s17 = sld [smem:[%s16]]
  %s18 = scalar_lea.smem %s0, 9
  %s19 = sld [smem:[%s18]]
  %s20 = scalar_lea.smem %s0, 10
  %s21 = sld [smem:[%s20]]
  %s22 = scalar_lea.smem %s0, 11
  %s23 = sld [smem:[%s22]]
  %s24 = scalar_lea.smem %s0, 12
  %s25 = sld [smem:[%s24]]
  %s26 = scalar_lea.smem %s0, 13
  %s27 = sld [smem:[%s26]]
  %s28 = scalar_lea.smem %s0, 14
  %s29 = sld [smem:[%s28]]
  %s30 = scalar_lea.smem %s0, 15
  %s31 = sld [smem:[%s30]]
  %s32 = scalar_lea.smem %s0, 16
  %s33 = sld [smem:[%s32]]
  %s34 = scalar_lea.smem %s0, 17
  %s35 = sld [smem:[%s34]]
  %s36 = scalar_lea.smem %s0, 18
  %s37 = sld [smem:[%s36]]
  %s38 = scalar_lea.smem %s0, 19
  %s39 = sld [smem:[%s38]]
  %s40 = scalar_lea.smem %s0, 20
  %s41 = sld [smem:[%s40]]
  %s42 = scalar_lea.smem %s0, 21
  %s43 = sld [smem:[%s42]]
  %s44 = scalar_lea.smem %s0, 22
  %s45 = sld [smem:[%s44]]
  %s46 = scalar_lea.smem %s0, 23
  %s47 = sld [smem:[%s46]]
  %s48 = scalar_lea.smem %s0, 24
  %s49 = sld [smem:[%s48]]
  %s50 = scalar_lea.smem %s0, 25
  %s51 = sld [smem:[%s50]]
  %s52 = scalar_lea.smem %s0, 26
  %s53 = sld [smem:[%s52]]
  %s54 = scalar_lea.smem %s0, 27
  %s55 = sld [smem:[%s54]]
  %s56 = scalar_lea.smem %s0, 28
  %s57 = sld [smem:[%s56]]
  %s58 = scalar_lea.smem %s0, 29
  %s59 = sld [smem:[%s58]]
  %s60 = scalar_lea.smem %s0, 30
  %s61 = sld [smem:[%s60]]
  %62 = xla_tuple %s59, %s61
  %s63 = sld [smem:[#allocation0]]
  $region134: #{double_stream_block.1} parent=0
    _
  %s65 = ssub.s32 1, %s63
  %s66 = scalar_select 0, %s65, %s63
  $region1: #{double_stream_block.1} parent=0
    #allocation2 [shape = 'u8[8192]{0}', space=vmem, size = 0x2000, scoped, tag = 'output window, operand 0, single buffered']
    #allocation3 [shape = 's32[1]{0}', space=sflag, size = 0x4, scoped, tag = 'scoped memory for double_stream_block.1']
    #allocation4 [shape = 'u8[4096]{0}', space=vmem, size = 0x1000, scoped, tag = 'output window, operand 1, single buffered']
    #allocation5 [shape = 's32[1]{0}', space=sflag, size = 0x4, scoped, tag = 'scoped memory for double_stream_block.1']
    %67 = vsyncpa [#allocation3], 0
    %68 = vsyncpa [#allocation5], 0
    // Predicated region
    $region2: #{double_stream_block.1} parent=1 // pred_check
      _
    $region3: #{double_stream_block.1} parent=1 // pred_check_branch
      %70 = sbr.rel (0) target = $region5
    $region4: #{double_stream_block.1} parent=1 // pred_region
      _
    $region5: #{double_stream_block.1} parent=1 // pred_fallthru
      _
    // Predicated region
    $region6: #{double_stream_block.1} parent=1 // pred_check
      _
    $region7: #{double_stream_block.1} parent=1 // pred_check_branch
      %72 = sbr.rel (0) target = $region9
    $region8: #{double_stream_block.1} parent=1 // pred_region
      _
    $region9: #{double_stream_block.1} parent=1 // pred_fallthru
      _
    // Predicated region
    $region10: #{double_stream_block.1} parent=1 // pred_check
      _
    $region11: #{double_stream_block.1} parent=1 // pred_check_branch
      %74 = sbr.rel (0) target = $region13
    $region12: #{double_stream_block.1} parent=1 // pred_region
      _
    $region13: #{double_stream_block.1} parent=1 // pred_fallthru
      _
    // Predicated region
    $region14: #{double_stream_block.1} parent=1 // pred_check
      _
    $region15: #{double_stream_block.1} parent=1 // pred_check_branch
      %76 = sbr.rel (0) target = $region17
    $region16: #{double_stream_block.1} parent=1 // pred_region
      _
    $region17: #{double_stream_block.1} parent=1 // pred_fallthru
      _
    // Predicated region
    $region18: #{double_stream_block.1} parent=1 // pred_check
      _
    $region19: #{double_stream_block.1} parent=1 // pred_check_branch
      %78 = sbr.rel (0) target = $region21
    $region20: #{double_stream_block.1} parent=1 // pred_region
      _
    $region21: #{double_stream_block.1} parent=1 // pred_fallthru
      _
    // Predicated region
    $region22: #{double_stream_block.1} parent=1 // pred_check
      _
    $region23: #{double_stream_block.1} parent=1 // pred_check_branch
      %80 = sbr.rel (0) target = $region25
    $region24: #{double_stream_block.1} parent=1 // pred_region
      _
    $region25: #{double_stream_block.1} parent=1 // pred_fallthru
      _
    // Predicated region
    $region26: #{double_stream_block.1} parent=1 // pred_check
      _
    $region27: #{double_stream_block.1} parent=1 // pred_check_branch
      %82 = sbr.rel (0) target = $region29
    $region28: #{double_stream_block.1} parent=1 // pred_region
      _
    $region29: #{double_stream_block.1} parent=1 // pred_fallthru
      _
    // Predicated region
    $region30: #{double_stream_block.1} parent=1 // pred_check
      _
    $region31: #{double_stream_block.1} parent=1 // pred_check_branch
      %84 = sbr.rel (0) target = $region33
    $region32: #{double_stream_block.1} parent=1 // pred_region
      _
    $region33: #{double_stream_block.1} parent=1 // pred_fallthru
      _
    // Predicated region
    $region34: #{double_stream_block.1} parent=1 // pred_check
      _
    $region35: #{double_stream_block.1} parent=1 // pred_check_branch
      %86 = sbr.rel (0) target = $region37
    $region36: #{double_stream_block.1} parent=1 // pred_region
      _
    $region37: #{double_stream_block.1} parent=1 // pred_fallthru
      _
    // Predicated region
    $region38: #{double_stream_block.1} parent=1 // pred_check
      _
    $region39: #{double_stream_block.1} parent=1 // pred_check_branch
      %88 = sbr.rel (0) target = $region41
    $region40: #{double_stream_block.1} parent=1 // pred_region
      _
    $region41: #{double_stream_block.1} parent=1 // pred_fallthru
      _
    // Predicated region
    $region42: #{double_stream_block.1} parent=1 // pred_check
      _
    $region43: #{double_stream_block.1} parent=1 // pred_check_branch
      %90 = sbr.rel (0) target = $region45
    $region44: #{double_stream_block.1} parent=1 // pred_region
      _
    $region45: #{double_stream_block.1} parent=1 // pred_fallthru
      _
    // Predicated region
    $region46: #{double_stream_block.1} parent=1 // pred_check
      _
    $region47: #{double_stream_block.1} parent=1 // pred_check_branch
      %92 = sbr.rel (0) target = $region49
    $region48: #{double_stream_block.1} parent=1 // pred_region
      _
    $region49: #{double_stream_block.1} parent=1 // pred_fallthru
      _
    // Predicated region
    $region50: #{double_stream_block.1} parent=1 // pred_check
      _
    $region51: #{double_stream_block.1} parent=1 // pred_check_branch
      %94 = sbr.rel (0) target = $region53
    $region52: #{double_stream_block.1} parent=1 // pred_region
      _
    $region53: #{double_stream_block.1} parent=1 // pred_fallthru
      _
    // Predicated region
    $region54: #{double_stream_block.1} parent=1 // pred_check
      _
    $region55: #{double_stream_block.1} parent=1 // pred_check_branch
      %96 = sbr.rel (0) target = $region57
    $region56: #{double_stream_block.1} parent=1 // pred_region
      _
    $region57: #{double_stream_block.1} parent=1 // pred_fallthru
      _
    // Predicated region
    $region58: #{double_stream_block.1} parent=1 // pred_check
      _
    $region59: #{double_stream_block.1} parent=1 // pred_check_branch
      %98 = sbr.rel (0) target = $region61
    $region60: #{double_stream_block.1} parent=1 // pred_region
      _
    $region61: #{double_stream_block.1} parent=1 // pred_fallthru
      _
    // Predicated region
    $region62: #{double_stream_block.1} parent=1 // pred_check
      _
    $region63: #{double_stream_block.1} parent=1 // pred_check_branch
      %100 = sbr.rel (0) target = $region65
    $region64: #{double_stream_block.1} parent=1 // pred_region
      _
    $region65: #{double_stream_block.1} parent=1 // pred_fallthru
      _
    // Predicated region
    $region66: #{double_stream_block.1} parent=1 // pred_check
      _
    $region67: #{double_stream_block.1} parent=1 // pred_check_branch
      %102 = sbr.rel (0) target = $region69
    $region68: #{double_stream_block.1} parent=1 // pred_region
      _
    $region69: #{double_stream_block.1} parent=1 // pred_fallthru
      _
    // Predicated region
    $region70: #{double_stream_block.1} parent=1 // pred_check
      _
    $region71: #{double_stream_block.1} parent=1 // pred_check_branch
      %104 = sbr.rel (0) target = $region73
    $region72: #{double_stream_block.1} parent=1 // pred_region
      _
    $region73: #{double_stream_block.1} parent=1 // pred_fallthru
      _
    // Predicated region
    $region74: #{double_stream_block.1} parent=1 // pred_check
      _
    $region75: #{double_stream_block.1} parent=1 // pred_check_branch
      %106 = sbr.rel (0) target = $region77
    $region76: #{double_stream_block.1} parent=1 // pred_region
      _
    $region77: #{double_stream_block.1} parent=1 // pred_fallthru
      _
    // Predicated region
    $region78: #{double_stream_block.1} parent=1 // pred_check
      _
    $region79: #{double_stream_block.1} parent=1 // pred_check_branch
      %108 = sbr.rel (0) target = $region81
    $region80: #{double_stream_block.1} parent=1 // pred_region
      _
    $region81: #{double_stream_block.1} parent=1 // pred_fallthru
      _
    // Predicated region
    $region82: #{double_stream_block.1} parent=1 // pred_check
      _
    $region83: #{double_stream_block.1} parent=1 // pred_check_branch
      %110 = sbr.rel (0) target = $region85
    $region84: #{double_stream_block.1} parent=1 // pred_region
      _
    $region85: #{double_stream_block.1} parent=1 // pred_fallthru
      _
    // Predicated region
    $region86: #{double_stream_block.1} parent=1 // pred_check
      _
    $region87: #{double_stream_block.1} parent=1 // pred_check_branch
      %112 = sbr.rel (0) target = $region89
    $region88: #{double_stream_block.1} parent=1 // pred_region
      _
    $region89: #{double_stream_block.1} parent=1 // pred_fallthru
      _
    // Predicated region
    $region90: #{double_stream_block.1} parent=1 // pred_check
      _
    $region91: #{double_stream_block.1} parent=1 // pred_check_branch
      %114 = sbr.rel (0) target = $region93
    $region92: #{double_stream_block.1} parent=1 // pred_region
      _
    $region93: #{double_stream_block.1} parent=1 // pred_fallthru
      _
    // Predicated region
    $region94: #{double_stream_block.1} parent=1 // pred_check
      _
    $region95: #{double_stream_block.1} parent=1 // pred_check_branch
      %116 = sbr.rel (0) target = $region97
    $region96: #{double_stream_block.1} parent=1 // pred_region
      _
    $region97: #{double_stream_block.1} parent=1 // pred_fallthru
      _
    // Predicated region
    $region98: #{double_stream_block.1} parent=1 // pred_check
      _
    $region99: #{double_stream_block.1} parent=1 // pred_check_branch
      %118 = sbr.rel (0) target = $region101
    $region100: #{double_stream_block.1} parent=1 // pred_region
      _
    $region101: #{double_stream_block.1} parent=1 // pred_fallthru
      _
    // Predicated region
    $region102: #{double_stream_block.1} parent=1 // pred_check
      _
    $region103: #{double_stream_block.1} parent=1 // pred_check_branch
      %120 = sbr.rel (0) target = $region105
    $region104: #{double_stream_block.1} parent=1 // pred_region
      _
    $region105: #{double_stream_block.1} parent=1 // pred_fallthru
      _
    // Predicated region
    $region106: #{double_stream_block.1} parent=1 // pred_check
      _
    $region107: #{double_stream_block.1} parent=1 // pred_check_branch
      %122 = sbr.rel (0) target = $region109
    $region108: #{double_stream_block.1} parent=1 // pred_region
      _
    $region109: #{double_stream_block.1} parent=1 // pred_fallthru
      _
    // Predicated region
    $region110: #{double_stream_block.1} parent=1 // pred_check
      _
    $region111: #{double_stream_block.1} parent=1 // pred_check_branch
      %124 = sbr.rel (0) target = $region113
    $region112: #{double_stream_block.1} parent=1 // pred_region
      _
    $region113: #{double_stream_block.1} parent=1 // pred_fallthru
      _
    // Predicated region
    $region114: #{double_stream_block.1} parent=1 // pred_check
      _
    $region115: #{double_stream_block.1} parent=1 // pred_check_branch
      %126 = sbr.rel (0) target = $region117
    $region116: #{double_stream_block.1} parent=1 // pred_region
      _
    $region117: #{double_stream_block.1} parent=1 // pred_fallthru
      _
    %v128 = vld [vmem:[%s7] sm:$0x1]
    %v129 = vld [vmem:[%s9] sm:$0x1]
    %v130 = vld [vmem:[%s27] sm:$0x1]
    %v131 = vld [vmem:[%s29] sm:$0x1]
    %v132 = vld [vmem:[%s31] sm:$0x1]
    %v133 = vld [vmem:[%s33] sm:$0x1]
    %v134 = vld [vmem:[%s1] sm:$0xff]
    %v136 = vperm.slane %v128, 0
    %v138 = vadd.f32 %v134, %v136
    %v139 = vld [vmem:[%s3] sm:$0xf]
    %v141 = vperm.slane %v129, 0
    %v143 = vadd.f32 %v139, %v141
    %v144 = vld [vmem:[%s5] sm:$0x1]
    %v145 = vsub.f32 0.0, %v144
    %v146 = vmul.f32 %v145, 1.442695
    %v147 = vpow.pop %v146
    %v148 = vadd.f32 %v147, 1.0
    %v149 = vrcp.pop %v148
    %v150 = vmul.f32 %v148, %v149
    %v151 = vsub.f32 1.0, %v150
    %v152 = vmul.f32 %v149, %v151
    %v153 = vadd.f32 %v149, %v152
    %vm154 = vweird.f32 %v148
    %vm155 = vweird.f32 %v149
    %vm156 = vmor %vm154, %vm155
    %v157 = vsel %vm156, %v149, %v153
    %v158 = vand.u32 2147483647, %v148
    %vm159 = vcmp.eq.f32.partialorder %v158, 8.507059e+37
    %v160 = vand.u32 %v148, 2147483648
    %v161 = vor.u32 1.1754944e-38, %v160
    %v162 = vsel %vm159, %v161, %v157
    %v163 = vmul.f32 1.0, %v162
    %v164 = vmul.f32 %v144, %v163
    %v165 = vpack.c.bf16 %v164, %v164
    %v166 = vld [vmem:[%s11] sm:$0xff]
    %v167 = vld [vmem:[%s11 + $0x8] sm:$0xf]
    %v168 = vld [vmem:[%s11 + $0xc] sm:$0xff]
    %v169 = vld [vmem:[%s11 + $0x14] sm:$0xf]
    %v170 = vld [vmem:[%s11 + $0x18] sm:$0xff]
    %v171 = vld [vmem:[%s11 + $0x20] sm:$0xf]
    %v172 = vld [vmem:[%s11 + $0x24] sm:$0xff]
    %v173 = vld [vmem:[%s11 + $0x2c] sm:$0xf]
    %v174 = vld [vmem:[%s11 + $0x30] sm:$0xff]
    %v175 = vld [vmem:[%s11 + $0x38] sm:$0xf]
    %v176 = vld [vmem:[%s11 + $0x3c] sm:$0xff]
    %v177 = vld [vmem:[%s11 + $0x44] sm:$0xf]
    %v178 = vld [vmem:[%s11 + $0x48] sm:$0xff]
    %v179 = vld [vmem:[%s11 + $0x50] sm:$0xf]
    %v180 = vld [vmem:[%s11 + $0x54] sm:$0xff]
    %v181 = vld [vmem:[%s11 + $0x5c] sm:$0xf]
    %v182 = vld [vmem:[%s13] sm:$0x7]
    %v199 = vunpack.c.l.b16 %v166
    %v200 = vunpack.c.h.b16 %v166
    %v201 = vunpack.c.l.b16 %v167
    %v202 = vunpack.c.l.b16 %v168
    %v203 = vunpack.c.h.b16 %v168
    %v204 = vunpack.c.l.b16 %v169
    %v205 = vunpack.c.l.b16 %v170
    %v206 = vunpack.c.h.b16 %v170
    %v207 = vunpack.c.l.b16 %v171
    %v208 = vunpack.c.l.b16 %v172
    %v209 = vunpack.c.h.b16 %v172
    %v210 = vunpack.c.l.b16 %v173
    %v211 = vunpack.c.l.b16 %v174
    %v212 = vunpack.c.h.b16 %v174
    %v213 = vunpack.c.l.b16 %v175
    %v214 = vunpack.c.l.b16 %v176
    %v215 = vunpack.c.h.b16 %v176
    %v216 = vunpack.c.l.b16 %v177
    %v217 = vunpack.c.l.b16 %v178
    %v218 = vunpack.c.h.b16 %v178
    %v219 = vunpack.c.l.b16 %v179
    %v220 = vunpack.c.l.b16 %v180
    %v221 = vunpack.c.h.b16 %v180
    %v222 = vunpack.c.l.b16 %v181
    %v223 = vpack.c.b16 %v202, %v199
    %v224 = vpack.c.b16 %v203, %v200
    %v225 = vpack.c.b16 %v204, %v201
    %v226 = vpack.c.b16 %v208, %v205
    %v227 = vpack.c.b16 %v209, %v206
    %v228 = vpack.c.b16 %v210, %v207
    %v229 = vpack.c.b16 %v214, %v211
    %v230 = vpack.c.b16 %v215, %v212
    %v231 = vpack.c.b16 %v216, %v213
    %v232 = vpack.c.b16 %v220, %v217
    %v233 = vpack.c.b16 %v221, %v218
    %v234 = vpack.c.b16 %v222, %v219
    %v248 = vperm.slane %v182, 0
    %v249 = vperm.slane %v182, 1
    %v250 = vperm.slane %v182, 2
    %vm254 = vcmask 523264
    %v256 = vsel %vm254, %v165, 0
    %258 = vmatpush.bf16.msra.mxu0 0
    %259 = vmatpush.bf16.msra.mxu0 0
    %260 = vmatpush.bf16.msra.mxu0 0
    %261 = vmatpush.bf16.msra.mxu0 0
    %262 = vmatpush.bf16.msra.mxu0 %v232
    %263 = vmatpush.bf16.msra.mxu0 %v229
    %264 = vmatpush.bf16.msra.mxu0 %v226
    %265 = vmatpush.bf16.msra.mxu0 %v223
    %266 = vmatmul.bf16.gmra.mxu0 %v256
    %v267 = vpop.f32.mrf.mxu0
    %v268 = vadd.f32 %v248, %v267
    %v269 = vpop.f32.mrf.mxu0
    %270 = vdwg.mxu0
    %271 = vmatpush.bf16.msra.mxu0 0
    %272 = vmatpush.bf16.msra.mxu0 0
    %273 = vmatpush.bf16.msra.mxu0 0
    %274 = vmatpush.bf16.msra.mxu0 0
    %275 = vmatpush.bf16.msra.mxu0 %v233
    %276 = vmatpush.bf16.msra.mxu0 %v230
    %277 = vmatpush.bf16.msra.mxu0 %v227
    %278 = vmatpush.bf16.msra.mxu0 %v224
    %279 = vmatmul.bf16.gmra.mxu0 %v256
    %v280 = vpop.f32.mrf.mxu0
    %v281 = vadd.f32 %v249, %v280
    %v282 = vpop.f32.mrf.mxu0
    %283 = vdwg.mxu0
    %284 = vmatpush.bf16.msra.mxu0 0
    %285 = vmatpush.bf16.msra.mxu0 0
    %286 = vmatpush.bf16.msra.mxu0 0
    %287 = vmatpush.bf16.msra.mxu0 0
    %288 = vmatpush.bf16.msra.mxu0 %v234
    %289 = vmatpush.bf16.msra.mxu0 %v231
    %290 = vmatpush.bf16.msra.mxu0 %v228
    %291 = vmatpush.bf16.msra.mxu0 %v225
    %292 = vmatmul.bf16.gmra.mxu0 %v256
    %v293 = vpop.f32.mrf.mxu0
    %v294 = vadd.f32 %v250, %v293
    %v295 = vpop.f32.mrf.mxu0
    %296 = vdwg.mxu0
    %v297 = vld [vmem:[%s15] sm:$0xff]
    %v298 = vld [vmem:[%s15 + $0x8] sm:$0xf]
    %v299 = vld [vmem:[%s15 + $0xc] sm:$0xff]
    %v300 = vld [vmem:[%s15 + $0x14] sm:$0xf]
    %v301 = vld [vmem:[%s15 + $0x18] sm:$0xff]
    %v302 = vld [vmem:[%s15 + $0x20] sm:$0xf]
    %v303 = vld [vmem:[%s15 + $0x24] sm:$0xff]
    %v304 = vld [vmem:[%s15 + $0x2c] sm:$0xf]
    %v305 = vld [vmem:[%s15 + $0x30] sm:$0xff]
    %v306 = vld [vmem:[%s15 + $0x38] sm:$0xf]
    %v307 = vld [vmem:[%s15 + $0x3c] sm:$0xff]
    %v308 = vld [vmem:[%s15 + $0x44] sm:$0xf]
    %v309 = vld [vmem:[%s15 + $0x48] sm:$0xff]
    %v310 = vld [vmem:[%s15 + $0x50] sm:$0xf]
    %v311 = vld [vmem:[%s15 + $0x54] sm:$0xff]
    %v312 = vld [vmem:[%s15 + $0x5c] sm:$0xf]
    %v313 = vld [vmem:[%s17] sm:$0x7]
    %v330 = vunpack.c.l.b16 %v297
    %v331 = vunpack.c.h.b16 %v297
    %v332 = vunpack.c.l.b16 %v298
    %v333 = vunpack.c.l.b16 %v299
    %v334 = vunpack.c.h.b16 %v299
    %v335 = vunpack.c.l.b16 %v300
    %v336 = vunpack.c.l.b16 %v301
    %v337 = vunpack.c.h.b16 %v301
    %v338 = vunpack.c.l.b16 %v302
    %v339 = vunpack.c.l.b16 %v303
    %v340 = vunpack.c.h.b16 %v303
    %v341 = vunpack.c.l.b16 %v304
    %v342 = vunpack.c.l.b16 %v305
    %v343 = vunpack.c.h.b16 %v305
    %v344 = vunpack.c.l.b16 %v306
    %v345 = vunpack.c.l.b16 %v307
    %v346 = vunpack.c.h.b16 %v307
    %v347 = vunpack.c.l.b16 %v308
    %v348 = vunpack.c.l.b16 %v309
    %v349 = vunpack.c.h.b16 %v309
    %v350 = vunpack.c.l.b16 %v310
    %v351 = vunpack.c.l.b16 %v311
    %v352 = vunpack.c.h.b16 %v311
    %v353 = vunpack.c.l.b16 %v312
    %v354 = vpack.c.b16 %v333, %v330
    %v355 = vpack.c.b16 %v334, %v331
    %v356 = vpack.c.b16 %v335, %v332
    %v357 = vpack.c.b16 %v339, %v336
    %v358 = vpack.c.b16 %v340, %v337
    %v359 = vpack.c.b16 %v341, %v338
    %v360 = vpack.c.b16 %v345, %v342
    %v361 = vpack.c.b16 %v346, %v343
    %v362 = vpack.c.b16 %v347, %v344
    %v363 = vpack.c.b16 %v351, %v348
    %v364 = vpack.c.b16 %v352, %v349
    %v365 = vpack.c.b16 %v353, %v350
    %v379 = vperm.slane %v313, 0
    %v380 = vperm.slane %v313, 1
    %v381 = vperm.slane %v313, 2
    %385 = vmatpush.bf16.msra.mxu0 0
    %386 = vmatpush.bf16.msra.mxu0 0
    %387 = vmatpush.bf16.msra.mxu0 0
    %388 = vmatpush.bf16.msra.mxu0 0
    %389 = vmatpush.bf16.msra.mxu0 %v363
    %390 = vmatpush.bf16.msra.mxu0 %v360
    %391 = vmatpush.bf16.msra.mxu0 %v357
    %392 = vmatpush.bf16.msra.mxu0 %v354
    %393 = vmatmul.bf16.gmra.mxu0 %v256
    %v394 = vpop.f32.mrf.mxu0
    %v395 = vadd.f32 %v379, %v394
    %v396 = vpop.f32.mrf.mxu0
    %397 = vdwg.mxu0
    %398 = vmatpush.bf16.msra.mxu0 0
    %399 = vmatpush.bf16.msra.mxu0 0
    %400 = vmatpush.bf16.msra.mxu0 0
    %401 = vmatpush.bf16.msra.mxu0 0
    %402 = vmatpush.bf16.msra.mxu0 %v364
    %403 = vmatpush.bf16.msra.mxu0 %v361
    %404 = vmatpush.bf16.msra.mxu0 %v358
    %405 = vmatpush.bf16.msra.mxu0 %v355
    %406 = vmatmul.bf16.gmra.mxu0 %v256
    %v407 = vpop.f32.mrf.mxu0
    %v408 = vadd.f32 %v380, %v407
    %v409 = vpop.f32.mrf.mxu0
    %410 = vdwg.mxu0
    %411 = vmatpush.bf16.msra.mxu0 0
    %412 = vmatpush.bf16.msra.mxu0 0
    %413 = vmatpush.bf16.msra.mxu0 0
    %414 = vmatpush.bf16.msra.mxu0 0
    %415 = vmatpush.bf16.msra.mxu0 %v365
    %416 = vmatpush.bf16.msra.mxu0 %v362
    %417 = vmatpush.bf16.msra.mxu0 %v359
    %418 = vmatpush.bf16.msra.mxu0 %v356
    %419 = vmatmul.bf16.gmra.mxu0 %v256
    %v420 = vpop.f32.mrf.mxu0
    %v421 = vadd.f32 %v381, %v420
    %v422 = vpop.f32.mrf.mxu0
    %423 = vdwg.mxu0
    %v424 = vadd.f32 %v268, 1.0
    %v425 = vsel %vm254, %v138, 0.0
    %426 = vadd.xlane.f32.xlu0 %v425
    %v427 = vpop.xlane.xlu0 %426
    %v428 = vrcp.pop 64.0
    %v429 = vmul.f32 64.0, %v428
    %v430 = vsub.f32 1.0, %v429
    %v431 = vmul.f32 %v428, %v430
    %v432 = vadd.f32 %v428, %v431
    %vm433 = vweird.f32 %v428
    %v434 = vsel %vm433, %v428, %v432
    %v435 = vmul.f32 %v427, %v434
    %v436 = vsub.f32 %v138, %v435
    %v437 = vmul.f32 %v436, %v436
    %v438 = vsel %vm254, %v437, 0.0
    %439 = vadd.xlane.f32.xlu0 %v438
    %v440 = vpop.xlane.xlu0 %439
    %v441 = vmul.f32 %v440, %v434
    %v442 = vadd.f32 %v441, 1e-06
    %v443 = vrsqrt.pop %v442
    %v444 = vmul.f32 %v443, %v442
    %v445 = vmul.f32 %v444, %v443
    %v446 = vmul.f32 0.5, %v445
    %v447 = vsub.f32 1.5, %v446
    %v448 = vmul.f32 %v443, %v447
    %vm449 = vweird.f32 %v442
    %vm450 = vweird.f32 %v443
    %vm451 = vmor %vm449, %vm450
    %v452 = vsel %vm451, %v443, %v448
    %v453 = vmul.f32 %v436, %v452
    %v454 = vperm.slane %v424, 0
    %456 = vrot.lane.b32.xlu0 %v453, 64
    %v457 = vpop.permute.xlu0 %456
    %v459 = vmul.f32 %v454, %v457
    %v460 = vperm.slane %v268, 0
    %462 = vrot.lane.b32.xlu0 %v460, 64
    %v463 = vpop.permute.xlu0 %462
    %v465 = vadd.f32 %v459, %v463
    %v466 = vpack.c.bf16 %v465, %v465
    %v467 = vld [vmem:[%s19] sm:$0xff]
    %v468 = vld [vmem:[%s19 + $0x8] sm:$0xff]
    %v469 = vld [vmem:[%s19 + $0x10] sm:$0xff]
    %v470 = vld [vmem:[%s19 + $0x18] sm:$0xff]
    %v471 = vld [vmem:[%s19 + $0x20] sm:$0xff]
    %v472 = vld [vmem:[%s19 + $0x28] sm:$0xff]
    %v473 = vld [vmem:[%s19 + $0x30] sm:$0xff]
    %v474 = vld [vmem:[%s19 + $0x38] sm:$0xff]
    %v475 = vld [vmem:[%s21] sm:$0x3]
    %v477 = vperm.slane %v475, 0
    %v478 = vperm.slane %v475, 1
    %482 = vrot.lane.b32.xlu0 %v466, 64
    %v483 = vpop.permute.xlu0 %482
    %v492 = vunpack.c.l.b16 %v467
    %v493 = vunpack.c.h.b16 %v467
    %v494 = vunpack.c.l.b16 %v468
    %v495 = vunpack.c.h.b16 %v468
    %v496 = vunpack.c.l.b16 %v469
    %v497 = vunpack.c.h.b16 %v469
    %v498 = vunpack.c.l.b16 %v470
    %v499 = vunpack.c.h.b16 %v470
    %v500 = vunpack.c.l.b16 %v471
    %v501 = vunpack.c.h.b16 %v471
    %v502 = vunpack.c.l.b16 %v472
    %v503 = vunpack.c.h.b16 %v472
    %v504 = vunpack.c.l.b16 %v473
    %v505 = vunpack.c.h.b16 %v473
    %v506 = vunpack.c.l.b16 %v474
    %v507 = vunpack.c.h.b16 %v474
    %v508 = vpack.c.b16 %v494, %v492
    %v509 = vpack.c.b16 %v495, %v493
    %v510 = vpack.c.b16 %v498, %v496
    %v511 = vpack.c.b16 %v499, %v497
    %v512 = vpack.c.b16 %v502, %v500
    %v513 = vpack.c.b16 %v503, %v501
    %v514 = vpack.c.b16 %v506, %v504
    %v515 = vpack.c.b16 %v507, %v505
    %v525 = vsel %vm254, %v483, 0
    %527 = vmatpush.bf16.msra.mxu0 0
    %528 = vmatpush.bf16.msra.mxu0 0
    %529 = vmatpush.bf16.msra.mxu0 0
    %530 = vmatpush.bf16.msra.mxu0 0
    %531 = vmatpush.bf16.msra.mxu0 %v514
    %532 = vmatpush.bf16.msra.mxu0 %v512
    %533 = vmatpush.bf16.msra.mxu0 %v510
    %534 = vmatpush.bf16.msra.mxu0 %v508
    %535 = vmatmul.bf16.gmra.mxu0 %v525
    %v536 = vpop.f32.mrf.mxu0
    %v537 = vadd.f32 %v477, %v536
    %v538 = vpop.f32.mrf.mxu0
    %539 = vdwg.mxu0
    %540 = vmatpush.bf16.msra.mxu0 0
    %541 = vmatpush.bf16.msra.mxu0 0
    %542 = vmatpush.bf16.msra.mxu0 0
    %543 = vmatpush.bf16.msra.mxu0 0
    %544 = vmatpush.bf16.msra.mxu0 %v515
    %545 = vmatpush.bf16.msra.mxu0 %v513
    %546 = vmatpush.bf16.msra.mxu0 %v511
    %547 = vmatpush.bf16.msra.mxu0 %v509
    %548 = vmatmul.bf16.gmra.mxu0 %v525
    %v549 = vpop.f32.mrf.mxu0
    %v550 = vadd.f32 %v478, %v549
    %v551 = vpop.f32.mrf.mxu0
    %552 = vdwg.mxu0
    %v553 = vadd.f32 %v395, 1.0
    %vm554 = vcmask 519168
    %v555 = vsel %vm554, %v143, 0.0
    %556 = vadd.xlane.f32.xlu0 %v555
    %v557 = vpop.xlane.xlu0 %556
    %v558 = vmul.f32 %v557, %v434
    %v559 = vsub.f32 %v143, %v558
    %v560 = vmul.f32 %v559, %v559
    %v561 = vsel %vm554, %v560, 0.0
    %562 = vadd.xlane.f32.xlu0 %v561
    %v563 = vpop.xlane.xlu0 %562
    %v564 = vmul.f32 %v563, %v434
    %v565 = vadd.f32 %v564, 1e-06
    %v566 = vrsqrt.pop %v565
    %v567 = vmul.f32 %v566, %v565
    %v568 = vmul.f32 %v567, %v566
    %v569 = vmul.f32 0.5, %v568
    %v570 = vsub.f32 1.5, %v569
    %v571 = vmul.f32 %v566, %v570
    %vm572 = vweird.f32 %v565
    %vm573 = vweird.f32 %v566
    %vm574 = vmor %vm572, %vm573
    %v575 = vsel %vm574, %v566, %v571
    %v576 = vmul.f32 %v559, %v575
    %v577 = vperm.slane %v553, 0
    %579 = vrot.lane.b32.xlu0 %v576, 64
    %v580 = vpop.permute.xlu0 %579
    %v582 = vmul.f32 %v577, %v580
    %v583 = vperm.slane %v395, 0
    %585 = vrot.lane.b32.xlu0 %v583, 64
    %v586 = vpop.permute.xlu0 %585
    %v588 = vadd.f32 %v582, %v586
    %v589 = vpack.c.bf16 %v588, %v588
    %v590 = vld [vmem:[%s23] sm:$0xff]
    %v591 = vld [vmem:[%s23 + $0x8] sm:$0xff]
    %v592 = vld [vmem:[%s23 + $0x10] sm:$0xff]
    %v593 = vld [vmem:[%s23 + $0x18] sm:$0xff]
    %v594 = vld [vmem:[%s23 + $0x20] sm:$0xff]
    %v595 = vld [vmem:[%s23 + $0x28] sm:$0xff]
    %v596 = vld [vmem:[%s23 + $0x30] sm:$0xff]
    %v597 = vld [vmem:[%s23 + $0x38] sm:$0xff]
    %v598 = vld [vmem:[%s25] sm:$0x3]
    %v600 = vperm.slane %v598, 0
    %v601 = vperm.slane %v598, 1
    %605 = vrot.lane.b32.xlu0 %v589, 64
    %v606 = vpop.permute.xlu0 %605
    %v615 = vunpack.c.l.b16 %v590
    %v616 = vunpack.c.h.b16 %v590
    %v617 = vunpack.c.l.b16 %v591
    %v618 = vunpack.c.h.b16 %v591
    %v619 = vunpack.c.l.b16 %v592
    %v620 = vunpack.c.h.b16 %v592
    %v621 = vunpack.c.l.b16 %v593
    %v622 = vunpack.c.h.b16 %v593
    %v623 = vunpack.c.l.b16 %v594
    %v624 = vunpack.c.h.b16 %v594
    %v625 = vunpack.c.l.b16 %v595
    %v626 = vunpack.c.h.b16 %v595
    %v627 = vunpack.c.l.b16 %v596
    %v628 = vunpack.c.h.b16 %v596
    %v629 = vunpack.c.l.b16 %v597
    %v630 = vunpack.c.h.b16 %v597
    %v631 = vpack.c.b16 %v617, %v615
    %v632 = vpack.c.b16 %v618, %v616
    %v633 = vpack.c.b16 %v621, %v619
    %v634 = vpack.c.b16 %v622, %v620
    %v635 = vpack.c.b16 %v625, %v623
    %v636 = vpack.c.b16 %v626, %v624
    %v637 = vpack.c.b16 %v629, %v627
    %v638 = vpack.c.b16 %v630, %v628
    %v648 = vsel %vm254, %v606, 0
    %650 = vmatpush.bf16.msra.mxu0 0
    %651 = vmatpush.bf16.msra.mxu0 0
    %652 = vmatpush.bf16.msra.mxu0 0
    %653 = vmatpush.bf16.msra.mxu0 0
    %654 = vmatpush.bf16.msra.mxu0 %v637
    %655 = vmatpush.bf16.msra.mxu0 %v635
    %656 = vmatpush.bf16.msra.mxu0 %v633
    %657 = vmatpush.bf16.msra.mxu0 %v631
    %658 = vmatmul.bf16.gmra.mxu0 %v648
    %v659 = vpop.f32.mrf.mxu0
    %v660 = vadd.f32 %v600, %v659
    %v661 = vpop.f32.mrf.mxu0
    %662 = vdwg.mxu0
    %663 = vmatpush.bf16.msra.mxu0 0
    %664 = vmatpush.bf16.msra.mxu0 0
    %665 = vmatpush.bf16.msra.mxu0 0
    %666 = vmatpush.bf16.msra.mxu0 0
    %667 = vmatpush.bf16.msra.mxu0 %v638
    %668 = vmatpush.bf16.msra.mxu0 %v636
    %669 = vmatpush.bf16.msra.mxu0 %v634
    %670 = vmatpush.bf16.msra.mxu0 %v632
    %671 = vmatmul.bf16.gmra.mxu0 %v648
    %v672 = vpop.f32.mrf.mxu0
    %v673 = vadd.f32 %v601, %v672
    %v674 = vpop.f32.mrf.mxu0
    %675 = vdwg.mxu0
    %v676 = vmul.f32 %v537, %v537
    %vm677 = vcmask 130048
    %v678 = vsel %vm677, %v676, 0.0
    %679 = vadd.xlane.f32.xlu0 %v678
    %v680 = vpop.xlane.xlu0 %679
    %v681 = vrcp.pop 16.0
    %v682 = vmul.f32 16.0, %v681
    %v683 = vsub.f32 1.0, %v682
    %v684 = vmul.f32 %v681, %v683
    %v685 = vadd.f32 %v681, %v684
    %vm686 = vweird.f32 %v681
    %v687 = vsel %vm686, %v681, %v685
    %v688 = vmul.f32 %v680, %v687
    %v689 = vadd.f32 %v688, 1e-06
    %v690 = vrsqrt.pop %v689
    %v691 = vmul.f32 %v690, %v689
    %v692 = vmul.f32 %v691, %v690
    %v693 = vmul.f32 0.5, %v692
    %v694 = vsub.f32 1.5, %v693
    %v695 = vmul.f32 %v690, %v694
    %vm696 = vweird.f32 %v689
    %vm697 = vweird.f32 %v690
    %vm698 = vmor %vm696, %vm697
    %v699 = vsel %vm698, %v690, %v695
    %v700 = vmul.f32 %v537, %v699
    %v702 = vperm.slane %v130, 0
    %v704 = vmul.f32 %v700, %v702
    %706 = vrot.lane.b32.xlu0 %v676, 112
    %v707 = vpop.permute.xlu0 %706
    %v709 = vsel %vm677, %v707, 0.0
    %710 = vadd.xlane.f32.xlu0 %v709
    %v711 = vpop.xlane.xlu0 %710
    %v712 = vmul.f32 %v711, %v687
    %v713 = vadd.f32 %v712, 1e-06
    %v714 = vrsqrt.pop %v713
    %v715 = vmul.f32 %v714, %v713
    %v716 = vmul.f32 %v715, %v714
    %v717 = vmul.f32 0.5, %v716
    %v718 = vsub.f32 1.5, %v717
    %v719 = vmul.f32 %v714, %v718
    %vm720 = vweird.f32 %v713
    %vm721 = vweird.f32 %v714
    %vm722 = vmor %vm720, %vm721
    %v723 = vsel %vm722, %v714, %v719
    %v724 = vmul.f32 %v537, %v723
    %725 = vrot.lane.b32.xlu0 %v702, 16
    %v726 = vpop.permute.xlu0 %725
    %v728 = vmul.f32 %v724, %v726
    %729 = vrot.lane.b32.xlu0 %v676, 96
    %v730 = vpop.permute.xlu0 %729
    %v732 = vsel %vm677, %v730, 0.0
    %733 = vadd.xlane.f32.xlu0 %v732
    %v734 = vpop.xlane.xlu0 %733
    %v735 = vmul.f32 %v734, %v687
    %v736 = vadd.f32 %v735, 1e-06
    %v737 = vrsqrt.pop %v736
    %v738 = vmul.f32 %v737, %v736
    %v739 = vmul.f32 %v738, %v737
    %v740 = vmul.f32 0.5, %v739
    %v741 = vsub.f32 1.5, %v740
    %v742 = vmul.f32 %v737, %v741
    %vm743 = vweird.f32 %v736
    %vm744 = vweird.f32 %v737
    %vm745 = vmor %vm743, %vm744
    %v746 = vsel %vm745, %v737, %v742
    %v747 = vmul.f32 %v537, %v746
    %748 = vrot.lane.b32.xlu0 %v702, 32
    %v749 = vpop.permute.xlu0 %748
    %v751 = vmul.f32 %v747, %v749
    %752 = vrot.lane.b32.xlu0 %v676, 80
    %v753 = vpop.permute.xlu0 %752
    %v755 = vsel %vm677, %v753, 0.0
    %756 = vadd.xlane.f32.xlu0 %v755
    %v757 = vpop.xlane.xlu0 %756
    %v758 = vmul.f32 %v757, %v687
    %v759 = vadd.f32 %v758, 1e-06
    %v760 = vrsqrt.pop %v759
    %v761 = vmul.f32 %v760, %v759
    %v762 = vmul.f32 %v761, %v760
    %v763 = vmul.f32 0.5, %v762
    %v764 = vsub.f32 1.5, %v763
    %v765 = vmul.f32 %v760, %v764
    %vm766 = vweird.f32 %v759
    %vm767 = vweird.f32 %v760
    %vm768 = vmor %vm766, %vm767
    %v769 = vsel %vm768, %v760, %v765
    %v770 = vmul.f32 %v537, %v769
    %771 = vrot.lane.b32.xlu0 %v702, 48
    %v772 = vpop.permute.xlu0 %771
    %v774 = vmul.f32 %v770, %v772
    %v775 = vsel %vm677, %v704, %v728
    %vm776 = vcmask 261120
    %v777 = vsel %vm776, %v775, %v751
    %vm778 = vcmask 392192
    %v779 = vsel %vm778, %v777, %v774
    %780 = vrot.lane.b32.xlu0 %v676, 64
    %v781 = vpop.permute.xlu0 %780
    %v783 = vsel %vm677, %v781, 0.0
    %784 = vadd.xlane.f32.xlu0 %v783
    %v785 = vpop.xlane.xlu0 %784
    %v786 = vmul.f32 %v785, %v687
    %v787 = vadd.f32 %v786, 1e-06
    %v788 = vrsqrt.pop %v787
    %v789 = vmul.f32 %v788, %v787
    %v790 = vmul.f32 %v789, %v788
    %v791 = vmul.f32 0.5, %v790
    %v792 = vsub.f32 1.5, %v791
    %v793 = vmul.f32 %v788, %v792
    %vm794 = vweird.f32 %v787
    %vm795 = vweird.f32 %v788
    %vm796 = vmor %vm794, %vm795
    %v797 = vsel %vm796, %v788, %v793
    %v798 = vmul.f32 %v537, %v797
    %v800 = vperm.slane %v131, 0
    %801 = vrot.lane.b32.xlu0 %v800, 64
    %v802 = vpop.permute.xlu0 %801
    %v804 = vmul.f32 %v798, %v802
    %805 = vrot.lane.b32.xlu0 %v676, 48
    %v806 = vpop.permute.xlu0 %805
    %v808 = vsel %vm677, %v806, 0.0
    %809 = vadd.xlane.f32.xlu0 %v808
    %v810 = vpop.xlane.xlu0 %809
    %v811 = vmul.f32 %v810, %v687
    %v812 = vadd.f32 %v811, 1e-06
    %v813 = vrsqrt.pop %v812
    %v814 = vmul.f32 %v813, %v812
    %v815 = vmul.f32 %v814, %v813
    %v816 = vmul.f32 0.5, %v815
    %v817 = vsub.f32 1.5, %v816
    %v818 = vmul.f32 %v813, %v817
    %vm819 = vweird.f32 %v812
    %vm820 = vweird.f32 %v813
    %vm821 = vmor %vm819, %vm820
    %v822 = vsel %vm821, %v813, %v818
    %v823 = vmul.f32 %v537, %v822
    %824 = vrot.lane.b32.xlu0 %v800, 80
    %v825 = vpop.permute.xlu0 %824
    %v827 = vmul.f32 %v823, %v825
    %828 = vrot.lane.b32.xlu0 %v676, 32
    %v829 = vpop.permute.xlu0 %828
    %v831 = vsel %vm677, %v829, 0.0
    %832 = vadd.xlane.f32.xlu0 %v831
    %v833 = vpop.xlane.xlu0 %832
    %v834 = vmul.f32 %v833, %v687
    %v835 = vadd.f32 %v834, 1e-06
    %v836 = vrsqrt.pop %v835
    %v837 = vmul.f32 %v836, %v835
    %v838 = vmul.f32 %v837, %v836
    %v839 = vmul.f32 0.5, %v838
    %v840 = vsub.f32 1.5, %v839
    %v841 = vmul.f32 %v836, %v840
    %vm842 = vweird.f32 %v835
    %vm843 = vweird.f32 %v836
    %vm844 = vmor %vm842, %vm843
    %v845 = vsel %vm844, %v836, %v841
    %v846 = vmul.f32 %v537, %v845
    %847 = vrot.lane.b32.xlu0 %v800, 96
    %v848 = vpop.permute.xlu0 %847
    %v850 = vmul.f32 %v846, %v848
    %851 = vrot.lane.b32.xlu0 %v676, 16
    %v852 = vpop.permute.xlu0 %851
    %v854 = vsel %vm677, %v852, 0.0
    %855 = vadd.xlane.f32.xlu0 %v854
    %v856 = vpop.xlane.xlu0 %855
    %v857 = vmul.f32 %v856, %v687
    %v858 = vadd.f32 %v857, 1e-06
    %v859 = vrsqrt.pop %v858
    %v860 = vmul.f32 %v859, %v858
    %v861 = vmul.f32 %v860, %v859
    %v862 = vmul.f32 0.5, %v861
    %v863 = vsub.f32 1.5, %v862
    %v864 = vmul.f32 %v859, %v863
    %vm865 = vweird.f32 %v858
    %vm866 = vweird.f32 %v859
    %vm867 = vmor %vm865, %vm866
    %v868 = vsel %vm867, %v859, %v864
    %v869 = vmul.f32 %v537, %v868
    %870 = vrot.lane.b32.xlu0 %v800, 112
    %v871 = vpop.permute.xlu0 %870
    %v873 = vmul.f32 %v869, %v871
    %875 = vrot.lane.b32.xlu0 %v804, 64
    %v876 = vpop.permute.xlu0 %875
    %879 = vrot.lane.b32.xlu0 %v827, 64
    %v880 = vpop.permute.xlu0 %879
    %883 = vrot.lane.b32.xlu0 %v850, 64
    %v884 = vpop.permute.xlu0 %883
    %887 = vrot.lane.b32.xlu0 %v873, 64
    %v888 = vpop.permute.xlu0 %887
    %v890 = vsel %vm677, %v876, %v880
    %v891 = vsel %vm776, %v890, %v884
    %v892 = vsel %vm778, %v891, %v888
    %v893 = vmul.f32 %v660, %v660
    %vm894 = vcmask 125952
    %v895 = vsel %vm894, %v893, 0.0
    %896 = vadd.xlane.f32.xlu0 %v895
    %v897 = vpop.xlane.xlu0 %896
    %v898 = vmul.f32 %v897, %v687
    %v899 = vadd.f32 %v898, 1e-06
    %v900 = vrsqrt.pop %v899
    %v901 = vmul.f32 %v900, %v899
    %v902 = vmul.f32 %v901, %v900
    %v903 = vmul.f32 0.5, %v902
    %v904 = vsub.f32 1.5, %v903
    %v905 = vmul.f32 %v900, %v904
    %vm906 = vweird.f32 %v899
    %vm907 = vweird.f32 %v900
    %vm908 = vmor %vm906, %vm907
    %v909 = vsel %vm908, %v900, %v905
    %v910 = vmul.f32 %v660, %v909
    %v912 = vperm.slane %v132, 0
    %v914 = vmul.f32 %v910, %v912
    %916 = vrot.lane.b32.xlu0 %v893, 112
    %v917 = vpop.permute.xlu0 %916
    %v919 = vsel %vm894, %v917, 0.0
    %920 = vadd.xlane.f32.xlu0 %v919
    %v921 = vpop.xlane.xlu0 %920
    %v922 = vmul.f32 %v921, %v687
    %v923 = vadd.f32 %v922, 1e-06
    %v924 = vrsqrt.pop %v923
    %v925 = vmul.f32 %v924, %v923
    %v926 = vmul.f32 %v925, %v924
    %v927 = vmul.f32 0.5, %v926
    %v928 = vsub.f32 1.5, %v927
    %v929 = vmul.f32 %v924, %v928
    %vm930 = vweird.f32 %v923
    %vm931 = vweird.f32 %v924
    %vm932 = vmor %vm930, %vm931
    %v933 = vsel %vm932, %v924, %v929
    %v934 = vmul.f32 %v660, %v933
    %935 = vrot.lane.b32.xlu0 %v912, 16
    %v936 = vpop.permute.xlu0 %935
    %v938 = vmul.f32 %v934, %v936
    %939 = vrot.lane.b32.xlu0 %v893, 96
    %v940 = vpop.permute.xlu0 %939
    %v942 = vsel %vm894, %v940, 0.0
    %943 = vadd.xlane.f32.xlu0 %v942
    %v944 = vpop.xlane.xlu0 %943
    %v945 = vmul.f32 %v944, %v687
    %v946 = vadd.f32 %v945, 1e-06
    %v947 = vrsqrt.pop %v946
    %v948 = vmul.f32 %v947, %v946
    %v949 = vmul.f32 %v948, %v947
    %v950 = vmul.f32 0.5, %v949
    %v951 = vsub.f32 1.5, %v950
    %v952 = vmul.f32 %v947, %v951
    %vm953 = vweird.f32 %v946
    %vm954 = vweird.f32 %v947
    %vm955 = vmor %vm953, %vm954
    %v956 = vsel %vm955, %v947, %v952
    %v957 = vmul.f32 %v660, %v956
    %958 = vrot.lane.b32.xlu0 %v912, 32
    %v959 = vpop.permute.xlu0 %958
    %v961 = vmul.f32 %v957, %v959
    %962 = vrot.lane.b32.xlu0 %v893, 80
    %v963 = vpop.permute.xlu0 %962
    %v965 = vsel %vm894, %v963, 0.0
    %966 = vadd.xlane.f32.xlu0 %v965
    %v967 = vpop.xlane.xlu0 %966
    %v968 = vmul.f32 %v967, %v687
    %v969 = vadd.f32 %v968, 1e-06
    %v970 = vrsqrt.pop %v969
    %v971 = vmul.f32 %v970, %v969
    %v972 = vmul.f32 %v971, %v970
    %v973 = vmul.f32 0.5, %v972
    %v974 = vsub.f32 1.5, %v973
    %v975 = vmul.f32 %v970, %v974
    %vm976 = vweird.f32 %v969
    %vm977 = vweird.f32 %v970
    %vm978 = vmor %vm976, %vm977
    %v979 = vsel %vm978, %v970, %v975
    %v980 = vmul.f32 %v660, %v979
    %981 = vrot.lane.b32.xlu0 %v912, 48
    %v982 = vpop.permute.xlu0 %981
    %v984 = vmul.f32 %v980, %v982
    %v985 = vsel %vm677, %v914, %v938
    %v986 = vsel %vm776, %v985, %v961
    %v987 = vsel %vm778, %v986, %v984
    %988 = vrot.lane.b32.xlu0 %v893, 64
    %v989 = vpop.permute.xlu0 %988
    %v991 = vsel %vm894, %v989, 0.0
    %992 = vadd.xlane.f32.xlu0 %v991
    %v993 = vpop.xlane.xlu0 %992
    %v994 = vmul.f32 %v993, %v687
    %v995 = vadd.f32 %v994, 1e-06
    %v996 = vrsqrt.pop %v995
    %v997 = vmul.f32 %v996, %v995
    %v998 = vmul.f32 %v997, %v996
    %v999 = vmul.f32 0.5, %v998
    %v1000 = vsub.f32 1.5, %v999
    %v1001 = vmul.f32 %v996, %v1000
    %vm1002 = vweird.f32 %v995
    %vm1003 = vweird.f32 %v996
    %vm1004 = vmor %vm1002, %vm1003
    %v1005 = vsel %vm1004, %v996, %v1001
    %v1006 = vmul.f32 %v660, %v1005
    %v1008 = vperm.slane %v133, 0
    %1009 = vrot.lane.b32.xlu0 %v1008, 64
    %v1010 = vpop.permute.xlu0 %1009
    %v1012 = vmul.f32 %v1006, %v1010
    %1013 = vrot.lane.b32.xlu0 %v893, 48
    %v1014 = vpop.permute.xlu0 %1013
    %v1016 = vsel %vm894, %v1014, 0.0
    %1017 = vadd.xlane.f32.xlu0 %v1016
    %v1018 = vpop.xlane.xlu0 %1017
    %v1019 = vmul.f32 %v1018, %v687
    %v1020 = vadd.f32 %v1019, 1e-06
    %v1021 = vrsqrt.pop %v1020
    %v1022 = vmul.f32 %v1021, %v1020
    %v1023 = vmul.f32 %v1022, %v1021
    %v1024 = vmul.f32 0.5, %v1023
    %v1025 = vsub.f32 1.5, %v1024
    %v1026 = vmul.f32 %v1021, %v1025
    %vm1027 = vweird.f32 %v1020
    %vm1028 = vweird.f32 %v1021
    %vm1029 = vmor %vm1027, %vm1028
    %v1030 = vsel %vm1029, %v1021, %v1026
    %v1031 = vmul.f32 %v660, %v1030
    %1032 = vrot.lane.b32.xlu0 %v1008, 80
    %v1033 = vpop.permute.xlu0 %1032
    %v1035 = vmul.f32 %v1031, %v1033
    %1036 = vrot.lane.b32.xlu0 %v893, 32
    %v1037 = vpop.permute.xlu0 %1036
    %v1039 = vsel %vm894, %v1037, 0.0
    %1040 = vadd.xlane.f32.xlu0 %v1039
    %v1041 = vpop.xlane.xlu0 %1040
    %v1042 = vmul.f32 %v1041, %v687
    %v1043 = vadd.f32 %v1042, 1e-06
    %v1044 = vrsqrt.pop %v1043
    %v1045 = vmul.f32 %v1044, %v1043
    %v1046 = vmul.f32 %v1045, %v1044
    %v1047 = vmul.f32 0.5, %v1046
    %v1048 = vsub.f32 1.5, %v1047
    %v1049 = vmul.f32 %v1044, %v1048
    %vm1050 = vweird.f32 %v1043
    %vm1051 = vweird.f32 %v1044
    %vm1052 = vmor %vm1050, %vm1051
    %v1053 = vsel %vm1052, %v1044, %v1049
    %v1054 = vmul.f32 %v660, %v1053
    %1055 = vrot.lane.b32.xlu0 %v1008, 96
    %v1056 = vpop.permute.xlu0 %1055
    %v1058 = vmul.f32 %v1054, %v1056
    %1059 = vrot.lane.b32.xlu0 %v893, 16
    %v1060 = vpop.permute.xlu0 %1059
    %v1062 = vsel %vm894, %v1060, 0.0
    %1063 = vadd.xlane.f32.xlu0 %v1062
    %v1064 = vpop.xlane.xlu0 %1063
    %v1065 = vmul.f32 %v1064, %v687
    %v1066 = vadd.f32 %v1065, 1e-06
    %v1067 = vrsqrt.pop %v1066
    %v1068 = vmul.f32 %v1067, %v1066
    %v1069 = vmul.f32 %v1068, %v1067
    %v1070 = vmul.f32 0.5, %v1069
    %v1071 = vsub.f32 1.5, %v1070
    %v1072 = vmul.f32 %v1067, %v1071
    %vm1073 = vweird.f32 %v1066
    %vm1074 = vweird.f32 %v1067
    %vm1075 = vmor %vm1073, %vm1074
    %v1076 = vsel %vm1075, %v1067, %v1072
    %v1077 = vmul.f32 %v660, %v1076
    %1078 = vrot.lane.b32.xlu0 %v1008, 112
    %v1079 = vpop.permute.xlu0 %1078
    %v1081 = vmul.f32 %v1077, %v1079
    %1083 = vrot.lane.b32.xlu0 %v1012, 64
    %v1084 = vpop.permute.xlu0 %1083
    %1087 = vrot.lane.b32.xlu0 %v1035, 64
    %v1088 = vpop.permute.xlu0 %1087
    %1091 = vrot.lane.b32.xlu0 %v1058, 64
    %v1092 = vpop.permute.xlu0 %1091
    %1095 = vrot.lane.b32.xlu0 %v1081, 64
    %v1096 = vpop.permute.xlu0 %1095
    %v1098 = vsel %vm677, %v1084, %v1088
    %v1099 = vsel %vm776, %v1098, %v1092
    %v1100 = vsel %vm778, %v1099, %v1096
    %v1102 = vrot.slane %v779, 4
    %vm1104 = vcmask 1043456
    %v1105 = vsel %vm1104, %v987, %v1102
    %v1107 = vrot.slane %v892, 4
    %v1109 = vsel %vm1104, %v1100, %v1107
    %v1111 = vrot.slane %v550, 4
    %v1113 = vsel %vm1104, %v673, %v1111
    %v1114 = vpack.c.bf16 %v1102, %v1105
    %1115 = vxpose.xlu0.b32.start [1/16] %v1109, 128
    %1116 = vxpose.xlu0.b32.cont [2/16] %v1107, 128
    %1117 = vxpose.xlu0.b32.cont [3/16] 0.0, 128
    %1118 = vxpose.xlu0.b32.cont [4/16] 0.0, 128
    %1119 = vxpose.xlu0.b32.cont [5/16] 0.0, 128
    %1120 = vxpose.xlu0.b32.cont [6/16] 0.0, 128
    %1121 = vxpose.xlu0.b32.cont [7/16] 0.0, 128
    %1122 = vxpose.xlu0.b32.cont [8/16] 0.0, 128
    %1123 = vxpose.xlu0.b32.cont [9/16] 0.0, 128
    %1124 = vxpose.xlu0.b32.cont [10/16] 0.0, 128
    %1125 = vxpose.xlu0.b32.cont [11/16] 0.0, 128
    %1126 = vxpose.xlu0.b32.cont [12/16] 0.0, 128
    %1127 = vxpose.xlu0.b32.cont [13/16] 0.0, 128
    %1128 = vxpose.xlu0.b32.cont [14/16] 0.0, 128
    %1129 = vxpose.xlu0.b32.cont [15/16] 0.0, 128
    %1130 = vxpose.xlu0.b32.end [16/16] 0.0, 128
    %v1131 = vpop.trf.xlu0
    %v1132 = vpop.trf.xlu0
    %v1133 = vpop.trf.xlu0
    %v1134 = vpop.trf.xlu0
    %v1135 = vpop.trf.xlu0
    %v1136 = vpop.trf.xlu0
    %v1137 = vpop.trf.xlu0
    %v1138 = vpop.trf.xlu0
    %v1139 = vpop.trf.xlu0
    %v1140 = vpop.trf.xlu0
    %v1141 = vpop.trf.xlu0
    %v1142 = vpop.trf.xlu0
    %v1143 = vpop.trf.xlu0
    %v1144 = vpop.trf.xlu0
    %v1145 = vpop.trf.xlu0
    %v1146 = vpop.trf.xlu0
    %v1147 = vpack.c.bf16 %v1132, %v1131
    %v1148 = vpack.c.bf16 %v1111, %v1113
    %v1150 = vsel %vm677, %v1114, 0
    %1152 = vmatpush.bf16.msra.mxu0 0
    %1153 = vmatpush.bf16.msra.mxu0 0
    %1154 = vmatpush.bf16.msra.mxu0 0
    %1155 = vmatpush.bf16.msra.mxu0 0
    %1156 = vmatpush.bf16.msra.mxu0 0
    %1157 = vmatpush.bf16.msra.mxu0 0
    %1158 = vmatpush.bf16.msra.mxu0 0
    %1159 = vmatpush.bf16.msra.mxu0 %v1147
    %1160 = vmatmul.bf16.gmra.mxu0 %v1150
    %v1161 = vpop.f32.mrf.mxu0
    %v1162 = vadd.f32 0.0, %v1161
    %v1163 = vpop.f32.mrf.mxu0
    %v1164 = vadd.f32 0.0, %v1163
    %1165 = vdwg.mxu0
    %v1166 = vmul.f32 %v1162, 0.25
    %v1167 = vmul.f32 %v1164, 0.25
    %vm1168 = vcmask 97280
    %v1169 = vsel %vm1168, %v1166, -inf
    %1170 = vmax.xlane.f32.xlu0 %v1169
    %v1171 = vpop.xlane.xlu0 %1170
    %vm1172 = vcmask 93184
    %v1173 = vsel %vm1172, %v1167, -inf
    %1174 = vmax.xlane.f32.xlu0 %v1173
    %v1175 = vpop.xlane.xlu0 %1174
    %v1176 = vsub.f32 %v1166, %v1171
    %v1177 = vsub.f32 %v1167, %v1175
    %v1178 = vmul.f32 %v1176, 1.442695
    %v1179 = vpow.pop %v1178
    %v1180 = vmul.f32 %v1177, 1.442695
    %v1181 = vpow.pop %v1180
    %v1182 = vsel %vm1168, %v1179, 0.0
    %1183 = vadd.xlane.f32.xlu0 %v1182
    %v1184 = vpop.xlane.xlu0 %1183
    %v1185 = vsel %vm1172, %v1181, 0.0
    %1186 = vadd.xlane.f32.xlu0 %v1185
    %v1187 = vpop.xlane.xlu0 %1186
    %v1188 = vrcp.pop %v1184
    %v1189 = vrcp.pop %v1187
    %v1190 = vmul.f32 %v1179, %v1188
    %v1191 = vmul.f32 %v1181, %v1189
    %v1192 = vpack.c.bf16 %v1191, %v1190
    %v1194 = vsel %vm1168, %v1192, 0
    %vm1196 = vcmask 1045504
    %v1198 = vsel %vm1196, %v1148, 0
    %1200 = vmatpush.bf16.msra.mxu0 0
    %1201 = vmatpush.bf16.msra.mxu0 0
    %1202 = vmatpush.bf16.msra.mxu0 0
    %1203 = vmatpush.bf16.msra.mxu0 0
    %1204 = vmatpush.bf16.msra.mxu0 0
    %1205 = vmatpush.bf16.msra.mxu0 0
    %1206 = vmatpush.bf16.msra.mxu0 0
    %1207 = vmatpush.bf16.msra.mxu0 %v1198
    %1208 = vmatmul.bf16.gmra.mxu0 %v1194
    %v1209 = vpop.f32.mrf.mxu0
    %v1210 = vadd.f32 0.0, %v1209
    %v1211 = vpop.f32.mrf.mxu0
    %v1212 = vadd.f32 0.0, %v1211
    %1213 = vdwg.mxu0
    %1215 = vrot.lane.b32.xlu0 %v1109, 112
    %v1216 = vpop.permute.xlu0 %1215
    %1217 = vrot.lane.b32.xlu0 %v1107, 112
    %v1218 = vpop.permute.xlu0 %1217
    %1221 = vxpose.xlu0.b32.start [1/16] %v1216, 128
    %1222 = vxpose.xlu0.b32.cont [2/16] %v1218, 128
    %1223 = vxpose.xlu0.b32.cont [3/16] 0.0, 128
    %1224 = vxpose.xlu0.b32.cont [4/16] 0.0, 128
    %1225 = vxpose.xlu0.b32.cont [5/16] 0.0, 128
    %1226 = vxpose.xlu0.b32.cont [6/16] 0.0, 128
    %1227 = vxpose.xlu0.b32.cont [7/16] 0.0, 128
    %1228 = vxpose.xlu0.b32.cont [8/16] 0.0, 128
    %1229 = vxpose.xlu0.b32.cont [9/16] 0.0, 128
    %1230 = vxpose.xlu0.b32.cont [10/16] 0.0, 128
    %1231 = vxpose.xlu0.b32.cont [11/16] 0.0, 128
    %1232 = vxpose.xlu0.b32.cont [12/16] 0.0, 128
    %1233 = vxpose.xlu0.b32.cont [13/16] 0.0, 128
    %1234 = vxpose.xlu0.b32.cont [14/16] 0.0, 128
    %1235 = vxpose.xlu0.b32.cont [15/16] 0.0, 128
    %1236 = vxpose.xlu0.b32.end [16/16] 0.0, 128
    %v1237 = vpop.trf.xlu0
    %v1238 = vpop.trf.xlu0
    %v1239 = vpop.trf.xlu0
    %v1240 = vpop.trf.xlu0
    %v1241 = vpop.trf.xlu0
    %v1242 = vpop.trf.xlu0
    %v1243 = vpop.trf.xlu0
    %v1244 = vpop.trf.xlu0
    %v1245 = vpop.trf.xlu0
    %v1246 = vpop.trf.xlu0
    %v1247 = vpop.trf.xlu0
    %v1248 = vpop.trf.xlu0
    %v1249 = vpop.trf.xlu0
    %v1250 = vpop.trf.xlu0
    %v1251 = vpop.trf.xlu0
    %v1252 = vpop.trf.xlu0
    %v1253 = vpack.c.bf16 %v1238, %v1237
    %1255 = vrot.lane.b32.xlu0 %v1114, 112
    %v1256 = vpop.permute.xlu0 %1255
    %v1258 = vsel %vm677, %v1256, 0
    %1260 = vmatpush.bf16.msra.mxu0 0
    %1261 = vmatpush.bf16.msra.mxu0 0
    %1262 = vmatpush.bf16.msra.mxu0 0
    %1263 = vmatpush.bf16.msra.mxu0 0
    %1264 = vmatpush.bf16.msra.mxu0 0
    %1265 = vmatpush.bf16.msra.mxu0 0
    %1266 = vmatpush.bf16.msra.mxu0 0
    %1267 = vmatpush.bf16.msra.mxu0 %v1253
    %1268 = vmatmul.bf16.gmra.mxu0 %v1258
    %v1269 = vpop.f32.mrf.mxu0
    %v1270 = vadd.f32 0.0, %v1269
    %v1271 = vpop.f32.mrf.mxu0
    %v1272 = vadd.f32 0.0, %v1271
    %1273 = vdwg.mxu0
    %v1274 = vmul.f32 %v1270, 0.25
    %v1275 = vmul.f32 %v1272, 0.25
    %v1276 = vsel %vm1168, %v1274, -inf
    %1277 = vmax.xlane.f32.xlu0 %v1276
    %v1278 = vpop.xlane.xlu0 %1277
    %v1279 = vsel %vm1172, %v1275, -inf
    %1280 = vmax.xlane.f32.xlu0 %v1279
    %v1281 = vpop.xlane.xlu0 %1280
    %v1282 = vsub.f32 %v1274, %v1278
    %v1283 = vsub.f32 %v1275, %v1281
    %v1284 = vmul.f32 %v1282, 1.442695
    %v1285 = vpow.pop %v1284
    %v1286 = vmul.f32 %v1283, 1.442695
    %v1287 = vpow.pop %v1286
    %v1288 = vsel %vm1168, %v1285, 0.0
    %1289 = vadd.xlane.f32.xlu0 %v1288
    %v1290 = vpop.xlane.xlu0 %1289
    %v1291 = vsel %vm1172, %v1287, 0.0
    %1292 = vadd.xlane.f32.xlu0 %v1291
    %v1293 = vpop.xlane.xlu0 %1292
    %v1294 = vrcp.pop %v1290
    %v1295 = vrcp.pop %v1293
    %v1296 = vmul.f32 %v1285, %v1294
    %v1297 = vmul.f32 %v1287, %v1295
    %v1298 = vpack.c.bf16 %v1297, %v1296
    %1300 = vrot.lane.b32.xlu0 %v1148, 112
    %v1301 = vpop.permute.xlu0 %1300
    %v1303 = vsel %vm1168, %v1298, 0
    %v1306 = vsel %vm1196, %v1301, 0
    %1308 = vmatpush.bf16.msra.mxu0 0
    %1309 = vmatpush.bf16.msra.mxu0 0
    %1310 = vmatpush.bf16.msra.mxu0 0
    %1311 = vmatpush.bf16.msra.mxu0 0
    %1312 = vmatpush.bf16.msra.mxu0 0
    %1313 = vmatpush.bf16.msra.mxu0 0
    %1314 = vmatpush.bf16.msra.mxu0 0
    %1315 = vmatpush.bf16.msra.mxu0 %v1306
    %1316 = vmatmul.bf16.gmra.mxu0 %v1303
    %v1317 = vpop.f32.mrf.mxu0
    %v1318 = vadd.f32 0.0, %v1317
    %v1319 = vpop.f32.mrf.mxu0
    %v1320 = vadd.f32 0.0, %v1319
    %1321 = vdwg.mxu0
    %1322 = vrot.lane.b32.xlu0 %v1109, 96
    %v1323 = vpop.permute.xlu0 %1322
    %1324 = vrot.lane.b32.xlu0 %v1107, 96
    %v1325 = vpop.permute.xlu0 %1324
    %1328 = vxpose.xlu0.b32.start [1/16] %v1323, 128
    %1329 = vxpose.xlu0.b32.cont [2/16] %v1325, 128
    %1330 = vxpose.xlu0.b32.cont [3/16] 0.0, 128
    %1331 = vxpose.xlu0.b32.cont [4/16] 0.0, 128
    %1332 = vxpose.xlu0.b32.cont [5/16] 0.0, 128
    %1333 = vxpose.xlu0.b32.cont [6/16] 0.0, 128
    %1334 = vxpose.xlu0.b32.cont [7/16] 0.0, 128
    %1335 = vxpose.xlu0.b32.cont [8/16] 0.0, 128
    %1336 = vxpose.xlu0.b32.cont [9/16] 0.0, 128
    %1337 = vxpose.xlu0.b32.cont [10/16] 0.0, 128
    %1338 = vxpose.xlu0.b32.cont [11/16] 0.0, 128
    %1339 = vxpose.xlu0.b32.cont [12/16] 0.0, 128
    %1340 = vxpose.xlu0.b32.cont [13/16] 0.0, 128
    %1341 = vxpose.xlu0.b32.cont [14/16] 0.0, 128
    %1342 = vxpose.xlu0.b32.cont [15/16] 0.0, 128
    %1343 = vxpose.xlu0.b32.end [16/16] 0.0, 128
    %v1344 = vpop.trf.xlu0
    %v1345 = vpop.trf.xlu0
    %v1346 = vpop.trf.xlu0
    %v1347 = vpop.trf.xlu0
    %v1348 = vpop.trf.xlu0
    %v1349 = vpop.trf.xlu0
    %v1350 = vpop.trf.xlu0
    %v1351 = vpop.trf.xlu0
    %v1352 = vpop.trf.xlu0
    %v1353 = vpop.trf.xlu0
    %v1354 = vpop.trf.xlu0
    %v1355 = vpop.trf.xlu0
    %v1356 = vpop.trf.xlu0
    %v1357 = vpop.trf.xlu0
    %v1358 = vpop.trf.xlu0
    %v1359 = vpop.trf.xlu0
    %v1360 = vpack.c.bf16 %v1345, %v1344
    %1361 = vrot.lane.b32.xlu0 %v1114, 96
    %v1362 = vpop.permute.xlu0 %1361
    %v1364 = vsel %vm677, %v1362, 0
    %1366 = vmatpush.bf16.msra.mxu0 0
    %1367 = vmatpush.bf16.msra.mxu0 0
    %1368 = vmatpush.bf16.msra.mxu0 0
    %1369 = vmatpush.bf16.msra.mxu0 0
    %1370 = vmatpush.bf16.msra.mxu0 0
    %1371 = vmatpush.bf16.msra.mxu0 0
    %1372 = vmatpush.bf16.msra.mxu0 0
    %1373 = vmatpush.bf16.msra.mxu0 %v1360
    %1374 = vmatmul.bf16.gmra.mxu0 %v1364
    %v1375 = vpop.f32.mrf.mxu0
    %v1376 = vadd.f32 0.0, %v1375
    %v1377 = vpop.f32.mrf.mxu0
    %v1378 = vadd.f32 0.0, %v1377
    %1379 = vdwg.mxu0
    %v1380 = vmul.f32 %v1376, 0.25
    %v1381 = vmul.f32 %v1378, 0.25
    %v1382 = vsel %vm1168, %v1380, -inf
    %1383 = vmax.xlane.f32.xlu0 %v1382
    %v1384 = vpop.xlane.xlu0 %1383
    %v1385 = vsel %vm1172, %v1381, -inf
    %1386 = vmax.xlane.f32.xlu0 %v1385
    %v1387 = vpop.xlane.xlu0 %1386
    %v1388 = vsub.f32 %v1380, %v1384
    %v1389 = vsub.f32 %v1381, %v1387
    %v1390 = vmul.f32 %v1388, 1.442695
    %v1391 = vpow.pop %v1390
    %v1392 = vmul.f32 %v1389, 1.442695
    %v1393 = vpow.pop %v1392
    %v1394 = vsel %vm1168, %v1391, 0.0
    %1395 = vadd.xlane.f32.xlu0 %v1394
    %v1396 = vpop.xlane.xlu0 %1395
    %v1397 = vsel %vm1172, %v1393, 0.0
    %1398 = vadd.xlane.f32.xlu0 %v1397
    %v1399 = vpop.xlane.xlu0 %1398
    %v1400 = vrcp.pop %v1396
    %v1401 = vrcp.pop %v1399
    %v1402 = vmul.f32 %v1391, %v1400
    %v1403 = vmul.f32 %v1393, %v1401
    %v1404 = vpack.c.bf16 %v1403, %v1402
    %1405 = vrot.lane.b32.xlu0 %v1148, 96
    %v1406 = vpop.permute.xlu0 %1405
    %v1408 = vsel %vm1168, %v1404, 0
    %v1411 = vsel %vm1196, %v1406, 0
    %1413 = vmatpush.bf16.msra.mxu0 0
    %1414 = vmatpush.bf16.msra.mxu0 0
    %1415 = vmatpush.bf16.msra.mxu0 0
    %1416 = vmatpush.bf16.msra.mxu0 0
    %1417 = vmatpush.bf16.msra.mxu0 0
    %1418 = vmatpush.bf16.msra.mxu0 0
    %1419 = vmatpush.bf16.msra.mxu0 0
    %1420 = vmatpush.bf16.msra.mxu0 %v1411
    %1421 = vmatmul.bf16.gmra.mxu0 %v1408
    %v1422 = vpop.f32.mrf.mxu0
    %v1423 = vadd.f32 0.0, %v1422
    %v1424 = vpop.f32.mrf.mxu0
    %v1425 = vadd.f32 0.0, %v1424
    %1426 = vdwg.mxu0
    %1427 = vrot.lane.b32.xlu0 %v1109, 80
    %v1428 = vpop.permute.xlu0 %1427
    %1429 = vrot.lane.b32.xlu0 %v1107, 80
    %v1430 = vpop.permute.xlu0 %1429
    %1433 = vxpose.xlu0.b32.start [1/16] %v1428, 128
    %1434 = vxpose.xlu0.b32.cont [2/16] %v1430, 128
    %1435 = vxpose.xlu0.b32.cont [3/16] 0.0, 128
    %1436 = vxpose.xlu0.b32.cont [4/16] 0.0, 128
    %1437 = vxpose.xlu0.b32.cont [5/16] 0.0, 128
    %1438 = vxpose.xlu0.b32.cont [6/16] 0.0, 128
    %1439 = vxpose.xlu0.b32.cont [7/16] 0.0, 128
    %1440 = vxpose.xlu0.b32.cont [8/16] 0.0, 128
    %1441 = vxpose.xlu0.b32.cont [9/16] 0.0, 128
    %1442 = vxpose.xlu0.b32.cont [10/16] 0.0, 128
    %1443 = vxpose.xlu0.b32.cont [11/16] 0.0, 128
    %1444 = vxpose.xlu0.b32.cont [12/16] 0.0, 128
    %1445 = vxpose.xlu0.b32.cont [13/16] 0.0, 128
    %1446 = vxpose.xlu0.b32.cont [14/16] 0.0, 128
    %1447 = vxpose.xlu0.b32.cont [15/16] 0.0, 128
    %1448 = vxpose.xlu0.b32.end [16/16] 0.0, 128
    %v1449 = vpop.trf.xlu0
    %v1450 = vpop.trf.xlu0
    %v1451 = vpop.trf.xlu0
    %v1452 = vpop.trf.xlu0
    %v1453 = vpop.trf.xlu0
    %v1454 = vpop.trf.xlu0
    %v1455 = vpop.trf.xlu0
    %v1456 = vpop.trf.xlu0
    %v1457 = vpop.trf.xlu0
    %v1458 = vpop.trf.xlu0
    %v1459 = vpop.trf.xlu0
    %v1460 = vpop.trf.xlu0
    %v1461 = vpop.trf.xlu0
    %v1462 = vpop.trf.xlu0
    %v1463 = vpop.trf.xlu0
    %v1464 = vpop.trf.xlu0
    %v1465 = vpack.c.bf16 %v1450, %v1449
    %1466 = vrot.lane.b32.xlu0 %v1114, 80
    %v1467 = vpop.permute.xlu0 %1466
    %v1469 = vsel %vm677, %v1467, 0
    %1471 = vmatpush.bf16.msra.mxu0 0
    %1472 = vmatpush.bf16.msra.mxu0 0
    %1473 = vmatpush.bf16.msra.mxu0 0
    %1474 = vmatpush.bf16.msra.mxu0 0
    %1475 = vmatpush.bf16.msra.mxu0 0
    %1476 = vmatpush.bf16.msra.mxu0 0
    %1477 = vmatpush.bf16.msra.mxu0 0
    %1478 = vmatpush.bf16.msra.mxu0 %v1465
    %1479 = vmatmul.bf16.gmra.mxu0 %v1469
    %v1480 = vpop.f32.mrf.mxu0
    %v1481 = vadd.f32 0.0, %v1480
    %v1482 = vpop.f32.mrf.mxu0
    %v1483 = vadd.f32 0.0, %v1482
    %1484 = vdwg.mxu0
    %v1485 = vmul.f32 %v1481, 0.25
    %v1486 = vmul.f32 %v1483, 0.25
    %v1487 = vsel %vm1168, %v1485, -inf
    %1488 = vmax.xlane.f32.xlu0 %v1487
    %v1489 = vpop.xlane.xlu0 %1488
    %v1490 = vsel %vm1172, %v1486, -inf
    %1491 = vmax.xlane.f32.xlu0 %v1490
    %v1492 = vpop.xlane.xlu0 %1491
    %v1493 = vsub.f32 %v1485, %v1489
    %v1494 = vsub.f32 %v1486, %v1492
    %v1495 = vmul.f32 %v1493, 1.442695
    %v1496 = vpow.pop %v1495
    %v1497 = vmul.f32 %v1494, 1.442695
    %v1498 = vpow.pop %v1497
    %v1499 = vsel %vm1168, %v1496, 0.0
    %1500 = vadd.xlane.f32.xlu0 %v1499
    %v1501 = vpop.xlane.xlu0 %1500
    %v1502 = vsel %vm1172, %v1498, 0.0
    %1503 = vadd.xlane.f32.xlu0 %v1502
    %v1504 = vpop.xlane.xlu0 %1503
    %v1505 = vrcp.pop %v1501
    %v1506 = vrcp.pop %v1504
    %v1507 = vmul.f32 %v1496, %v1505
    %v1508 = vmul.f32 %v1498, %v1506
    %v1509 = vpack.c.bf16 %v1508, %v1507
    %1510 = vrot.lane.b32.xlu0 %v1148, 80
    %v1511 = vpop.permute.xlu0 %1510
    %v1513 = vsel %vm1168, %v1509, 0
    %v1516 = vsel %vm1196, %v1511, 0
    %1518 = vmatpush.bf16.msra.mxu0 0
    %1519 = vmatpush.bf16.msra.mxu0 0
    %1520 = vmatpush.bf16.msra.mxu0 0
    %1521 = vmatpush.bf16.msra.mxu0 0
    %1522 = vmatpush.bf16.msra.mxu0 0
    %1523 = vmatpush.bf16.msra.mxu0 0
    %1524 = vmatpush.bf16.msra.mxu0 0
    %1525 = vmatpush.bf16.msra.mxu0 %v1516
    %1526 = vmatmul.bf16.gmra.mxu0 %v1513
    %v1527 = vpop.f32.mrf.mxu0
    %v1528 = vadd.f32 0.0, %v1527
    %v1529 = vpop.f32.mrf.mxu0
    %v1530 = vadd.f32 0.0, %v1529
    %1531 = vdwg.mxu0
    %1534 = vrot.lane.b32.xlu0 %v1318, 16
    %v1535 = vpop.permute.xlu0 %1534
    %1536 = vrot.lane.b32.xlu0 %v1320, 16
    %v1537 = vpop.permute.xlu0 %1536
    %1542 = vrot.lane.b32.xlu0 %v1423, 32
    %v1543 = vpop.permute.xlu0 %1542
    %1544 = vrot.lane.b32.xlu0 %v1425, 32
    %v1545 = vpop.permute.xlu0 %1544
    %1550 = vrot.lane.b32.xlu0 %v1528, 48
    %v1551 = vpop.permute.xlu0 %1550
    %1552 = vrot.lane.b32.xlu0 %v1530, 48
    %v1553 = vpop.permute.xlu0 %1552
    %v1556 = vsel %vm677, %v1210, %v1535
    %v1557 = vsel %vm677, %v1212, %v1537
    %v1558 = vsel %vm776, %v1556, %v1543
    %v1559 = vsel %vm776, %v1557, %v1545
    %v1560 = vsel %vm778, %v1558, %v1551
    %v1561 = vsel %vm778, %v1559, %v1553
    %v1562 = vpack.c.bf16 %v1561, %v1560
    %v1563 = vld [vmem:[%s35] sm:$0xf]
    %v1564 = vld [vmem:[%s35 + $0x4] sm:$0xf]
    %v1565 = vld [vmem:[%s35 + $0x8] sm:$0xf]
    %v1566 = vld [vmem:[%s35 + $0xc] sm:$0xf]
    %v1567 = vld [vmem:[%s35 + $0x10] sm:$0xf]
    %v1568 = vld [vmem:[%s35 + $0x14] sm:$0xf]
    %v1569 = vld [vmem:[%s35 + $0x18] sm:$0xf]
    %v1570 = vld [vmem:[%s35 + $0x1c] sm:$0xf]
    %v1571 = vld [vmem:[%s37] sm:$0x1]
    %v1573 = vperm.slane %v1571, 0
    %v1576 = vrot.slane %v1562, 2
    %v1585 = vunpack.c.l.b16 %v1563
    %v1586 = vunpack.c.l.b16 %v1564
    %v1587 = vunpack.c.l.b16 %v1565
    %v1588 = vunpack.c.l.b16 %v1566
    %v1589 = vunpack.c.l.b16 %v1567
    %v1590 = vunpack.c.l.b16 %v1568
    %v1591 = vunpack.c.l.b16 %v1569
    %v1592 = vunpack.c.l.b16 %v1570
    %v1593 = vpack.c.b16 %v1586, %v1585
    %v1594 = vpack.c.b16 %v1588, %v1587
    %v1595 = vpack.c.b16 %v1590, %v1589
    %v1596 = vpack.c.b16 %v1592, %v1591
    %v1602 = vsel %vm254, %v1576, 0
    %1604 = vmatpush.bf16.msra.mxu0 0
    %1605 = vmatpush.bf16.msra.mxu0 0
    %1606 = vmatpush.bf16.msra.mxu0 0
    %1607 = vmatpush.bf16.msra.mxu0 0
    %1608 = vmatpush.bf16.msra.mxu0 %v1596
    %1609 = vmatpush.bf16.msra.mxu0 %v1595
    %1610 = vmatpush.bf16.msra.mxu0 %v1594
    %1611 = vmatpush.bf16.msra.mxu0 %v1593
    %1612 = vmatmul.bf16.gmra.mxu0 %v1602
    %v1613 = vpop.f32.mrf.mxu0
    %v1614 = vadd.f32 %v1573, %v1613
    %v1615 = vpop.f32.mrf.mxu0
    %1616 = vdwg.mxu0
    %v1617 = vperm.slane %v281, 0
    %v1618 = vmul.f32 %v1617, %v1614
    %v1619 = vadd.f32 %v138, %v1618
    %v1620 = vadd.f32 %v294, 1.0
    %v1621 = vsel %vm254, %v1619, 0.0
    %1622 = vadd.xlane.f32.xlu0 %v1621
    %v1623 = vpop.xlane.xlu0 %1622
    %v1624 = vmul.f32 %v1623, %v434
    %v1625 = vsub.f32 %v1619, %v1624
    %v1626 = vmul.f32 %v1625, %v1625
    %v1627 = vsel %vm254, %v1626, 0.0
    %1628 = vadd.xlane.f32.xlu0 %v1627
    %v1629 = vpop.xlane.xlu0 %1628
    %v1630 = vmul.f32 %v1629, %v434
    %v1631 = vadd.f32 %v1630, 1e-06
    %v1632 = vrsqrt.pop %v1631
    %v1633 = vmul.f32 %v1632, %v1631
    %v1634 = vmul.f32 %v1633, %v1632
    %v1635 = vmul.f32 0.5, %v1634
    %v1636 = vsub.f32 1.5, %v1635
    %v1637 = vmul.f32 %v1632, %v1636
    %vm1638 = vweird.f32 %v1631
    %vm1639 = vweird.f32 %v1632
    %vm1640 = vmor %vm1638, %vm1639
    %v1641 = vsel %vm1640, %v1632, %v1637
    %v1642 = vmul.f32 %v1625, %v1641
    %v1643 = vperm.slane %v1620, 0
    %v1644 = vmul.f32 %v1643, %v1642
    %1646 = vrot.lane.b32.xlu0 %v1617, 64
    %v1647 = vpop.permute.xlu0 %1646
    %v1649 = vadd.f32 %v1644, %v1647
    %v1650 = vpack.c.bf16 %v1649, %v1649
    %v1651 = vld [vmem:[%s43] sm:$0xff]
    %v1652 = vld [vmem:[%s43 + $0x8] sm:$0xff]
    %v1653 = vld [vmem:[%s43 + $0x10] sm:$0xff]
    %v1654 = vld [vmem:[%s43 + $0x18] sm:$0xff]
    %v1655 = vld [vmem:[%s43 + $0x20] sm:$0xff]
    %v1656 = vld [vmem:[%s43 + $0x28] sm:$0xff]
    %v1657 = vld [vmem:[%s43 + $0x30] sm:$0xff]
    %v1658 = vld [vmem:[%s43 + $0x38] sm:$0xff]
    %v1659 = vld [vmem:[%s45] sm:$0x3]
    %v1661 = vperm.slane %v1659, 0
    %v1662 = vperm.slane %v1659, 1
    %v1673 = vunpack.c.l.b16 %v1651
    %v1674 = vunpack.c.h.b16 %v1651
    %v1675 = vunpack.c.l.b16 %v1652
    %v1676 = vunpack.c.h.b16 %v1652
    %v1677 = vunpack.c.l.b16 %v1653
    %v1678 = vunpack.c.h.b16 %v1653
    %v1679 = vunpack.c.l.b16 %v1654
    %v1680 = vunpack.c.h.b16 %v1654
    %v1681 = vunpack.c.l.b16 %v1655
    %v1682 = vunpack.c.h.b16 %v1655
    %v1683 = vunpack.c.l.b16 %v1656
    %v1684 = vunpack.c.h.b16 %v1656
    %v1685 = vunpack.c.l.b16 %v1657
    %v1686 = vunpack.c.h.b16 %v1657
    %v1687 = vunpack.c.l.b16 %v1658
    %v1688 = vunpack.c.h.b16 %v1658
    %v1689 = vpack.c.b16 %v1675, %v1673
    %v1690 = vpack.c.b16 %v1676, %v1674
    %v1691 = vpack.c.b16 %v1679, %v1677
    %v1692 = vpack.c.b16 %v1680, %v1678
    %v1693 = vpack.c.b16 %v1683, %v1681
    %v1694 = vpack.c.b16 %v1684, %v1682
    %v1695 = vpack.c.b16 %v1687, %v1685
    %v1696 = vpack.c.b16 %v1688, %v1686
    %v1706 = vsel %vm254, %v1650, 0
    %1708 = vmatpush.bf16.msra.mxu0 0
    %1709 = vmatpush.bf16.msra.mxu0 0
    %1710 = vmatpush.bf16.msra.mxu0 0
    %1711 = vmatpush.bf16.msra.mxu0 0
    %1712 = vmatpush.bf16.msra.mxu0 %v1695
    %1713 = vmatpush.bf16.msra.mxu0 %v1693
    %1714 = vmatpush.bf16.msra.mxu0 %v1691
    %1715 = vmatpush.bf16.msra.mxu0 %v1689
    %1716 = vmatmul.bf16.gmra.mxu0 %v1706
    %v1717 = vpop.f32.mrf.mxu0
    %v1718 = vadd.f32 %v1661, %v1717
    %v1719 = vpop.f32.mrf.mxu0
    %1720 = vdwg.mxu0
    %1721 = vmatpush.bf16.msra.mxu0 0
    %1722 = vmatpush.bf16.msra.mxu0 0
    %1723 = vmatpush.bf16.msra.mxu0 0
    %1724 = vmatpush.bf16.msra.mxu0 0
    %1725 = vmatpush.bf16.msra.mxu0 %v1696
    %1726 = vmatpush.bf16.msra.mxu0 %v1694
    %1727 = vmatpush.bf16.msra.mxu0 %v1692
    %1728 = vmatpush.bf16.msra.mxu0 %v1690
    %1729 = vmatmul.bf16.gmra.mxu0 %v1706
    %v1730 = vpop.f32.mrf.mxu0
    %v1731 = vadd.f32 %v1662, %v1730
    %v1732 = vpop.f32.mrf.mxu0
    %1733 = vdwg.mxu0
    %v1734 = vmul.f32 %v1718, 0.5
    %v1735 = vmul.f32 %v1731, 0.5
    %v1736 = vmul.f32 %v1718, 0.044715
    %v1737 = vmul.f32 %v1731, 0.044715
    %v1738 = vmul.f32 %v1736, %v1718
    %v1739 = vmul.f32 %v1737, %v1731
    %v1740 = vmul.f32 %v1738, %v1718
    %v1741 = vmul.f32 %v1739, %v1731
    %v1742 = vadd.f32 %v1718, %v1740
    %v1743 = vadd.f32 %v1731, %v1741
    %v1744 = vmul.f32 %v1742, 0.7978846
    %v1745 = vmul.f32 %v1743, 0.7978846
    %v1746 = vtanh.pop %v1744
    %v1747 = vtanh.pop %v1745
    %v1748 = vadd.f32 %v1746, 1.0
    %v1749 = vadd.f32 %v1747, 1.0
    %v1750 = vmul.f32 %v1734, %v1748
    %v1751 = vmul.f32 %v1735, %v1749
    %v1752 = vpack.c.bf16 %v1750, %v1750
    %v1753 = vpack.c.bf16 %v1751, %v1751
    %v1754 = vld [vmem:[%s47] sm:$0xf]
    %v1755 = vld [vmem:[%s47 + $0x4] sm:$0xf]
    %v1756 = vld [vmem:[%s47 + $0x8] sm:$0xf]
    %v1757 = vld [vmem:[%s47 + $0xc] sm:$0xf]
    %v1758 = vld [vmem:[%s47 + $0x10] sm:$0xf]
    %v1759 = vld [vmem:[%s47 + $0x14] sm:$0xf]
    %v1760 = vld [vmem:[%s47 + $0x18] sm:$0xf]
    %v1761 = vld [vmem:[%s47 + $0x1c] sm:$0xf]
    %v1762 = vld [vmem:[%s47 + $0x20] sm:$0xf]
    %v1763 = vld [vmem:[%s47 + $0x24] sm:$0xf]
    %v1764 = vld [vmem:[%s47 + $0x28] sm:$0xf]
    %v1765 = vld [vmem:[%s47 + $0x2c] sm:$0xf]
    %v1766 = vld [vmem:[%s47 + $0x30] sm:$0xf]
    %v1767 = vld [vmem:[%s47 + $0x34] sm:$0xf]
    %v1768 = vld [vmem:[%s47 + $0x38] sm:$0xf]
    %v1769 = vld [vmem:[%s47 + $0x3c] sm:$0xf]
    %v1770 = vld [vmem:[%s47 + $0x40] sm:$0xf]
    %v1771 = vld [vmem:[%s47 + $0x44] sm:$0xf]
    %v1772 = vld [vmem:[%s47 + $0x48] sm:$0xf]
    %v1773 = vld [vmem:[%s47 + $0x4c] sm:$0xf]
    %v1774 = vld [vmem:[%s47 + $0x50] sm:$0xf]
    %v1775 = vld [vmem:[%s47 + $0x54] sm:$0xf]
    %v1776 = vld [vmem:[%s47 + $0x58] sm:$0xf]
    %v1777 = vld [vmem:[%s47 + $0x5c] sm:$0xf]
    %v1778 = vld [vmem:[%s47 + $0x60] sm:$0xf]
    %v1779 = vld [vmem:[%s47 + $0x64] sm:$0xf]
    %v1780 = vld [vmem:[%s47 + $0x68] sm:$0xf]
    %v1781 = vld [vmem:[%s47 + $0x6c] sm:$0xf]
    %v1782 = vld [vmem:[%s47 + $0x70] sm:$0xf]
    %v1783 = vld [vmem:[%s47 + $0x74] sm:$0xf]
    %v1784 = vld [vmem:[%s47 + $0x78] sm:$0xf]
    %v1785 = vld [vmem:[%s47 + $0x7c] sm:$0xf]
    %v1786 = vld [vmem:[%s49] sm:$0x1]
    %v1788 = vperm.slane %v1786, 0
    %v1822 = vunpack.c.l.b16 %v1754
    %v1823 = vunpack.c.l.b16 %v1755
    %v1824 = vunpack.c.l.b16 %v1756
    %v1825 = vunpack.c.l.b16 %v1757
    %v1826 = vunpack.c.l.b16 %v1758
    %v1827 = vunpack.c.l.b16 %v1759
    %v1828 = vunpack.c.l.b16 %v1760
    %v1829 = vunpack.c.l.b16 %v1761
    %v1830 = vunpack.c.l.b16 %v1762
    %v1831 = vunpack.c.l.b16 %v1763
    %v1832 = vunpack.c.l.b16 %v1764
    %v1833 = vunpack.c.l.b16 %v1765
    %v1834 = vunpack.c.l.b16 %v1766
    %v1835 = vunpack.c.l.b16 %v1767
    %v1836 = vunpack.c.l.b16 %v1768
    %v1837 = vunpack.c.l.b16 %v1769
    %v1838 = vunpack.c.l.b16 %v1770
    %v1839 = vunpack.c.l.b16 %v1771
    %v1840 = vunpack.c.l.b16 %v1772
    %v1841 = vunpack.c.l.b16 %v1773
    %v1842 = vunpack.c.l.b16 %v1774
    %v1843 = vunpack.c.l.b16 %v1775
    %v1844 = vunpack.c.l.b16 %v1776
    %v1845 = vunpack.c.l.b16 %v1777
    %v1846 = vunpack.c.l.b16 %v1778
    %v1847 = vunpack.c.l.b16 %v1779
    %v1848 = vunpack.c.l.b16 %v1780
    %v1849 = vunpack.c.l.b16 %v1781
    %v1850 = vunpack.c.l.b16 %v1782
    %v1851 = vunpack.c.l.b16 %v1783
    %v1852 = vunpack.c.l.b16 %v1784
    %v1853 = vunpack.c.l.b16 %v1785
    %v1854 = vpack.c.b16 %v1823, %v1822
    %v1855 = vpack.c.b16 %v1825, %v1824
    %v1856 = vpack.c.b16 %v1827, %v1826
    %v1857 = vpack.c.b16 %v1829, %v1828
    %v1858 = vpack.c.b16 %v1831, %v1830
    %v1859 = vpack.c.b16 %v1833, %v1832
    %v1860 = vpack.c.b16 %v1835, %v1834
    %v1861 = vpack.c.b16 %v1837, %v1836
    %v1862 = vpack.c.b16 %v1839, %v1838
    %v1863 = vpack.c.b16 %v1841, %v1840
    %v1864 = vpack.c.b16 %v1843, %v1842
    %v1865 = vpack.c.b16 %v1845, %v1844
    %v1866 = vpack.c.b16 %v1847, %v1846
    %v1867 = vpack.c.b16 %v1849, %v1848
    %v1868 = vpack.c.b16 %v1851, %v1850
    %v1869 = vpack.c.b16 %v1853, %v1852
    %1886 = vmatpush.bf16.msra.mxu0 %v1861
    %1887 = vmatpush.bf16.msra.mxu0 %v1860
    %1888 = vmatpush.bf16.msra.mxu0 %v1859
    %1889 = vmatpush.bf16.msra.mxu0 %v1858
    %1890 = vmatpush.bf16.msra.mxu0 %v1857
    %1891 = vmatpush.bf16.msra.mxu0 %v1856
    %1892 = vmatpush.bf16.msra.mxu0 %v1855
    %1893 = vmatpush.bf16.msra.mxu0 %v1854
    %1894 = vmatmul.bf16.gmra.mxu0 %v1752
    %v1895 = vpop.f32.mrf.mxu0
    %v1896 = vadd.f32 %v1788, %v1895
    %v1897 = vpop.f32.mrf.mxu0
    %1898 = vdwg.mxu0
    %1899 = vmatpush.bf16.msra.mxu0 %v1869
    %1900 = vmatpush.bf16.msra.mxu0 %v1868
    %1901 = vmatpush.bf16.msra.mxu0 %v1867
    %1902 = vmatpush.bf16.msra.mxu0 %v1866
    %1903 = vmatpush.bf16.msra.mxu0 %v1865
    %1904 = vmatpush.bf16.msra.mxu0 %v1864
    %1905 = vmatpush.bf16.msra.mxu0 %v1863
    %1906 = vmatpush.bf16.msra.mxu0 %v1862
    %1907 = vmatmul.bf16.gmra.mxu0 %v1753
    %v1908 = vpop.f32.mrf.mxu0
    %v1909 = vadd.f32 %v1896, %v1908
    %v1910 = vpop.f32.mrf.mxu0
    %1911 = vdwg.mxu0
    %v1912 = vperm.slane %v294, 0
    %1914 = vrot.lane.b32.xlu0 %v1909, 64
    %v1915 = vpop.permute.xlu0 %1914
    %v1917 = vmul.f32 %v1912, %v1915
    %1919 = vrot.lane.b32.xlu0 %v1917, 64
    %v1920 = vpop.permute.xlu0 %1919
    %v1922 = vadd.f32 %v1619, %v1920
    %1923 = vst.msk [vmem:[#allocation2] sm:$0xff] %vm254, %v1922
    %v1924 = vpack.c.bf16 %v1560, %v1560
    %v1925 = vld [vmem:[%s39] sm:$0xf]
    %v1926 = vld [vmem:[%s39 + $0x4] sm:$0xf]
    %v1927 = vld [vmem:[%s39 + $0x8] sm:$0xf]
    %v1928 = vld [vmem:[%s39 + $0xc] sm:$0xf]
    %v1929 = vld [vmem:[%s39 + $0x10] sm:$0xf]
    %v1930 = vld [vmem:[%s39 + $0x14] sm:$0xf]
    %v1931 = vld [vmem:[%s39 + $0x18] sm:$0xf]
    %v1932 = vld [vmem:[%s39 + $0x1c] sm:$0xf]
    %v1933 = vld [vmem:[%s41] sm:$0x1]
    %v1935 = vperm.slane %v1933, 0
    %v1945 = vunpack.c.l.b16 %v1925
    %v1946 = vunpack.c.l.b16 %v1926
    %v1947 = vunpack.c.l.b16 %v1927
    %v1948 = vunpack.c.l.b16 %v1928
    %v1949 = vunpack.c.l.b16 %v1929
    %v1950 = vunpack.c.l.b16 %v1930
    %v1951 = vunpack.c.l.b16 %v1931
    %v1952 = vunpack.c.l.b16 %v1932
    %v1953 = vpack.c.b16 %v1946, %v1945
    %v1954 = vpack.c.b16 %v1948, %v1947
    %v1955 = vpack.c.b16 %v1950, %v1949
    %v1956 = vpack.c.b16 %v1952, %v1951
    %v1962 = vsel %vm254, %v1924, 0
    %1964 = vmatpush.bf16.msra.mxu0 0
    %1965 = vmatpush.bf16.msra.mxu0 0
    %1966 = vmatpush.bf16.msra.mxu0 0
    %1967 = vmatpush.bf16.msra.mxu0 0
    %1968 = vmatpush.bf16.msra.mxu0 %v1956
    %1969 = vmatpush.bf16.msra.mxu0 %v1955
    %1970 = vmatpush.bf16.msra.mxu0 %v1954
    %1971 = vmatpush.bf16.msra.mxu0 %v1953
    %1972 = vmatmul.bf16.gmra.mxu0 %v1962
    %v1973 = vpop.f32.mrf.mxu0
    %v1974 = vadd.f32 %v1935, %v1973
    %v1975 = vpop.f32.mrf.mxu0
    %1976 = vdwg.mxu0
    %v1977 = vperm.slane %v408, 0
    %v1978 = vmul.f32 %v1977, %v1974
    %v1979 = vadd.f32 %v143, %v1978
    %v1980 = vadd.f32 %v421, 1.0
    %v1981 = vsel %vm554, %v1979, 0.0
    %1982 = vadd.xlane.f32.xlu0 %v1981
    %v1983 = vpop.xlane.xlu0 %1982
    %v1984 = vmul.f32 %v1983, %v434
    %v1985 = vsub.f32 %v1979, %v1984
    %v1986 = vmul.f32 %v1985, %v1985
    %v1987 = vsel %vm554, %v1986, 0.0
    %1988 = vadd.xlane.f32.xlu0 %v1987
    %v1989 = vpop.xlane.xlu0 %1988
    %v1990 = vmul.f32 %v1989, %v434
    %v1991 = vadd.f32 %v1990, 1e-06
    %v1992 = vrsqrt.pop %v1991
    %v1993 = vmul.f32 %v1992, %v1991
    %v1994 = vmul.f32 %v1993, %v1992
    %v1995 = vmul.f32 0.5, %v1994
    %v1996 = vsub.f32 1.5, %v1995
    %v1997 = vmul.f32 %v1992, %v1996
    %vm1998 = vweird.f32 %v1991
    %vm1999 = vweird.f32 %v1992
    %vm2000 = vmor %vm1998, %vm1999
    %v2001 = vsel %vm2000, %v1992, %v1997
    %v2002 = vmul.f32 %v1985, %v2001
    %v2003 = vperm.slane %v1980, 0
    %v2004 = vmul.f32 %v2003, %v2002
    %2006 = vrot.lane.b32.xlu0 %v1977, 64
    %v2007 = vpop.permute.xlu0 %2006
    %v2009 = vadd.f32 %v2004, %v2007
    %v2010 = vpack.c.bf16 %v2009, %v2009
    %v2011 = vld [vmem:[%s51] sm:$0xff]
    %v2012 = vld [vmem:[%s51 + $0x8] sm:$0xff]
    %v2013 = vld [vmem:[%s51 + $0x10] sm:$0xff]
    %v2014 = vld [vmem:[%s51 + $0x18] sm:$0xff]
    %v2015 = vld [vmem:[%s51 + $0x20] sm:$0xff]
    %v2016 = vld [vmem:[%s51 + $0x28] sm:$0xff]
    %v2017 = vld [vmem:[%s51 + $0x30] sm:$0xff]
    %v2018 = vld [vmem:[%s51 + $0x38] sm:$0xff]
    %v2019 = vld [vmem:[%s53] sm:$0x3]
    %v2021 = vperm.slane %v2019, 0
    %v2022 = vperm.slane %v2019, 1
    %v2033 = vunpack.c.l.b16 %v2011
    %v2034 = vunpack.c.h.b16 %v2011
    %v2035 = vunpack.c.l.b16 %v2012
    %v2036 = vunpack.c.h.b16 %v2012
    %v2037 = vunpack.c.l.b16 %v2013
    %v2038 = vunpack.c.h.b16 %v2013
    %v2039 = vunpack.c.l.b16 %v2014
    %v2040 = vunpack.c.h.b16 %v2014
    %v2041 = vunpack.c.l.b16 %v2015
    %v2042 = vunpack.c.h.b16 %v2015
    %v2043 = vunpack.c.l.b16 %v2016
    %v2044 = vunpack.c.h.b16 %v2016
    %v2045 = vunpack.c.l.b16 %v2017
    %v2046 = vunpack.c.h.b16 %v2017
    %v2047 = vunpack.c.l.b16 %v2018
    %v2048 = vunpack.c.h.b16 %v2018
    %v2049 = vpack.c.b16 %v2035, %v2033
    %v2050 = vpack.c.b16 %v2036, %v2034
    %v2051 = vpack.c.b16 %v2039, %v2037
    %v2052 = vpack.c.b16 %v2040, %v2038
    %v2053 = vpack.c.b16 %v2043, %v2041
    %v2054 = vpack.c.b16 %v2044, %v2042
    %v2055 = vpack.c.b16 %v2047, %v2045
    %v2056 = vpack.c.b16 %v2048, %v2046
    %v2066 = vsel %vm254, %v2010, 0
    %2068 = vmatpush.bf16.msra.mxu0 0
    %2069 = vmatpush.bf16.msra.mxu0 0
    %2070 = vmatpush.bf16.msra.mxu0 0
    %2071 = vmatpush.bf16.msra.mxu0 0
    %2072 = vmatpush.bf16.msra.mxu0 %v2055
    %2073 = vmatpush.bf16.msra.mxu0 %v2053
    %2074 = vmatpush.bf16.msra.mxu0 %v2051
    %2075 = vmatpush.bf16.msra.mxu0 %v2049
    %2076 = vmatmul.bf16.gmra.mxu0 %v2066
    %v2077 = vpop.f32.mrf.mxu0
    %v2078 = vadd.f32 %v2021, %v2077
    %v2079 = vpop.f32.mrf.mxu0
    %2080 = vdwg.mxu0
    %2081 = vmatpush.bf16.msra.mxu0 0
    %2082 = vmatpush.bf16.msra.mxu0 0
    %2083 = vmatpush.bf16.msra.mxu0 0
    %2084 = vmatpush.bf16.msra.mxu0 0
    %2085 = vmatpush.bf16.msra.mxu0 %v2056
    %2086 = vmatpush.bf16.msra.mxu0 %v2054
    %2087 = vmatpush.bf16.msra.mxu0 %v2052
    %2088 = vmatpush.bf16.msra.mxu0 %v2050
    %2089 = vmatmul.bf16.gmra.mxu0 %v2066
    %v2090 = vpop.f32.mrf.mxu0
    %v2091 = vadd.f32 %v2022, %v2090
    %v2092 = vpop.f32.mrf.mxu0
    %2093 = vdwg.mxu0
    %v2094 = vmul.f32 %v2078, 0.5
    %v2095 = vmul.f32 %v2091, 0.5
    %v2096 = vmul.f32 %v2078, 0.044715
    %v2097 = vmul.f32 %v2091, 0.044715
    %v2098 = vmul.f32 %v2096, %v2078
    %v2099 = vmul.f32 %v2097, %v2091
    %v2100 = vmul.f32 %v2098, %v2078
    %v2101 = vmul.f32 %v2099, %v2091
    %v2102 = vadd.f32 %v2078, %v2100
    %v2103 = vadd.f32 %v2091, %v2101
    %v2104 = vmul.f32 %v2102, 0.7978846
    %v2105 = vmul.f32 %v2103, 0.7978846
    %v2106 = vtanh.pop %v2104
    %v2107 = vtanh.pop %v2105
    %v2108 = vadd.f32 %v2106, 1.0
    %v2109 = vadd.f32 %v2107, 1.0
    %v2110 = vmul.f32 %v2094, %v2108
    %v2111 = vmul.f32 %v2095, %v2109
    %v2112 = vpack.c.bf16 %v2110, %v2110
    %v2113 = vpack.c.bf16 %v2111, %v2111
    %v2114 = vld [vmem:[%s55] sm:$0xf]
    %v2115 = vld [vmem:[%s55 + $0x4] sm:$0xf]
    %v2116 = vld [vmem:[%s55 + $0x8] sm:$0xf]
    %v2117 = vld [vmem:[%s55 + $0xc] sm:$0xf]
    %v2118 = vld [vmem:[%s55 + $0x10] sm:$0xf]
    %v2119 = vld [vmem:[%s55 + $0x14] sm:$0xf]
    %v2120 = vld [vmem:[%s55 + $0x18] sm:$0xf]
    %v2121 = vld [vmem:[%s55 + $0x1c] sm:$0xf]
    %v2122 = vld [vmem:[%s55 + $0x20] sm:$0xf]
    %v2123 = vld [vmem:[%s55 + $0x24] sm:$0xf]
    %v2124 = vld [vmem:[%s55 + $0x28] sm:$0xf]
    %v2125 = vld [vmem:[%s55 + $0x2c] sm:$0xf]
    %v2126 = vld [vmem:[%s55 + $0x30] sm:$0xf]
    %v2127 = vld [vmem:[%s55 + $0x34] sm:$0xf]
    %v2128 = vld [vmem:[%s55 + $0x38] sm:$0xf]
    %v2129 = vld [vmem:[%s55 + $0x3c] sm:$0xf]
    %v2130 = vld [vmem:[%s55 + $0x40] sm:$0xf]
    %v2131 = vld [vmem:[%s55 + $0x44] sm:$0xf]
    %v2132 = vld [vmem:[%s55 + $0x48] sm:$0xf]
    %v2133 = vld [vmem:[%s55 + $0x4c] sm:$0xf]
    %v2134 = vld [vmem:[%s55 + $0x50] sm:$0xf]
    %v2135 = vld [vmem:[%s55 + $0x54] sm:$0xf]
    %v2136 = vld [vmem:[%s55 + $0x58] sm:$0xf]
    %v2137 = vld [vmem:[%s55 + $0x5c] sm:$0xf]
    %v2138 = vld [vmem:[%s55 + $0x60] sm:$0xf]
    %v2139 = vld [vmem:[%s55 + $0x64] sm:$0xf]
    %v2140 = vld [vmem:[%s55 + $0x68] sm:$0xf]
    %v2141 = vld [vmem:[%s55 + $0x6c] sm:$0xf]
    %v2142 = vld [vmem:[%s55 + $0x70] sm:$0xf]
    %v2143 = vld [vmem:[%s55 + $0x74] sm:$0xf]
    %v2144 = vld [vmem:[%s55 + $0x78] sm:$0xf]
    %v2145 = vld [vmem:[%s55 + $0x7c] sm:$0xf]
    %v2146 = vld [vmem:[%s57] sm:$0x1]
    %v2148 = vperm.slane %v2146, 0
    %v2182 = vunpack.c.l.b16 %v2114
    %v2183 = vunpack.c.l.b16 %v2115
    %v2184 = vunpack.c.l.b16 %v2116
    %v2185 = vunpack.c.l.b16 %v2117
    %v2186 = vunpack.c.l.b16 %v2118
    %v2187 = vunpack.c.l.b16 %v2119
    %v2188 = vunpack.c.l.b16 %v2120
    %v2189 = vunpack.c.l.b16 %v2121
    %v2190 = vunpack.c.l.b16 %v2122
    %v2191 = vunpack.c.l.b16 %v2123
    %v2192 = vunpack.c.l.b16 %v2124
    %v2193 = vunpack.c.l.b16 %v2125
    %v2194 = vunpack.c.l.b16 %v2126
    %v2195 = vunpack.c.l.b16 %v2127
    %v2196 = vunpack.c.l.b16 %v2128
    %v2197 = vunpack.c.l.b16 %v2129
    %v2198 = vunpack.c.l.b16 %v2130
    %v2199 = vunpack.c.l.b16 %v2131
    %v2200 = vunpack.c.l.b16 %v2132
    %v2201 = vunpack.c.l.b16 %v2133
    %v2202 = vunpack.c.l.b16 %v2134
    %v2203 = vunpack.c.l.b16 %v2135
    %v2204 = vunpack.c.l.b16 %v2136
    %v2205 = vunpack.c.l.b16 %v2137
    %v2206 = vunpack.c.l.b16 %v2138
    %v2207 = vunpack.c.l.b16 %v2139
    %v2208 = vunpack.c.l.b16 %v2140
    %v2209 = vunpack.c.l.b16 %v2141
    %v2210 = vunpack.c.l.b16 %v2142
    %v2211 = vunpack.c.l.b16 %v2143
    %v2212 = vunpack.c.l.b16 %v2144
    %v2213 = vunpack.c.l.b16 %v2145
    %v2214 = vpack.c.b16 %v2183, %v2182
    %v2215 = vpack.c.b16 %v2185, %v2184
    %v2216 = vpack.c.b16 %v2187, %v2186
    %v2217 = vpack.c.b16 %v2189, %v2188
    %v2218 = vpack.c.b16 %v2191, %v2190
    %v2219 = vpack.c.b16 %v2193, %v2192
    %v2220 = vpack.c.b16 %v2195, %v2194
    %v2221 = vpack.c.b16 %v2197, %v2196
    %v2222 = vpack.c.b16 %v2199, %v2198
    %v2223 = vpack.c.b16 %v2201, %v2200
    %v2224 = vpack.c.b16 %v2203, %v2202
    %v2225 = vpack.c.b16 %v2205, %v2204
    %v2226 = vpack.c.b16 %v2207, %v2206
    %v2227 = vpack.c.b16 %v2209, %v2208
    %v2228 = vpack.c.b16 %v2211, %v2210
    %v2229 = vpack.c.b16 %v2213, %v2212
    %2246 = vmatpush.bf16.msra.mxu0 %v2221
    %2247 = vmatpush.bf16.msra.mxu0 %v2220
    %2248 = vmatpush.bf16.msra.mxu0 %v2219
    %2249 = vmatpush.bf16.msra.mxu0 %v2218
    %2250 = vmatpush.bf16.msra.mxu0 %v2217
    %2251 = vmatpush.bf16.msra.mxu0 %v2216
    %2252 = vmatpush.bf16.msra.mxu0 %v2215
    %2253 = vmatpush.bf16.msra.mxu0 %v2214
    %2254 = vmatmul.bf16.gmra.mxu0 %v2112
    %v2255 = vpop.f32.mrf.mxu0
    %v2256 = vadd.f32 %v2148, %v2255
    %v2257 = vpop.f32.mrf.mxu0
    %2258 = vdwg.mxu0
    %2259 = vmatpush.bf16.msra.mxu0 %v2229
    %2260 = vmatpush.bf16.msra.mxu0 %v2228
    %2261 = vmatpush.bf16.msra.mxu0 %v2227
    %2262 = vmatpush.bf16.msra.mxu0 %v2226
    %2263 = vmatpush.bf16.msra.mxu0 %v2225
    %2264 = vmatpush.bf16.msra.mxu0 %v2224
    %2265 = vmatpush.bf16.msra.mxu0 %v2223
    %2266 = vmatpush.bf16.msra.mxu0 %v2222
    %2267 = vmatmul.bf16.gmra.mxu0 %v2113
    %v2268 = vpop.f32.mrf.mxu0
    %v2269 = vadd.f32 %v2256, %v2268
    %v2270 = vpop.f32.mrf.mxu0
    %2271 = vdwg.mxu0
    %v2272 = vperm.slane %v421, 0
    %2274 = vrot.lane.b32.xlu0 %v2269, 64
    %v2275 = vpop.permute.xlu0 %2274
    %v2277 = vmul.f32 %v2272, %v2275
    %2279 = vrot.lane.b32.xlu0 %v2277, 64
    %v2280 = vpop.permute.xlu0 %2279
    %v2282 = vadd.f32 %v1979, %v2280
    %2283 = vst.msk [vmem:[#allocation4] sm:$0xf] %vm554, %v2282
    %s2284 = scalar_lea.vmem %s1, 8
    %v2285 = vld [vmem:[%s2284] sm:$0xff]
    %v2286 = vadd.f32 %v2285, %v136
    %s2287 = scalar_lea.vmem %s3, 4
    %v2288 = vld [vmem:[%s2287] sm:$0xf]
    %v2289 = vadd.f32 %v2288, %v141
    %v2290 = vld [vmem:[%s5 + $0x1] sm:$0x1]
    %v2291 = vsub.f32 0.0, %v2290
    %v2292 = vmul.f32 %v2291, 1.442695
    %v2293 = vpow.pop %v2292
    %v2294 = vadd.f32 %v2293, 1.0
    %v2295 = vrcp.pop %v2294
    %v2296 = vmul.f32 %v2294, %v2295
    %v2297 = vsub.f32 1.0, %v2296
    %v2298 = vmul.f32 %v2295, %v2297
    %v2299 = vadd.f32 %v2295, %v2298
    %vm2300 = vweird.f32 %v2294
    %vm2301 = vweird.f32 %v2295
    %vm2302 = vmor %vm2300, %vm2301
    %v2303 = vsel %vm2302, %v2295, %v2299
    %v2304 = vand.u32 2147483647, %v2294
    %vm2305 = vcmp.eq.f32.partialorder %v2304, 8.507059e+37
    %v2306 = vand.u32 %v2294, 2147483648
    %v2307 = vor.u32 1.1754944e-38, %v2306
    %v2308 = vsel %vm2305, %v2307, %v2303
    %v2309 = vmul.f32 1.0, %v2308
    %v2310 = vmul.f32 %v2290, %v2309
    %v2311 = vpack.c.bf16 %v2310, %v2310
    %v2312 = vld [vmem:[%s11] sm:$0xff]
    %v2313 = vld [vmem:[%s11 + $0x8] sm:$0xf]
    %v2314 = vld [vmem:[%s11 + $0xc] sm:$0xff]
    %v2315 = vld [vmem:[%s11 + $0x14] sm:$0xf]
    %v2316 = vld [vmem:[%s11 + $0x18] sm:$0xff]
    %v2317 = vld [vmem:[%s11 + $0x20] sm:$0xf]
    %v2318 = vld [vmem:[%s11 + $0x24] sm:$0xff]
    %v2319 = vld [vmem:[%s11 + $0x2c] sm:$0xf]
    %v2320 = vld [vmem:[%s11 + $0x30] sm:$0xff]
    %v2321 = vld [vmem:[%s11 + $0x38] sm:$0xf]
    %v2322 = vld [vmem:[%s11 + $0x3c] sm:$0xff]
    %v2323 = vld [vmem:[%s11 + $0x44] sm:$0xf]
    %v2324 = vld [vmem:[%s11 + $0x48] sm:$0xff]
    %v2325 = vld [vmem:[%s11 + $0x50] sm:$0xf]
    %v2326 = vld [vmem:[%s11 + $0x54] sm:$0xff]
    %v2327 = vld [vmem:[%s11 + $0x5c] sm:$0xf]
    %v2328 = vld [vmem:[%s13] sm:$0x7]
    %v2345 = vunpack.c.l.b16 %v2312
    %v2346 = vunpack.c.h.b16 %v2312
    %v2347 = vunpack.c.l.b16 %v2313
    %v2348 = vunpack.c.l.b16 %v2314
    %v2349 = vunpack.c.h.b16 %v2314
    %v2350 = vunpack.c.l.b16 %v2315
    %v2351 = vunpack.c.l.b16 %v2316
    %v2352 = vunpack.c.h.b16 %v2316
    %v2353 = vunpack.c.l.b16 %v2317
    %v2354 = vunpack.c.l.b16 %v2318
    %v2355 = vunpack.c.h.b16 %v2318
    %v2356 = vunpack.c.l.b16 %v2319
    %v2357 = vunpack.c.l.b16 %v2320
    %v2358 = vunpack.c.h.b16 %v2320
    %v2359 = vunpack.c.l.b16 %v2321
    %v2360 = vunpack.c.l.b16 %v2322
    %v2361 = vunpack.c.h.b16 %v2322
    %v2362 = vunpack.c.l.b16 %v2323
    %v2363 = vunpack.c.l.b16 %v2324
    %v2364 = vunpack.c.h.b16 %v2324
    %v2365 = vunpack.c.l.b16 %v2325
    %v2366 = vunpack.c.l.b16 %v2326
    %v2367 = vunpack.c.h.b16 %v2326
    %v2368 = vunpack.c.l.b16 %v2327
    %v2369 = vpack.c.b16 %v2348, %v2345
    %v2370 = vpack.c.b16 %v2349, %v2346
    %v2371 = vpack.c.b16 %v2350, %v2347
    %v2372 = vpack.c.b16 %v2354, %v2351
    %v2373 = vpack.c.b16 %v2355, %v2352
    %v2374 = vpack.c.b16 %v2356, %v2353
    %v2375 = vpack.c.b16 %v2360, %v2357
    %v2376 = vpack.c.b16 %v2361, %v2358
    %v2377 = vpack.c.b16 %v2362, %v2359
    %v2378 = vpack.c.b16 %v2366, %v2363
    %v2379 = vpack.c.b16 %v2367, %v2364
    %v2380 = vpack.c.b16 %v2368, %v2365
    %v2394 = vperm.slane %v2328, 0
    %v2395 = vperm.slane %v2328, 1
    %v2396 = vperm.slane %v2328, 2
    %v2401 = vsel %vm254, %v2311, 0
    %2403 = vmatpush.bf16.msra.mxu0 0
    %2404 = vmatpush.bf16.msra.mxu0 0
    %2405 = vmatpush.bf16.msra.mxu0 0
    %2406 = vmatpush.bf16.msra.mxu0 0
    %2407 = vmatpush.bf16.msra.mxu0 %v2378
    %2408 = vmatpush.bf16.msra.mxu0 %v2375
    %2409 = vmatpush.bf16.msra.mxu0 %v2372
    %2410 = vmatpush.bf16.msra.mxu0 %v2369
    %2411 = vmatmul.bf16.gmra.mxu0 %v2401
    %v2412 = vpop.f32.mrf.mxu0
    %v2413 = vadd.f32 %v2394, %v2412
    %v2414 = vpop.f32.mrf.mxu0
    %2415 = vdwg.mxu0
    %2416 = vmatpush.bf16.msra.mxu0 0
    %2417 = vmatpush.bf16.msra.mxu0 0
    %2418 = vmatpush.bf16.msra.mxu0 0
    %2419 = vmatpush.bf16.msra.mxu0 0
    %2420 = vmatpush.bf16.msra.mxu0 %v2379
    %2421 = vmatpush.bf16.msra.mxu0 %v2376
    %2422 = vmatpush.bf16.msra.mxu0 %v2373
    %2423 = vmatpush.bf16.msra.mxu0 %v2370
    %2424 = vmatmul.bf16.gmra.mxu0 %v2401
    %v2425 = vpop.f32.mrf.mxu0
    %v2426 = vadd.f32 %v2395, %v2425
    %v2427 = vpop.f32.mrf.mxu0
    %2428 = vdwg.mxu0
    %2429 = vmatpush.bf16.msra.mxu0 0
    %2430 = vmatpush.bf16.msra.mxu0 0
    %2431 = vmatpush.bf16.msra.mxu0 0
    %2432 = vmatpush.bf16.msra.mxu0 0
    %2433 = vmatpush.bf16.msra.mxu0 %v2380
    %2434 = vmatpush.bf16.msra.mxu0 %v2377
    %2435 = vmatpush.bf16.msra.mxu0 %v2374
    %2436 = vmatpush.bf16.msra.mxu0 %v2371
    %2437 = vmatmul.bf16.gmra.mxu0 %v2401
    %v2438 = vpop.f32.mrf.mxu0
    %v2439 = vadd.f32 %v2396, %v2438
    %v2440 = vpop.f32.mrf.mxu0
    %2441 = vdwg.mxu0
    %v2442 = vld [vmem:[%s15] sm:$0xff]
    %v2443 = vld [vmem:[%s15 + $0x8] sm:$0xf]
    %v2444 = vld [vmem:[%s15 + $0xc] sm:$0xff]
    %v2445 = vld [vmem:[%s15 + $0x14] sm:$0xf]
    %v2446 = vld [vmem:[%s15 + $0x18] sm:$0xff]
    %v2447 = vld [vmem:[%s15 + $0x20] sm:$0xf]
    %v2448 = vld [vmem:[%s15 + $0x24] sm:$0xff]
    %v2449 = vld [vmem:[%s15 + $0x2c] sm:$0xf]
    %v2450 = vld [vmem:[%s15 + $0x30] sm:$0xff]
    %v2451 = vld [vmem:[%s15 + $0x38] sm:$0xf]
    %v2452 = vld [vmem:[%s15 + $0x3c] sm:$0xff]
    %v2453 = vld [vmem:[%s15 + $0x44] sm:$0xf]
    %v2454 = vld [vmem:[%s15 + $0x48] sm:$0xff]
    %v2455 = vld [vmem:[%s15 + $0x50] sm:$0xf]
    %v2456 = vld [vmem:[%s15 + $0x54] sm:$0xff]
    %v2457 = vld [vmem:[%s15 + $0x5c] sm:$0xf]
    %v2458 = vld [vmem:[%s17] sm:$0x7]
    %v2475 = vunpack.c.l.b16 %v2442
    %v2476 = vunpack.c.h.b16 %v2442
    %v2477 = vunpack.c.l.b16 %v2443
    %v2478 = vunpack.c.l.b16 %v2444
    %v2479 = vunpack.c.h.b16 %v2444
    %v2480 = vunpack.c.l.b16 %v2445
    %v2481 = vunpack.c.l.b16 %v2446
    %v2482 = vunpack.c.h.b16 %v2446
    %v2483 = vunpack.c.l.b16 %v2447
    %v2484 = vunpack.c.l.b16 %v2448
    %v2485 = vunpack.c.h.b16 %v2448
    %v2486 = vunpack.c.l.b16 %v2449
    %v2487 = vunpack.c.l.b16 %v2450
    %v2488 = vunpack.c.h.b16 %v2450
    %v2489 = vunpack.c.l.b16 %v2451
    %v2490 = vunpack.c.l.b16 %v2452
    %v2491 = vunpack.c.h.b16 %v2452
    %v2492 = vunpack.c.l.b16 %v2453
    %v2493 = vunpack.c.l.b16 %v2454
    %v2494 = vunpack.c.h.b16 %v2454
    %v2495 = vunpack.c.l.b16 %v2455
    %v2496 = vunpack.c.l.b16 %v2456
    %v2497 = vunpack.c.h.b16 %v2456
    %v2498 = vunpack.c.l.b16 %v2457
    %v2499 = vpack.c.b16 %v2478, %v2475
    %v2500 = vpack.c.b16 %v2479, %v2476
    %v2501 = vpack.c.b16 %v2480, %v2477
    %v2502 = vpack.c.b16 %v2484, %v2481
    %v2503 = vpack.c.b16 %v2485, %v2482
    %v2504 = vpack.c.b16 %v2486, %v2483
    %v2505 = vpack.c.b16 %v2490, %v2487
    %v2506 = vpack.c.b16 %v2491, %v2488
    %v2507 = vpack.c.b16 %v2492, %v2489
    %v2508 = vpack.c.b16 %v2496, %v2493
    %v2509 = vpack.c.b16 %v2497, %v2494
    %v2510 = vpack.c.b16 %v2498, %v2495
    %v2524 = vperm.slane %v2458, 0
    %v2525 = vperm.slane %v2458, 1
    %v2526 = vperm.slane %v2458, 2
    %2530 = vmatpush.bf16.msra.mxu0 0
    %2531 = vmatpush.bf16.msra.mxu0 0
    %2532 = vmatpush.bf16.msra.mxu0 0
    %2533 = vmatpush.bf16.msra.mxu0 0
    %2534 = vmatpush.bf16.msra.mxu0 %v2508
    %2535 = vmatpush.bf16.msra.mxu0 %v2505
    %2536 = vmatpush.bf16.msra.mxu0 %v2502
    %2537 = vmatpush.bf16.msra.mxu0 %v2499
    %2538 = vmatmul.bf16.gmra.mxu0 %v2401
    %v2539 = vpop.f32.mrf.mxu0
    %v2540 = vadd.f32 %v2524, %v2539
    %v2541 = vpop.f32.mrf.mxu0
    %2542 = vdwg.mxu0
    %2543 = vmatpush.bf16.msra.mxu0 0
    %2544 = vmatpush.bf16.msra.mxu0 0
    %2545 = vmatpush.bf16.msra.mxu0 0
    %2546 = vmatpush.bf16.msra.mxu0 0
    %2547 = vmatpush.bf16.msra.mxu0 %v2509
    %2548 = vmatpush.bf16.msra.mxu0 %v2506
    %2549 = vmatpush.bf16.msra.mxu0 %v2503
    %2550 = vmatpush.bf16.msra.mxu0 %v2500
    %2551 = vmatmul.bf16.gmra.mxu0 %v2401
    %v2552 = vpop.f32.mrf.mxu0
    %v2553 = vadd.f32 %v2525, %v2552
    %v2554 = vpop.f32.mrf.mxu0
    %2555 = vdwg.mxu0
    %2556 = vmatpush.bf16.msra.mxu0 0
    %2557 = vmatpush.bf16.msra.mxu0 0
    %2558 = vmatpush.bf16.msra.mxu0 0
    %2559 = vmatpush.bf16.msra.mxu0 0
    %2560 = vmatpush.bf16.msra.mxu0 %v2510
    %2561 = vmatpush.bf16.msra.mxu0 %v2507
    %2562 = vmatpush.bf16.msra.mxu0 %v2504
    %2563 = vmatpush.bf16.msra.mxu0 %v2501
    %2564 = vmatmul.bf16.gmra.mxu0 %v2401
    %v2565 = vpop.f32.mrf.mxu0
    %v2566 = vadd.f32 %v2526, %v2565
    %v2567 = vpop.f32.mrf.mxu0
    %2568 = vdwg.mxu0
    %v2569 = vadd.f32 %v2413, 1.0
    %v2570 = vsel %vm254, %v2286, 0.0
    %2571 = vadd.xlane.f32.xlu0 %v2570
    %v2572 = vpop.xlane.xlu0 %2571
    %v2573 = vmul.f32 %v2572, %v434
    %v2574 = vsub.f32 %v2286, %v2573
    %v2575 = vmul.f32 %v2574, %v2574
    %v2576 = vsel %vm254, %v2575, 0.0
    %2577 = vadd.xlane.f32.xlu0 %v2576
    %v2578 = vpop.xlane.xlu0 %2577
    %v2579 = vmul.f32 %v2578, %v434
    %v2580 = vadd.f32 %v2579, 1e-06
    %v2581 = vrsqrt.pop %v2580
    %v2582 = vmul.f32 %v2581, %v2580
    %v2583 = vmul.f32 %v2582, %v2581
    %v2584 = vmul.f32 0.5, %v2583
    %v2585 = vsub.f32 1.5, %v2584
    %v2586 = vmul.f32 %v2581, %v2585
    %vm2587 = vweird.f32 %v2580
    %vm2588 = vweird.f32 %v2581
    %vm2589 = vmor %vm2587, %vm2588
    %v2590 = vsel %vm2589, %v2581, %v2586
    %v2591 = vmul.f32 %v2574, %v2590
    %v2592 = vperm.slane %v2569, 0
    %2594 = vrot.lane.b32.xlu0 %v2591, 64
    %v2595 = vpop.permute.xlu0 %2594
    %v2597 = vmul.f32 %v2592, %v2595
    %v2598 = vperm.slane %v2413, 0
    %2600 = vrot.lane.b32.xlu0 %v2598, 64
    %v2601 = vpop.permute.xlu0 %2600
    %v2603 = vadd.f32 %v2597, %v2601
    %v2604 = vpack.c.bf16 %v2603, %v2603
    %v2605 = vld [vmem:[%s19] sm:$0xff]
    %v2606 = vld [vmem:[%s19 + $0x8] sm:$0xff]
    %v2607 = vld [vmem:[%s19 + $0x10] sm:$0xff]
    %v2608 = vld [vmem:[%s19 + $0x18] sm:$0xff]
    %v2609 = vld [vmem:[%s19 + $0x20] sm:$0xff]
    %v2610 = vld [vmem:[%s19 + $0x28] sm:$0xff]
    %v2611 = vld [vmem:[%s19 + $0x30] sm:$0xff]
    %v2612 = vld [vmem:[%s19 + $0x38] sm:$0xff]
    %v2613 = vld [vmem:[%s21] sm:$0x3]
    %v2615 = vperm.slane %v2613, 0
    %v2616 = vperm.slane %v2613, 1
    %2620 = vrot.lane.b32.xlu0 %v2604, 64
    %v2621 = vpop.permute.xlu0 %2620
    %v2630 = vunpack.c.l.b16 %v2605
    %v2631 = vunpack.c.h.b16 %v2605
    %v2632 = vunpack.c.l.b16 %v2606
    %v2633 = vunpack.c.h.b16 %v2606
    %v2634 = vunpack.c.l.b16 %v2607
    %v2635 = vunpack.c.h.b16 %v2607
    %v2636 = vunpack.c.l.b16 %v2608
    %v2637 = vunpack.c.h.b16 %v2608
    %v2638 = vunpack.c.l.b16 %v2609
    %v2639 = vunpack.c.h.b16 %v2609
    %v2640 = vunpack.c.l.b16 %v2610
    %v2641 = vunpack.c.h.b16 %v2610
    %v2642 = vunpack.c.l.b16 %v2611
    %v2643 = vunpack.c.h.b16 %v2611
    %v2644 = vunpack.c.l.b16 %v2612
    %v2645 = vunpack.c.h.b16 %v2612
    %v2646 = vpack.c.b16 %v2632, %v2630
    %v2647 = vpack.c.b16 %v2633, %v2631
    %v2648 = vpack.c.b16 %v2636, %v2634
    %v2649 = vpack.c.b16 %v2637, %v2635
    %v2650 = vpack.c.b16 %v2640, %v2638
    %v2651 = vpack.c.b16 %v2641, %v2639
    %v2652 = vpack.c.b16 %v2644, %v2642
    %v2653 = vpack.c.b16 %v2645, %v2643
    %v2663 = vsel %vm254, %v2621, 0
    %2665 = vmatpush.bf16.msra.mxu0 0
    %2666 = vmatpush.bf16.msra.mxu0 0
    %2667 = vmatpush.bf16.msra.mxu0 0
    %2668 = vmatpush.bf16.msra.mxu0 0
    %2669 = vmatpush.bf16.msra.mxu0 %v2652
    %2670 = vmatpush.bf16.msra.mxu0 %v2650
    %2671 = vmatpush.bf16.msra.mxu0 %v2648
    %2672 = vmatpush.bf16.msra.mxu0 %v2646
    %2673 = vmatmul.bf16.gmra.mxu0 %v2663
    %v2674 = vpop.f32.mrf.mxu0
    %v2675 = vadd.f32 %v2615, %v2674
    %v2676 = vpop.f32.mrf.mxu0
    %2677 = vdwg.mxu0
    %2678 = vmatpush.bf16.msra.mxu0 0
    %2679 = vmatpush.bf16.msra.mxu0 0
    %2680 = vmatpush.bf16.msra.mxu0 0
    %2681 = vmatpush.bf16.msra.mxu0 0
    %2682 = vmatpush.bf16.msra.mxu0 %v2653
    %2683 = vmatpush.bf16.msra.mxu0 %v2651
    %2684 = vmatpush.bf16.msra.mxu0 %v2649
    %2685 = vmatpush.bf16.msra.mxu0 %v2647
    %2686 = vmatmul.bf16.gmra.mxu0 %v2663
    %v2687 = vpop.f32.mrf.mxu0
    %v2688 = vadd.f32 %v2616, %v2687
    %v2689 = vpop.f32.mrf.mxu0
    %2690 = vdwg.mxu0
    %v2691 = vadd.f32 %v2540, 1.0
    %v2692 = vsel %vm554, %v2289, 0.0
    %2693 = vadd.xlane.f32.xlu0 %v2692
    %v2694 = vpop.xlane.xlu0 %2693
    %v2695 = vmul.f32 %v2694, %v434
    %v2696 = vsub.f32 %v2289, %v2695
    %v2697 = vmul.f32 %v2696, %v2696
    %v2698 = vsel %vm554, %v2697, 0.0
    %2699 = vadd.xlane.f32.xlu0 %v2698
    %v2700 = vpop.xlane.xlu0 %2699
    %v2701 = vmul.f32 %v2700, %v434
    %v2702 = vadd.f32 %v2701, 1e-06
    %v2703 = vrsqrt.pop %v2702
    %v2704 = vmul.f32 %v2703, %v2702
    %v2705 = vmul.f32 %v2704, %v2703
    %v2706 = vmul.f32 0.5, %v2705
    %v2707 = vsub.f32 1.5, %v2706
    %v2708 = vmul.f32 %v2703, %v2707
    %vm2709 = vweird.f32 %v2702
    %vm2710 = vweird.f32 %v2703
    %vm2711 = vmor %vm2709, %vm2710
    %v2712 = vsel %vm2711, %v2703, %v2708
    %v2713 = vmul.f32 %v2696, %v2712
    %v2714 = vperm.slane %v2691, 0
    %2716 = vrot.lane.b32.xlu0 %v2713, 64
    %v2717 = vpop.permute.xlu0 %2716
    %v2719 = vmul.f32 %v2714, %v2717
    %v2720 = vperm.slane %v2540, 0
    %2722 = vrot.lane.b32.xlu0 %v2720, 64
    %v2723 = vpop.permute.xlu0 %2722
    %v2725 = vadd.f32 %v2719, %v2723
    %v2726 = vpack.c.bf16 %v2725, %v2725
    %v2727 = vld [vmem:[%s23] sm:$0xff]
    %v2728 = vld [vmem:[%s23 + $0x8] sm:$0xff]
    %v2729 = vld [vmem:[%s23 + $0x10] sm:$0xff]
    %v2730 = vld [vmem:[%s23 + $0x18] sm:$0xff]
    %v2731 = vld [vmem:[%s23 + $0x20] sm:$0xff]
    %v2732 = vld [vmem:[%s23 + $0x28] sm:$0xff]
    %v2733 = vld [vmem:[%s23 + $0x30] sm:$0xff]
    %v2734 = vld [vmem:[%s23 + $0x38] sm:$0xff]
    %v2735 = vld [vmem:[%s25] sm:$0x3]
    %v2737 = vperm.slane %v2735, 0
    %v2738 = vperm.slane %v2735, 1
    %2742 = vrot.lane.b32.xlu0 %v2726, 64
    %v2743 = vpop.permute.xlu0 %2742
    %v2752 = vunpack.c.l.b16 %v2727
    %v2753 = vunpack.c.h.b16 %v2727
    %v2754 = vunpack.c.l.b16 %v2728
    %v2755 = vunpack.c.h.b16 %v2728
    %v2756 = vunpack.c.l.b16 %v2729
    %v2757 = vunpack.c.h.b16 %v2729
    %v2758 = vunpack.c.l.b16 %v2730
    %v2759 = vunpack.c.h.b16 %v2730
    %v2760 = vunpack.c.l.b16 %v2731
    %v2761 = vunpack.c.h.b16 %v2731
    %v2762 = vunpack.c.l.b16 %v2732
    %v2763 = vunpack.c.h.b16 %v2732
    %v2764 = vunpack.c.l.b16 %v2733
    %v2765 = vunpack.c.h.b16 %v2733
    %v2766 = vunpack.c.l.b16 %v2734
    %v2767 = vunpack.c.h.b16 %v2734
    %v2768 = vpack.c.b16 %v2754, %v2752
    %v2769 = vpack.c.b16 %v2755, %v2753
    %v2770 = vpack.c.b16 %v2758, %v2756
    %v2771 = vpack.c.b16 %v2759, %v2757
    %v2772 = vpack.c.b16 %v2762, %v2760
    %v2773 = vpack.c.b16 %v2763, %v2761
    %v2774 = vpack.c.b16 %v2766, %v2764
    %v2775 = vpack.c.b16 %v2767, %v2765
    %v2785 = vsel %vm254, %v2743, 0
    %2787 = vmatpush.bf16.msra.mxu0 0
    %2788 = vmatpush.bf16.msra.mxu0 0
    %2789 = vmatpush.bf16.msra.mxu0 0
    %2790 = vmatpush.bf16.msra.mxu0 0
    %2791 = vmatpush.bf16.msra.mxu0 %v2774
    %2792 = vmatpush.bf16.msra.mxu0 %v2772
    %2793 = vmatpush.bf16.msra.mxu0 %v2770
    %2794 = vmatpush.bf16.msra.mxu0 %v2768
    %2795 = vmatmul.bf16.gmra.mxu0 %v2785
    %v2796 = vpop.f32.mrf.mxu0
    %v2797 = vadd.f32 %v2737, %v2796
    %v2798 = vpop.f32.mrf.mxu0
    %2799 = vdwg.mxu0
    %2800 = vmatpush.bf16.msra.mxu0 0
    %2801 = vmatpush.bf16.msra.mxu0 0
    %2802 = vmatpush.bf16.msra.mxu0 0
    %2803 = vmatpush.bf16.msra.mxu0 0
    %2804 = vmatpush.bf16.msra.mxu0 %v2775
    %2805 = vmatpush.bf16.msra.mxu0 %v2773
    %2806 = vmatpush.bf16.msra.mxu0 %v2771
    %2807 = vmatpush.bf16.msra.mxu0 %v2769
    %2808 = vmatmul.bf16.gmra.mxu0 %v2785
    %v2809 = vpop.f32.mrf.mxu0
    %v2810 = vadd.f32 %v2738, %v2809
    %v2811 = vpop.f32.mrf.mxu0
    %2812 = vdwg.mxu0
    %v2813 = vmul.f32 %v2675, %v2675
    %v2814 = vsel %vm677, %v2813, 0.0
    %2815 = vadd.xlane.f32.xlu0 %v2814
    %v2816 = vpop.xlane.xlu0 %2815
    %v2817 = vmul.f32 %v2816, %v687
    %v2818 = vadd.f32 %v2817, 1e-06
    %v2819 = vrsqrt.pop %v2818
    %v2820 = vmul.f32 %v2819, %v2818
    %v2821 = vmul.f32 %v2820, %v2819
    %v2822 = vmul.f32 0.5, %v2821
    %v2823 = vsub.f32 1.5, %v2822
    %v2824 = vmul.f32 %v2819, %v2823
    %vm2825 = vweird.f32 %v2818
    %vm2826 = vweird.f32 %v2819
    %vm2827 = vmor %vm2825, %vm2826
    %v2828 = vsel %vm2827, %v2819, %v2824
    %v2829 = vmul.f32 %v2675, %v2828
    %v2830 = vmul.f32 %v2829, %v702
    %2832 = vrot.lane.b32.xlu0 %v2813, 112
    %v2833 = vpop.permute.xlu0 %2832
    %v2835 = vsel %vm677, %v2833, 0.0
    %2836 = vadd.xlane.f32.xlu0 %v2835
    %v2837 = vpop.xlane.xlu0 %2836
    %v2838 = vmul.f32 %v2837, %v687
    %v2839 = vadd.f32 %v2838, 1e-06
    %v2840 = vrsqrt.pop %v2839
    %v2841 = vmul.f32 %v2840, %v2839
    %v2842 = vmul.f32 %v2841, %v2840
    %v2843 = vmul.f32 0.5, %v2842
    %v2844 = vsub.f32 1.5, %v2843
    %v2845 = vmul.f32 %v2840, %v2844
    %vm2846 = vweird.f32 %v2839
    %vm2847 = vweird.f32 %v2840
    %vm2848 = vmor %vm2846, %vm2847
    %v2849 = vsel %vm2848, %v2840, %v2845
    %v2850 = vmul.f32 %v2675, %v2849
    %v2851 = vmul.f32 %v2850, %v726
    %2852 = vrot.lane.b32.xlu0 %v2813, 96
    %v2853 = vpop.permute.xlu0 %2852
    %v2855 = vsel %vm677, %v2853, 0.0
    %2856 = vadd.xlane.f32.xlu0 %v2855
    %v2857 = vpop.xlane.xlu0 %2856
    %v2858 = vmul.f32 %v2857, %v687
    %v2859 = vadd.f32 %v2858, 1e-06
    %v2860 = vrsqrt.pop %v2859
    %v2861 = vmul.f32 %v2860, %v2859
    %v2862 = vmul.f32 %v2861, %v2860
    %v2863 = vmul.f32 0.5, %v2862
    %v2864 = vsub.f32 1.5, %v2863
    %v2865 = vmul.f32 %v2860, %v2864
    %vm2866 = vweird.f32 %v2859
    %vm2867 = vweird.f32 %v2860
    %vm2868 = vmor %vm2866, %vm2867
    %v2869 = vsel %vm2868, %v2860, %v2865
    %v2870 = vmul.f32 %v2675, %v2869
    %v2871 = vmul.f32 %v2870, %v749
    %2872 = vrot.lane.b32.xlu0 %v2813, 80
    %v2873 = vpop.permute.xlu0 %2872
    %v2875 = vsel %vm677, %v2873, 0.0
    %2876 = vadd.xlane.f32.xlu0 %v2875
    %v2877 = vpop.xlane.xlu0 %2876
    %v2878 = vmul.f32 %v2877, %v687
    %v2879 = vadd.f32 %v2878, 1e-06
    %v2880 = vrsqrt.pop %v2879
    %v2881 = vmul.f32 %v2880, %v2879
    %v2882 = vmul.f32 %v2881, %v2880
    %v2883 = vmul.f32 0.5, %v2882
    %v2884 = vsub.f32 1.5, %v2883
    %v2885 = vmul.f32 %v2880, %v2884
    %vm2886 = vweird.f32 %v2879
    %vm2887 = vweird.f32 %v2880
    %vm2888 = vmor %vm2886, %vm2887
    %v2889 = vsel %vm2888, %v2880, %v2885
    %v2890 = vmul.f32 %v2675, %v2889
    %v2891 = vmul.f32 %v2890, %v772
    %v2892 = vsel %vm677, %v2830, %v2851
    %v2893 = vsel %vm776, %v2892, %v2871
    %v2894 = vsel %vm778, %v2893, %v2891
    %2895 = vrot.lane.b32.xlu0 %v2813, 64
    %v2896 = vpop.permute.xlu0 %2895
    %v2898 = vsel %vm677, %v2896, 0.0
    %2899 = vadd.xlane.f32.xlu0 %v2898
    %v2900 = vpop.xlane.xlu0 %2899
    %v2901 = vmul.f32 %v2900, %v687
    %v2902 = vadd.f32 %v2901, 1e-06
    %v2903 = vrsqrt.pop %v2902
    %v2904 = vmul.f32 %v2903, %v2902
    %v2905 = vmul.f32 %v2904, %v2903
    %v2906 = vmul.f32 0.5, %v2905
    %v2907 = vsub.f32 1.5, %v2906
    %v2908 = vmul.f32 %v2903, %v2907
    %vm2909 = vweird.f32 %v2902
    %vm2910 = vweird.f32 %v2903
    %vm2911 = vmor %vm2909, %vm2910
    %v2912 = vsel %vm2911, %v2903, %v2908
    %v2913 = vmul.f32 %v2675, %v2912
    %v2914 = vmul.f32 %v2913, %v802
    %2915 = vrot.lane.b32.xlu0 %v2813, 48
    %v2916 = vpop.permute.xlu0 %2915
    %v2918 = vsel %vm677, %v2916, 0.0
    %2919 = vadd.xlane.f32.xlu0 %v2918
    %v2920 = vpop.xlane.xlu0 %2919
    %v2921 = vmul.f32 %v2920, %v687
    %v2922 = vadd.f32 %v2921, 1e-06
    %v2923 = vrsqrt.pop %v2922
    %v2924 = vmul.f32 %v2923, %v2922
    %v2925 = vmul.f32 %v2924, %v2923
    %v2926 = vmul.f32 0.5, %v2925
    %v2927 = vsub.f32 1.5, %v2926
    %v2928 = vmul.f32 %v2923, %v2927
    %vm2929 = vweird.f32 %v2922
    %vm2930 = vweird.f32 %v2923
    %vm2931 = vmor %vm2929, %vm2930
    %v2932 = vsel %vm2931, %v2923, %v2928
    %v2933 = vmul.f32 %v2675, %v2932
    %v2934 = vmul.f32 %v2933, %v825
    %2935 = vrot.lane.b32.xlu0 %v2813, 32
    %v2936 = vpop.permute.xlu0 %2935
    %v2938 = vsel %vm677, %v2936, 0.0
    %2939 = vadd.xlane.f32.xlu0 %v2938
    %v2940 = vpop.xlane.xlu0 %2939
    %v2941 = vmul.f32 %v2940, %v687
    %v2942 = vadd.f32 %v2941, 1e-06
    %v2943 = vrsqrt.pop %v2942
    %v2944 = vmul.f32 %v2943, %v2942
    %v2945 = vmul.f32 %v2944, %v2943
    %v2946 = vmul.f32 0.5, %v2945
    %v2947 = vsub.f32 1.5, %v2946
    %v2948 = vmul.f32 %v2943, %v2947
    %vm2949 = vweird.f32 %v2942
    %vm2950 = vweird.f32 %v2943
    %vm2951 = vmor %vm2949, %vm2950
    %v2952 = vsel %vm2951, %v2943, %v2948
    %v2953 = vmul.f32 %v2675, %v2952
    %v2954 = vmul.f32 %v2953, %v848
    %2955 = vrot.lane.b32.xlu0 %v2813, 16
    %v2956 = vpop.permute.xlu0 %2955
    %v2958 = vsel %vm677, %v2956, 0.0
    %2959 = vadd.xlane.f32.xlu0 %v2958
    %v2960 = vpop.xlane.xlu0 %2959
    %v2961 = vmul.f32 %v2960, %v687
    %v2962 = vadd.f32 %v2961, 1e-06
    %v2963 = vrsqrt.pop %v2962
    %v2964 = vmul.f32 %v2963, %v2962
    %v2965 = vmul.f32 %v2964, %v2963
    %v2966 = vmul.f32 0.5, %v2965
    %v2967 = vsub.f32 1.5, %v2966
    %v2968 = vmul.f32 %v2963, %v2967
    %vm2969 = vweird.f32 %v2962
    %vm2970 = vweird.f32 %v2963
    %vm2971 = vmor %vm2969, %vm2970
    %v2972 = vsel %vm2971, %v2963, %v2968
    %v2973 = vmul.f32 %v2675, %v2972
    %v2974 = vmul.f32 %v2973, %v871
    %2976 = vrot.lane.b32.xlu0 %v2914, 64
    %v2977 = vpop.permute.xlu0 %2976
    %2980 = vrot.lane.b32.xlu0 %v2934, 64
    %v2981 = vpop.permute.xlu0 %2980
    %2984 = vrot.lane.b32.xlu0 %v2954, 64
    %v2985 = vpop.permute.xlu0 %2984
    %2988 = vrot.lane.b32.xlu0 %v2974, 64
    %v2989 = vpop.permute.xlu0 %2988
    %v2991 = vsel %vm677, %v2977, %v2981
    %v2992 = vsel %vm776, %v2991, %v2985
    %v2993 = vsel %vm778, %v2992, %v2989
    %v2994 = vmul.f32 %v2797, %v2797
    %v2995 = vsel %vm894, %v2994, 0.0
    %2996 = vadd.xlane.f32.xlu0 %v2995
    %v2997 = vpop.xlane.xlu0 %2996
    %v2998 = vmul.f32 %v2997, %v687
    %v2999 = vadd.f32 %v2998, 1e-06
    %v3000 = vrsqrt.pop %v2999
    %v3001 = vmul.f32 %v3000, %v2999
    %v3002 = vmul.f32 %v3001, %v3000
    %v3003 = vmul.f32 0.5, %v3002
    %v3004 = vsub.f32 1.5, %v3003
    %v3005 = vmul.f32 %v3000, %v3004
    %vm3006 = vweird.f32 %v2999
    %vm3007 = vweird.f32 %v3000
    %vm3008 = vmor %vm3006, %vm3007
    %v3009 = vsel %vm3008, %v3000, %v3005
    %v3010 = vmul.f32 %v2797, %v3009
    %v3011 = vmul.f32 %v3010, %v912
    %3013 = vrot.lane.b32.xlu0 %v2994, 112
    %v3014 = vpop.permute.xlu0 %3013
    %v3016 = vsel %vm894, %v3014, 0.0
    %3017 = vadd.xlane.f32.xlu0 %v3016
    %v3018 = vpop.xlane.xlu0 %3017
    %v3019 = vmul.f32 %v3018, %v687
    %v3020 = vadd.f32 %v3019, 1e-06
    %v3021 = vrsqrt.pop %v3020
    %v3022 = vmul.f32 %v3021, %v3020
    %v3023 = vmul.f32 %v3022, %v3021
    %v3024 = vmul.f32 0.5, %v3023
    %v3025 = vsub.f32 1.5, %v3024
    %v3026 = vmul.f32 %v3021, %v3025
    %vm3027 = vweird.f32 %v3020
    %vm3028 = vweird.f32 %v3021
    %vm3029 = vmor %vm3027, %vm3028
    %v3030 = vsel %vm3029, %v3021, %v3026
    %v3031 = vmul.f32 %v2797, %v3030
    %v3032 = vmul.f32 %v3031, %v936
    %3033 = vrot.lane.b32.xlu0 %v2994, 96
    %v3034 = vpop.permute.xlu0 %3033
    %v3036 = vsel %vm894, %v3034, 0.0
    %3037 = vadd.xlane.f32.xlu0 %v3036
    %v3038 = vpop.xlane.xlu0 %3037
    %v3039 = vmul.f32 %v3038, %v687
    %v3040 = vadd.f32 %v3039, 1e-06
    %v3041 = vrsqrt.pop %v3040
    %v3042 = vmul.f32 %v3041, %v3040
    %v3043 = vmul.f32 %v3042, %v3041
    %v3044 = vmul.f32 0.5, %v3043
    %v3045 = vsub.f32 1.5, %v3044
    %v3046 = vmul.f32 %v3041, %v3045
    %vm3047 = vweird.f32 %v3040
    %vm3048 = vweird.f32 %v3041
    %vm3049 = vmor %vm3047, %vm3048
    %v3050 = vsel %vm3049, %v3041, %v3046
    %v3051 = vmul.f32 %v2797, %v3050
    %v3052 = vmul.f32 %v3051, %v959
    %3053 = vrot.lane.b32.xlu0 %v2994, 80
    %v3054 = vpop.permute.xlu0 %3053
    %v3056 = vsel %vm894, %v3054, 0.0
    %3057 = vadd.xlane.f32.xlu0 %v3056
    %v3058 = vpop.xlane.xlu0 %3057
    %v3059 = vmul.f32 %v3058, %v687
    %v3060 = vadd.f32 %v3059, 1e-06
    %v3061 = vrsqrt.pop %v3060
    %v3062 = vmul.f32 %v3061, %v3060
    %v3063 = vmul.f32 %v3062, %v3061
    %v3064 = vmul.f32 0.5, %v3063
    %v3065 = vsub.f32 1.5, %v3064
    %v3066 = vmul.f32 %v3061, %v3065
    %vm3067 = vweird.f32 %v3060
    %vm3068 = vweird.f32 %v3061
    %vm3069 = vmor %vm3067, %vm3068
    %v3070 = vsel %vm3069, %v3061, %v3066
    %v3071 = vmul.f32 %v2797, %v3070
    %v3072 = vmul.f32 %v3071, %v982
    %v3073 = vsel %vm677, %v3011, %v3032
    %v3074 = vsel %vm776, %v3073, %v3052
    %v3075 = vsel %vm778, %v3074, %v3072
    %3076 = vrot.lane.b32.xlu0 %v2994, 64
    %v3077 = vpop.permute.xlu0 %3076
    %v3079 = vsel %vm894, %v3077, 0.0
    %3080 = vadd.xlane.f32.xlu0 %v3079
    %v3081 = vpop.xlane.xlu0 %3080
    %v3082 = vmul.f32 %v3081, %v687
    %v3083 = vadd.f32 %v3082, 1e-06
    %v3084 = vrsqrt.pop %v3083
    %v3085 = vmul.f32 %v3084, %v3083
    %v3086 = vmul.f32 %v3085, %v3084
    %v3087 = vmul.f32 0.5, %v3086
    %v3088 = vsub.f32 1.5, %v3087
    %v3089 = vmul.f32 %v3084, %v3088
    %vm3090 = vweird.f32 %v3083
    %vm3091 = vweird.f32 %v3084
    %vm3092 = vmor %vm3090, %vm3091
    %v3093 = vsel %vm3092, %v3084, %v3089
    %v3094 = vmul.f32 %v2797, %v3093
    %v3095 = vmul.f32 %v3094, %v1010
    %3096 = vrot.lane.b32.xlu0 %v2994, 48
    %v3097 = vpop.permute.xlu0 %3096
    %v3099 = vsel %vm894, %v3097, 0.0
    %3100 = vadd.xlane.f32.xlu0 %v3099
    %v3101 = vpop.xlane.xlu0 %3100
    %v3102 = vmul.f32 %v3101, %v687
    %v3103 = vadd.f32 %v3102, 1e-06
    %v3104 = vrsqrt.pop %v3103
    %v3105 = vmul.f32 %v3104, %v3103
    %v3106 = vmul.f32 %v3105, %v3104
    %v3107 = vmul.f32 0.5, %v3106
    %v3108 = vsub.f32 1.5, %v3107
    %v3109 = vmul.f32 %v3104, %v3108
    %vm3110 = vweird.f32 %v3103
    %vm3111 = vweird.f32 %v3104
    %vm3112 = vmor %vm3110, %vm3111
    %v3113 = vsel %vm3112, %v3104, %v3109
    %v3114 = vmul.f32 %v2797, %v3113
    %v3115 = vmul.f32 %v3114, %v1033
    %3116 = vrot.lane.b32.xlu0 %v2994, 32
    %v3117 = vpop.permute.xlu0 %3116
    %v3119 = vsel %vm894, %v3117, 0.0
    %3120 = vadd.xlane.f32.xlu0 %v3119
    %v3121 = vpop.xlane.xlu0 %3120
    %v3122 = vmul.f32 %v3121, %v687
    %v3123 = vadd.f32 %v3122, 1e-06
    %v3124 = vrsqrt.pop %v3123
    %v3125 = vmul.f32 %v3124, %v3123
    %v3126 = vmul.f32 %v3125, %v3124
    %v3127 = vmul.f32 0.5, %v3126
    %v3128 = vsub.f32 1.5, %v3127
    %v3129 = vmul.f32 %v3124, %v3128
    %vm3130 = vweird.f32 %v3123
    %vm3131 = vweird.f32 %v3124
    %vm3132 = vmor %vm3130, %vm3131
    %v3133 = vsel %vm3132, %v3124, %v3129
    %v3134 = vmul.f32 %v2797, %v3133
    %v3135 = vmul.f32 %v3134, %v1056
    %3136 = vrot.lane.b32.xlu0 %v2994, 16
    %v3137 = vpop.permute.xlu0 %3136
    %v3139 = vsel %vm894, %v3137, 0.0
    %3140 = vadd.xlane.f32.xlu0 %v3139
    %v3141 = vpop.xlane.xlu0 %3140
    %v3142 = vmul.f32 %v3141, %v687
    %v3143 = vadd.f32 %v3142, 1e-06
    %v3144 = vrsqrt.pop %v3143
    %v3145 = vmul.f32 %v3144, %v3143
    %v3146 = vmul.f32 %v3145, %v3144
    %v3147 = vmul.f32 0.5, %v3146
    %v3148 = vsub.f32 1.5, %v3147
    %v3149 = vmul.f32 %v3144, %v3148
    %vm3150 = vweird.f32 %v3143
    %vm3151 = vweird.f32 %v3144
    %vm3152 = vmor %vm3150, %vm3151
    %v3153 = vsel %vm3152, %v3144, %v3149
    %v3154 = vmul.f32 %v2797, %v3153
    %v3155 = vmul.f32 %v3154, %v1079
    %3157 = vrot.lane.b32.xlu0 %v3095, 64
    %v3158 = vpop.permute.xlu0 %3157
    %3161 = vrot.lane.b32.xlu0 %v3115, 64
    %v3162 = vpop.permute.xlu0 %3161
    %3165 = vrot.lane.b32.xlu0 %v3135, 64
    %v3166 = vpop.permute.xlu0 %3165
    %3169 = vrot.lane.b32.xlu0 %v3155, 64
    %v3170 = vpop.permute.xlu0 %3169
    %v3172 = vsel %vm677, %v3158, %v3162
    %v3173 = vsel %vm776, %v3172, %v3166
    %v3174 = vsel %vm778, %v3173, %v3170
    %v3176 = vrot.slane %v2894, 4
    %v3178 = vsel %vm1104, %v3075, %v3176
    %v3180 = vrot.slane %v2993, 4
    %v3182 = vsel %vm1104, %v3174, %v3180
    %v3184 = vrot.slane %v2688, 4
    %v3186 = vsel %vm1104, %v2810, %v3184
    %v3187 = vpack.c.bf16 %v3176, %v3178
    %3188 = vxpose.xlu0.b32.start [1/16] %v3182, 128
    %3189 = vxpose.xlu0.b32.cont [2/16] %v3180, 128
    %3190 = vxpose.xlu0.b32.cont [3/16] 0.0, 128
    %3191 = vxpose.xlu0.b32.cont [4/16] 0.0, 128
    %3192 = vxpose.xlu0.b32.cont [5/16] 0.0, 128
    %3193 = vxpose.xlu0.b32.cont [6/16] 0.0, 128
    %3194 = vxpose.xlu0.b32.cont [7/16] 0.0, 128
    %3195 = vxpose.xlu0.b32.cont [8/16] 0.0, 128
    %3196 = vxpose.xlu0.b32.cont [9/16] 0.0, 128
    %3197 = vxpose.xlu0.b32.cont [10/16] 0.0, 128
    %3198 = vxpose.xlu0.b32.cont [11/16] 0.0, 128
    %3199 = vxpose.xlu0.b32.cont [12/16] 0.0, 128
    %3200 = vxpose.xlu0.b32.cont [13/16] 0.0, 128
    %3201 = vxpose.xlu0.b32.cont [14/16] 0.0, 128
    %3202 = vxpose.xlu0.b32.cont [15/16] 0.0, 128
    %3203 = vxpose.xlu0.b32.end [16/16] 0.0, 128
    %v3204 = vpop.trf.xlu0
    %v3205 = vpop.trf.xlu0
    %v3206 = vpop.trf.xlu0
    %v3207 = vpop.trf.xlu0
    %v3208 = vpop.trf.xlu0
    %v3209 = vpop.trf.xlu0
    %v3210 = vpop.trf.xlu0
    %v3211 = vpop.trf.xlu0
    %v3212 = vpop.trf.xlu0
    %v3213 = vpop.trf.xlu0
    %v3214 = vpop.trf.xlu0
    %v3215 = vpop.trf.xlu0
    %v3216 = vpop.trf.xlu0
    %v3217 = vpop.trf.xlu0
    %v3218 = vpop.trf.xlu0
    %v3219 = vpop.trf.xlu0
    %v3220 = vpack.c.bf16 %v3205, %v3204
    %v3221 = vpack.c.bf16 %v3184, %v3186
    %v3223 = vsel %vm677, %v3187, 0
    %3225 = vmatpush.bf16.msra.mxu0 0
    %3226 = vmatpush.bf16.msra.mxu0 0
    %3227 = vmatpush.bf16.msra.mxu0 0
    %3228 = vmatpush.bf16.msra.mxu0 0
    %3229 = vmatpush.bf16.msra.mxu0 0
    %3230 = vmatpush.bf16.msra.mxu0 0
    %3231 = vmatpush.bf16.msra.mxu0 0
    %3232 = vmatpush.bf16.msra.mxu0 %v3220
    %3233 = vmatmul.bf16.gmra.mxu0 %v3223
    %v3234 = vpop.f32.mrf.mxu0
    %v3235 = vadd.f32 0.0, %v3234
    %v3236 = vpop.f32.mrf.mxu0
    %v3237 = vadd.f32 0.0, %v3236
    %3238 = vdwg.mxu0
    %v3239 = vmul.f32 %v3235, 0.25
    %v3240 = vmul.f32 %v3237, 0.25
    %v3241 = vsel %vm1168, %v3239, -inf
    %3242 = vmax.xlane.f32.xlu0 %v3241
    %v3243 = vpop.xlane.xlu0 %3242
    %v3244 = vsel %vm1172, %v3240, -inf
    %3245 = vmax.xlane.f32.xlu0 %v3244
    %v3246 = vpop.xlane.xlu0 %3245
    %v3247 = vsub.f32 %v3239, %v3243
    %v3248 = vsub.f32 %v3240, %v3246
    %v3249 = vmul.f32 %v3247, 1.442695
    %v3250 = vpow.pop %v3249
    %v3251 = vmul.f32 %v3248, 1.442695
    %v3252 = vpow.pop %v3251
    %v3253 = vsel %vm1168, %v3250, 0.0
    %3254 = vadd.xlane.f32.xlu0 %v3253
    %v3255 = vpop.xlane.xlu0 %3254
    %v3256 = vsel %vm1172, %v3252, 0.0
    %3257 = vadd.xlane.f32.xlu0 %v3256
    %v3258 = vpop.xlane.xlu0 %3257
    %v3259 = vrcp.pop %v3255
    %v3260 = vrcp.pop %v3258
    %v3261 = vmul.f32 %v3250, %v3259
    %v3262 = vmul.f32 %v3252, %v3260
    %v3263 = vpack.c.bf16 %v3262, %v3261
    %v3265 = vsel %vm1168, %v3263, 0
    %v3268 = vsel %vm1196, %v3221, 0
    %3270 = vmatpush.bf16.msra.mxu0 0
    %3271 = vmatpush.bf16.msra.mxu0 0
    %3272 = vmatpush.bf16.msra.mxu0 0
    %3273 = vmatpush.bf16.msra.mxu0 0
    %3274 = vmatpush.bf16.msra.mxu0 0
    %3275 = vmatpush.bf16.msra.mxu0 0
    %3276 = vmatpush.bf16.msra.mxu0 0
    %3277 = vmatpush.bf16.msra.mxu0 %v3268
    %3278 = vmatmul.bf16.gmra.mxu0 %v3265
    %v3279 = vpop.f32.mrf.mxu0
    %v3280 = vadd.f32 0.0, %v3279
    %v3281 = vpop.f32.mrf.mxu0
    %v3282 = vadd.f32 0.0, %v3281
    %3283 = vdwg.mxu0
    %3285 = vrot.lane.b32.xlu0 %v3182, 112
    %v3286 = vpop.permute.xlu0 %3285
    %3287 = vrot.lane.b32.xlu0 %v3180, 112
    %v3288 = vpop.permute.xlu0 %3287
    %3291 = vxpose.xlu0.b32.start [1/16] %v3286, 128
    %3292 = vxpose.xlu0.b32.cont [2/16] %v3288, 128
    %3293 = vxpose.xlu0.b32.cont [3/16] 0.0, 128
    %3294 = vxpose.xlu0.b32.cont [4/16] 0.0, 128
    %3295 = vxpose.xlu0.b32.cont [5/16] 0.0, 128
    %3296 = vxpose.xlu0.b32.cont [6/16] 0.0, 128
    %3297 = vxpose.xlu0.b32.cont [7/16] 0.0, 128
    %3298 = vxpose.xlu0.b32.cont [8/16] 0.0, 128
    %3299 = vxpose.xlu0.b32.cont [9/16] 0.0, 128
    %3300 = vxpose.xlu0.b32.cont [10/16] 0.0, 128
    %3301 = vxpose.xlu0.b32.cont [11/16] 0.0, 128
    %3302 = vxpose.xlu0.b32.cont [12/16] 0.0, 128
    %3303 = vxpose.xlu0.b32.cont [13/16] 0.0, 128
    %3304 = vxpose.xlu0.b32.cont [14/16] 0.0, 128
    %3305 = vxpose.xlu0.b32.cont [15/16] 0.0, 128
    %3306 = vxpose.xlu0.b32.end [16/16] 0.0, 128
    %v3307 = vpop.trf.xlu0
    %v3308 = vpop.trf.xlu0
    %v3309 = vpop.trf.xlu0
    %v3310 = vpop.trf.xlu0
    %v3311 = vpop.trf.xlu0
    %v3312 = vpop.trf.xlu0
    %v3313 = vpop.trf.xlu0
    %v3314 = vpop.trf.xlu0
    %v3315 = vpop.trf.xlu0
    %v3316 = vpop.trf.xlu0
    %v3317 = vpop.trf.xlu0
    %v3318 = vpop.trf.xlu0
    %v3319 = vpop.trf.xlu0
    %v3320 = vpop.trf.xlu0
    %v3321 = vpop.trf.xlu0
    %v3322 = vpop.trf.xlu0
    %v3323 = vpack.c.bf16 %v3308, %v3307
    %3325 = vrot.lane.b32.xlu0 %v3187, 112
    %v3326 = vpop.permute.xlu0 %3325
    %v3328 = vsel %vm677, %v3326, 0
    %3330 = vmatpush.bf16.msra.mxu0 0
    %3331 = vmatpush.bf16.msra.mxu0 0
    %3332 = vmatpush.bf16.msra.mxu0 0
    %3333 = vmatpush.bf16.msra.mxu0 0
    %3334 = vmatpush.bf16.msra.mxu0 0
    %3335 = vmatpush.bf16.msra.mxu0 0
    %3336 = vmatpush.bf16.msra.mxu0 0
    %3337 = vmatpush.bf16.msra.mxu0 %v3323
    %3338 = vmatmul.bf16.gmra.mxu0 %v3328
    %v3339 = vpop.f32.mrf.mxu0
    %v3340 = vadd.f32 0.0, %v3339
    %v3341 = vpop.f32.mrf.mxu0
    %v3342 = vadd.f32 0.0, %v3341
    %3343 = vdwg.mxu0
    %v3344 = vmul.f32 %v3340, 0.25
    %v3345 = vmul.f32 %v3342, 0.25
    %v3346 = vsel %vm1168, %v3344, -inf
    %3347 = vmax.xlane.f32.xlu0 %v3346
    %v3348 = vpop.xlane.xlu0 %3347
    %v3349 = vsel %vm1172, %v3345, -inf
    %3350 = vmax.xlane.f32.xlu0 %v3349
    %v3351 = vpop.xlane.xlu0 %3350
    %v3352 = vsub.f32 %v3344, %v3348
    %v3353 = vsub.f32 %v3345, %v3351
    %v3354 = vmul.f32 %v3352, 1.442695
    %v3355 = vpow.pop %v3354
    %v3356 = vmul.f32 %v3353, 1.442695
    %v3357 = vpow.pop %v3356
    %v3358 = vsel %vm1168, %v3355, 0.0
    %3359 = vadd.xlane.f32.xlu0 %v3358
    %v3360 = vpop.xlane.xlu0 %3359
    %v3361 = vsel %vm1172, %v3357, 0.0
    %3362 = vadd.xlane.f32.xlu0 %v3361
    %v3363 = vpop.xlane.xlu0 %3362
    %v3364 = vrcp.pop %v3360
    %v3365 = vrcp.pop %v3363
    %v3366 = vmul.f32 %v3355, %v3364
    %v3367 = vmul.f32 %v3357, %v3365
    %v3368 = vpack.c.bf16 %v3367, %v3366
    %3370 = vrot.lane.b32.xlu0 %v3221, 112
    %v3371 = vpop.permute.xlu0 %3370
    %v3373 = vsel %vm1168, %v3368, 0
    %v3376 = vsel %vm1196, %v3371, 0
    %3378 = vmatpush.bf16.msra.mxu0 0
    %3379 = vmatpush.bf16.msra.mxu0 0
    %3380 = vmatpush.bf16.msra.mxu0 0
    %3381 = vmatpush.bf16.msra.mxu0 0
    %3382 = vmatpush.bf16.msra.mxu0 0
    %3383 = vmatpush.bf16.msra.mxu0 0
    %3384 = vmatpush.bf16.msra.mxu0 0
    %3385 = vmatpush.bf16.msra.mxu0 %v3376
    %3386 = vmatmul.bf16.gmra.mxu0 %v3373
    %v3387 = vpop.f32.mrf.mxu0
    %v3388 = vadd.f32 0.0, %v3387
    %v3389 = vpop.f32.mrf.mxu0
    %v3390 = vadd.f32 0.0, %v3389
    %3391 = vdwg.mxu0
    %3392 = vrot.lane.b32.xlu0 %v3182, 96
    %v3393 = vpop.permute.xlu0 %3392
    %3394 = vrot.lane.b32.xlu0 %v3180, 96
    %v3395 = vpop.permute.xlu0 %3394
    %3398 = vxpose.xlu0.b32.start [1/16] %v3393, 128
    %3399 = vxpose.xlu0.b32.cont [2/16] %v3395, 128
    %3400 = vxpose.xlu0.b32.cont [3/16] 0.0, 128
    %3401 = vxpose.xlu0.b32.cont [4/16] 0.0, 128
    %3402 = vxpose.xlu0.b32.cont [5/16] 0.0, 128
    %3403 = vxpose.xlu0.b32.cont [6/16] 0.0, 128
    %3404 = vxpose.xlu0.b32.cont [7/16] 0.0, 128
    %3405 = vxpose.xlu0.b32.cont [8/16] 0.0, 128
    %3406 = vxpose.xlu0.b32.cont [9/16] 0.0, 128
    %3407 = vxpose.xlu0.b32.cont [10/16] 0.0, 128
    %3408 = vxpose.xlu0.b32.cont [11/16] 0.0, 128
    %3409 = vxpose.xlu0.b32.cont [12/16] 0.0, 128
    %3410 = vxpose.xlu0.b32.cont [13/16] 0.0, 128
    %3411 = vxpose.xlu0.b32.cont [14/16] 0.0, 128
    %3412 = vxpose.xlu0.b32.cont [15/16] 0.0, 128
    %3413 = vxpose.xlu0.b32.end [16/16] 0.0, 128
    %v3414 = vpop.trf.xlu0
    %v3415 = vpop.trf.xlu0
    %v3416 = vpop.trf.xlu0
    %v3417 = vpop.trf.xlu0
    %v3418 = vpop.trf.xlu0
    %v3419 = vpop.trf.xlu0
    %v3420 = vpop.trf.xlu0
    %v3421 = vpop.trf.xlu0
    %v3422 = vpop.trf.xlu0
    %v3423 = vpop.trf.xlu0
    %v3424 = vpop.trf.xlu0
    %v3425 = vpop.trf.xlu0
    %v3426 = vpop.trf.xlu0
    %v3427 = vpop.trf.xlu0
    %v3428 = vpop.trf.xlu0
    %v3429 = vpop.trf.xlu0
    %v3430 = vpack.c.bf16 %v3415, %v3414
    %3431 = vrot.lane.b32.xlu0 %v3187, 96
    %v3432 = vpop.permute.xlu0 %3431
    %v3434 = vsel %vm677, %v3432, 0
    %3436 = vmatpush.bf16.msra.mxu0 0
    %3437 = vmatpush.bf16.msra.mxu0 0
    %3438 = vmatpush.bf16.msra.mxu0 0
    %3439 = vmatpush.bf16.msra.mxu0 0
    %3440 = vmatpush.bf16.msra.mxu0 0
    %3441 = vmatpush.bf16.msra.mxu0 0
    %3442 = vmatpush.bf16.msra.mxu0 0
    %3443 = vmatpush.bf16.msra.mxu0 %v3430
    %3444 = vmatmul.bf16.gmra.mxu0 %v3434
    %v3445 = vpop.f32.mrf.mxu0
    %v3446 = vadd.f32 0.0, %v3445
    %v3447 = vpop.f32.mrf.mxu0
    %v3448 = vadd.f32 0.0, %v3447
    %3449 = vdwg.mxu0
    %v3450 = vmul.f32 %v3446, 0.25
    %v3451 = vmul.f32 %v3448, 0.25
    %v3452 = vsel %vm1168, %v3450, -inf
    %3453 = vmax.xlane.f32.xlu0 %v3452
    %v3454 = vpop.xlane.xlu0 %3453
    %v3455 = vsel %vm1172, %v3451, -inf
    %3456 = vmax.xlane.f32.xlu0 %v3455
    %v3457 = vpop.xlane.xlu0 %3456
    %v3458 = vsub.f32 %v3450, %v3454
    %v3459 = vsub.f32 %v3451, %v3457
    %v3460 = vmul.f32 %v3458, 1.442695
    %v3461 = vpow.pop %v3460
    %v3462 = vmul.f32 %v3459, 1.442695
    %v3463 = vpow.pop %v3462
    %v3464 = vsel %vm1168, %v3461, 0.0
    %3465 = vadd.xlane.f32.xlu0 %v3464
    %v3466 = vpop.xlane.xlu0 %3465
    %v3467 = vsel %vm1172, %v3463, 0.0
    %3468 = vadd.xlane.f32.xlu0 %v3467
    %v3469 = vpop.xlane.xlu0 %3468
    %v3470 = vrcp.pop %v3466
    %v3471 = vrcp.pop %v3469
    %v3472 = vmul.f32 %v3461, %v3470
    %v3473 = vmul.f32 %v3463, %v3471
    %v3474 = vpack.c.bf16 %v3473, %v3472
    %3475 = vrot.lane.b32.xlu0 %v3221, 96
    %v3476 = vpop.permute.xlu0 %3475
    %v3478 = vsel %vm1168, %v3474, 0
    %v3481 = vsel %vm1196, %v3476, 0
    %3483 = vmatpush.bf16.msra.mxu0 0
    %3484 = vmatpush.bf16.msra.mxu0 0
    %3485 = vmatpush.bf16.msra.mxu0 0
    %3486 = vmatpush.bf16.msra.mxu0 0
    %3487 = vmatpush.bf16.msra.mxu0 0
    %3488 = vmatpush.bf16.msra.mxu0 0
    %3489 = vmatpush.bf16.msra.mxu0 0
    %3490 = vmatpush.bf16.msra.mxu0 %v3481
    %3491 = vmatmul.bf16.gmra.mxu0 %v3478
    %v3492 = vpop.f32.mrf.mxu0
    %v3493 = vadd.f32 0.0, %v3492
    %v3494 = vpop.f32.mrf.mxu0
    %v3495 = vadd.f32 0.0, %v3494
    %3496 = vdwg.mxu0
    %3497 = vrot.lane.b32.xlu0 %v3182, 80
    %v3498 = vpop.permute.xlu0 %3497
    %3499 = vrot.lane.b32.xlu0 %v3180, 80
    %v3500 = vpop.permute.xlu0 %3499
    %3503 = vxpose.xlu0.b32.start [1/16] %v3498, 128
    %3504 = vxpose.xlu0.b32.cont [2/16] %v3500, 128
    %3505 = vxpose.xlu0.b32.cont [3/16] 0.0, 128
    %3506 = vxpose.xlu0.b32.cont [4/16] 0.0, 128
    %3507 = vxpose.xlu0.b32.cont [5/16] 0.0, 128
    %3508 = vxpose.xlu0.b32.cont [6/16] 0.0, 128
    %3509 = vxpose.xlu0.b32.cont [7/16] 0.0, 128
    %3510 = vxpose.xlu0.b32.cont [8/16] 0.0, 128
    %3511 = vxpose.xlu0.b32.cont [9/16] 0.0, 128
    %3512 = vxpose.xlu0.b32.cont [10/16] 0.0, 128
    %3513 = vxpose.xlu0.b32.cont [11/16] 0.0, 128
    %3514 = vxpose.xlu0.b32.cont [12/16] 0.0, 128
    %3515 = vxpose.xlu0.b32.cont [13/16] 0.0, 128
    %3516 = vxpose.xlu0.b32.cont [14/16] 0.0, 128
    %3517 = vxpose.xlu0.b32.cont [15/16] 0.0, 128
    %3518 = vxpose.xlu0.b32.end [16/16] 0.0, 128
    %v3519 = vpop.trf.xlu0
    %v3520 = vpop.trf.xlu0
    %v3521 = vpop.trf.xlu0
    %v3522 = vpop.trf.xlu0
    %v3523 = vpop.trf.xlu0
    %v3524 = vpop.trf.xlu0
    %v3525 = vpop.trf.xlu0
    %v3526 = vpop.trf.xlu0
    %v3527 = vpop.trf.xlu0
    %v3528 = vpop.trf.xlu0
    %v3529 = vpop.trf.xlu0
    %v3530 = vpop.trf.xlu0
    %v3531 = vpop.trf.xlu0
    %v3532 = vpop.trf.xlu0
    %v3533 = vpop.trf.xlu0
    %v3534 = vpop.trf.xlu0
    %v3535 = vpack.c.bf16 %v3520, %v3519
    %3536 = vrot.lane.b32.xlu0 %v3187, 80
    %v3537 = vpop.permute.xlu0 %3536
    %v3539 = vsel %vm677, %v3537, 0
    %3541 = vmatpush.bf16.msra.mxu0 0
    %3542 = vmatpush.bf16.msra.mxu0 0
    %3543 = vmatpush.bf16.msra.mxu0 0
    %3544 = vmatpush.bf16.msra.mxu0 0
    %3545 = vmatpush.bf16.msra.mxu0 0
    %3546 = vmatpush.bf16.msra.mxu0 0
    %3547 = vmatpush.bf16.msra.mxu0 0
    %3548 = vmatpush.bf16.msra.mxu0 %v3535
    %3549 = vmatmul.bf16.gmra.mxu0 %v3539
    %v3550 = vpop.f32.mrf.mxu0
    %v3551 = vadd.f32 0.0, %v3550
    %v3552 = vpop.f32.mrf.mxu0
    %v3553 = vadd.f32 0.0, %v3552
    %3554 = vdwg.mxu0
    %v3555 = vmul.f32 %v3551, 0.25
    %v3556 = vmul.f32 %v3553, 0.25
    %v3557 = vsel %vm1168, %v3555, -inf
    %3558 = vmax.xlane.f32.xlu0 %v3557
    %v3559 = vpop.xlane.xlu0 %3558
    %v3560 = vsel %vm1172, %v3556, -inf
    %3561 = vmax.xlane.f32.xlu0 %v3560
    %v3562 = vpop.xlane.xlu0 %3561
    %v3563 = vsub.f32 %v3555, %v3559
    %v3564 = vsub.f32 %v3556, %v3562
    %v3565 = vmul.f32 %v3563, 1.442695
    %v3566 = vpow.pop %v3565
    %v3567 = vmul.f32 %v3564, 1.442695
    %v3568 = vpow.pop %v3567
    %v3569 = vsel %vm1168, %v3566, 0.0
    %3570 = vadd.xlane.f32.xlu0 %v3569
    %v3571 = vpop.xlane.xlu0 %3570
    %v3572 = vsel %vm1172, %v3568, 0.0
    %3573 = vadd.xlane.f32.xlu0 %v3572
    %v3574 = vpop.xlane.xlu0 %3573
    %v3575 = vrcp.pop %v3571
    %v3576 = vrcp.pop %v3574
    %v3577 = vmul.f32 %v3566, %v3575
    %v3578 = vmul.f32 %v3568, %v3576
    %v3579 = vpack.c.bf16 %v3578, %v3577
    %3580 = vrot.lane.b32.xlu0 %v3221, 80
    %v3581 = vpop.permute.xlu0 %3580
    %v3583 = vsel %vm1168, %v3579, 0
    %v3586 = vsel %vm1196, %v3581, 0
    %3588 = vmatpush.bf16.msra.mxu0 0
    %3589 = vmatpush.bf16.msra.mxu0 0
    %3590 = vmatpush.bf16.msra.mxu0 0
    %3591 = vmatpush.bf16.msra.mxu0 0
    %3592 = vmatpush.bf16.msra.mxu0 0
    %3593 = vmatpush.bf16.msra.mxu0 0
    %3594 = vmatpush.bf16.msra.mxu0 0
    %3595 = vmatpush.bf16.msra.mxu0 %v3586
    %3596 = vmatmul.bf16.gmra.mxu0 %v3583
    %v3597 = vpop.f32.mrf.mxu0
    %v3598 = vadd.f32 0.0, %v3597
    %v3599 = vpop.f32.mrf.mxu0
    %v3600 = vadd.f32 0.0, %v3599
    %3601 = vdwg.mxu0
    %3604 = vrot.lane.b32.xlu0 %v3388, 16
    %v3605 = vpop.permute.xlu0 %3604
    %3606 = vrot.lane.b32.xlu0 %v3390, 16
    %v3607 = vpop.permute.xlu0 %3606
    %3612 = vrot.lane.b32.xlu0 %v3493, 32
    %v3613 = vpop.permute.xlu0 %3612
    %3614 = vrot.lane.b32.xlu0 %v3495, 32
    %v3615 = vpop.permute.xlu0 %3614
    %3620 = vrot.lane.b32.xlu0 %v3598, 48
    %v3621 = vpop.permute.xlu0 %3620
    %3622 = vrot.lane.b32.xlu0 %v3600, 48
    %v3623 = vpop.permute.xlu0 %3622
    %v3626 = vsel %vm677, %v3280, %v3605
    %v3627 = vsel %vm677, %v3282, %v3607
    %v3628 = vsel %vm776, %v3626, %v3613
    %v3629 = vsel %vm776, %v3627, %v3615
    %v3630 = vsel %vm778, %v3628, %v3621
    %v3631 = vsel %vm778, %v3629, %v3623
    %v3632 = vpack.c.bf16 %v3631, %v3630
    %v3633 = vld [vmem:[%s35] sm:$0xf]
    %v3634 = vld [vmem:[%s35 + $0x4] sm:$0xf]
    %v3635 = vld [vmem:[%s35 + $0x8] sm:$0xf]
    %v3636 = vld [vmem:[%s35 + $0xc] sm:$0xf]
    %v3637 = vld [vmem:[%s35 + $0x10] sm:$0xf]
    %v3638 = vld [vmem:[%s35 + $0x14] sm:$0xf]
    %v3639 = vld [vmem:[%s35 + $0x18] sm:$0xf]
    %v3640 = vld [vmem:[%s35 + $0x1c] sm:$0xf]
    %v3641 = vld [vmem:[%s37] sm:$0x1]
    %v3643 = vperm.slane %v3641, 0
    %v3646 = vrot.slane %v3632, 2
    %v3655 = vunpack.c.l.b16 %v3633
    %v3656 = vunpack.c.l.b16 %v3634
    %v3657 = vunpack.c.l.b16 %v3635
    %v3658 = vunpack.c.l.b16 %v3636
    %v3659 = vunpack.c.l.b16 %v3637
    %v3660 = vunpack.c.l.b16 %v3638
    %v3661 = vunpack.c.l.b16 %v3639
    %v3662 = vunpack.c.l.b16 %v3640
    %v3663 = vpack.c.b16 %v3656, %v3655
    %v3664 = vpack.c.b16 %v3658, %v3657
    %v3665 = vpack.c.b16 %v3660, %v3659
    %v3666 = vpack.c.b16 %v3662, %v3661
    %v3672 = vsel %vm254, %v3646, 0
    %3674 = vmatpush.bf16.msra.mxu0 0
    %3675 = vmatpush.bf16.msra.mxu0 0
    %3676 = vmatpush.bf16.msra.mxu0 0
    %3677 = vmatpush.bf16.msra.mxu0 0
    %3678 = vmatpush.bf16.msra.mxu0 %v3666
    %3679 = vmatpush.bf16.msra.mxu0 %v3665
    %3680 = vmatpush.bf16.msra.mxu0 %v3664
    %3681 = vmatpush.bf16.msra.mxu0 %v3663
    %3682 = vmatmul.bf16.gmra.mxu0 %v3672
    %v3683 = vpop.f32.mrf.mxu0
    %v3684 = vadd.f32 %v3643, %v3683
    %v3685 = vpop.f32.mrf.mxu0
    %3686 = vdwg.mxu0
    %v3687 = vperm.slane %v2426, 0
    %v3688 = vmul.f32 %v3687, %v3684
    %v3689 = vadd.f32 %v2286, %v3688
    %v3690 = vadd.f32 %v2439, 1.0
    %v3691 = vsel %vm254, %v3689, 0.0
    %3692 = vadd.xlane.f32.xlu0 %v3691
    %v3693 = vpop.xlane.xlu0 %3692
    %v3694 = vmul.f32 %v3693, %v434
    %v3695 = vsub.f32 %v3689, %v3694
    %v3696 = vmul.f32 %v3695, %v3695
    %v3697 = vsel %vm254, %v3696, 0.0
    %3698 = vadd.xlane.f32.xlu0 %v3697
    %v3699 = vpop.xlane.xlu0 %3698
    %v3700 = vmul.f32 %v3699, %v434
    %v3701 = vadd.f32 %v3700, 1e-06
    %v3702 = vrsqrt.pop %v3701
    %v3703 = vmul.f32 %v3702, %v3701
    %v3704 = vmul.f32 %v3703, %v3702
    %v3705 = vmul.f32 0.5, %v3704
    %v3706 = vsub.f32 1.5, %v3705
    %v3707 = vmul.f32 %v3702, %v3706
    %vm3708 = vweird.f32 %v3701
    %vm3709 = vweird.f32 %v3702
    %vm3710 = vmor %vm3708, %vm3709
    %v3711 = vsel %vm3710, %v3702, %v3707
    %v3712 = vmul.f32 %v3695, %v3711
    %v3713 = vperm.slane %v3690, 0
    %v3714 = vmul.f32 %v3713, %v3712
    %3716 = vrot.lane.b32.xlu0 %v3687, 64
    %v3717 = vpop.permute.xlu0 %3716
    %v3719 = vadd.f32 %v3714, %v3717
    %v3720 = vpack.c.bf16 %v3719, %v3719
    %v3721 = vld [vmem:[%s43] sm:$0xff]
    %v3722 = vld [vmem:[%s43 + $0x8] sm:$0xff]
    %v3723 = vld [vmem:[%s43 + $0x10] sm:$0xff]
    %v3724 = vld [vmem:[%s43 + $0x18] sm:$0xff]
    %v3725 = vld [vmem:[%s43 + $0x20] sm:$0xff]
    %v3726 = vld [vmem:[%s43 + $0x28] sm:$0xff]
    %v3727 = vld [vmem:[%s43 + $0x30] sm:$0xff]
    %v3728 = vld [vmem:[%s43 + $0x38] sm:$0xff]
    %v3729 = vld [vmem:[%s45] sm:$0x3]
    %v3731 = vperm.slane %v3729, 0
    %v3732 = vperm.slane %v3729, 1
    %v3743 = vunpack.c.l.b16 %v3721
    %v3744 = vunpack.c.h.b16 %v3721
    %v3745 = vunpack.c.l.b16 %v3722
    %v3746 = vunpack.c.h.b16 %v3722
    %v3747 = vunpack.c.l.b16 %v3723
    %v3748 = vunpack.c.h.b16 %v3723
    %v3749 = vunpack.c.l.b16 %v3724
    %v3750 = vunpack.c.h.b16 %v3724
    %v3751 = vunpack.c.l.b16 %v3725
    %v3752 = vunpack.c.h.b16 %v3725
    %v3753 = vunpack.c.l.b16 %v3726
    %v3754 = vunpack.c.h.b16 %v3726
    %v3755 = vunpack.c.l.b16 %v3727
    %v3756 = vunpack.c.h.b16 %v3727
    %v3757 = vunpack.c.l.b16 %v3728
    %v3758 = vunpack.c.h.b16 %v3728
    %v3759 = vpack.c.b16 %v3745, %v3743
    %v3760 = vpack.c.b16 %v3746, %v3744
    %v3761 = vpack.c.b16 %v3749, %v3747
    %v3762 = vpack.c.b16 %v3750, %v3748
    %v3763 = vpack.c.b16 %v3753, %v3751
    %v3764 = vpack.c.b16 %v3754, %v3752
    %v3765 = vpack.c.b16 %v3757, %v3755
    %v3766 = vpack.c.b16 %v3758, %v3756
    %v3776 = vsel %vm254, %v3720, 0
    %3778 = vmatpush.bf16.msra.mxu0 0
    %3779 = vmatpush.bf16.msra.mxu0 0
    %3780 = vmatpush.bf16.msra.mxu0 0
    %3781 = vmatpush.bf16.msra.mxu0 0
    %3782 = vmatpush.bf16.msra.mxu0 %v3765
    %3783 = vmatpush.bf16.msra.mxu0 %v3763
    %3784 = vmatpush.bf16.msra.mxu0 %v3761
    %3785 = vmatpush.bf16.msra.mxu0 %v3759
    %3786 = vmatmul.bf16.gmra.mxu0 %v3776
    %v3787 = vpop.f32.mrf.mxu0
    %v3788 = vadd.f32 %v3731, %v3787
    %v3789 = vpop.f32.mrf.mxu0
    %3790 = vdwg.mxu0
    %3791 = vmatpush.bf16.msra.mxu0 0
    %3792 = vmatpush.bf16.msra.mxu0 0
    %3793 = vmatpush.bf16.msra.mxu0 0
    %3794 = vmatpush.bf16.msra.mxu0 0
    %3795 = vmatpush.bf16.msra.mxu0 %v3766
    %3796 = vmatpush.bf16.msra.mxu0 %v3764
    %3797 = vmatpush.bf16.msra.mxu0 %v3762
    %3798 = vmatpush.bf16.msra.mxu0 %v3760
    %3799 = vmatmul.bf16.gmra.mxu0 %v3776
    %v3800 = vpop.f32.mrf.mxu0
    %v3801 = vadd.f32 %v3732, %v3800
    %v3802 = vpop.f32.mrf.mxu0
    %3803 = vdwg.mxu0
    %v3804 = vmul.f32 %v3788, 0.5
    %v3805 = vmul.f32 %v3801, 0.5
    %v3806 = vmul.f32 %v3788, 0.044715
    %v3807 = vmul.f32 %v3801, 0.044715
    %v3808 = vmul.f32 %v3806, %v3788
    %v3809 = vmul.f32 %v3807, %v3801
    %v3810 = vmul.f32 %v3808, %v3788
    %v3811 = vmul.f32 %v3809, %v3801
    %v3812 = vadd.f32 %v3788, %v3810
    %v3813 = vadd.f32 %v3801, %v3811
    %v3814 = vmul.f32 %v3812, 0.7978846
    %v3815 = vmul.f32 %v3813, 0.7978846
    %v3816 = vtanh.pop %v3814
    %v3817 = vtanh.pop %v3815
    %v3818 = vadd.f32 %v3816, 1.0
    %v3819 = vadd.f32 %v3817, 1.0
    %v3820 = vmul.f32 %v3804, %v3818
    %v3821 = vmul.f32 %v3805, %v3819
    %v3822 = vpack.c.bf16 %v3820, %v3820
    %v3823 = vpack.c.bf16 %v3821, %v3821
    %v3824 = vld [vmem:[%s47] sm:$0xf]
    %v3825 = vld [vmem:[%s47 + $0x4] sm:$0xf]
    %v3826 = vld [vmem:[%s47 + $0x8] sm:$0xf]
    %v3827 = vld [vmem:[%s47 + $0xc] sm:$0xf]
    %v3828 = vld [vmem:[%s47 + $0x10] sm:$0xf]
    %v3829 = vld [vmem:[%s47 + $0x14] sm:$0xf]
    %v3830 = vld [vmem:[%s47 + $0x18] sm:$0xf]
    %v3831 = vld [vmem:[%s47 + $0x1c] sm:$0xf]
    %v3832 = vld [vmem:[%s47 + $0x20] sm:$0xf]
    %v3833 = vld [vmem:[%s47 + $0x24] sm:$0xf]
    %v3834 = vld [vmem:[%s47 + $0x28] sm:$0xf]
    %v3835 = vld [vmem:[%s47 + $0x2c] sm:$0xf]
    %v3836 = vld [vmem:[%s47 + $0x30] sm:$0xf]
    %v3837 = vld [vmem:[%s47 + $0x34] sm:$0xf]
    %v3838 = vld [vmem:[%s47 + $0x38] sm:$0xf]
    %v3839 = vld [vmem:[%s47 + $0x3c] sm:$0xf]
    %v3840 = vld [vmem:[%s47 + $0x40] sm:$0xf]
    %v3841 = vld [vmem:[%s47 + $0x44] sm:$0xf]
    %v3842 = vld [vmem:[%s47 + $0x48] sm:$0xf]
    %v3843 = vld [vmem:[%s47 + $0x4c] sm:$0xf]
    %v3844 = vld [vmem:[%s47 + $0x50] sm:$0xf]
    %v3845 = vld [vmem:[%s47 + $0x54] sm:$0xf]
    %v3846 = vld [vmem:[%s47 + $0x58] sm:$0xf]
    %v3847 = vld [vmem:[%s47 + $0x5c] sm:$0xf]
    %v3848 = vld [vmem:[%s47 + $0x60] sm:$0xf]
    %v3849 = vld [vmem:[%s47 + $0x64] sm:$0xf]
    %v3850 = vld [vmem:[%s47 + $0x68] sm:$0xf]
    %v3851 = vld [vmem:[%s47 + $0x6c] sm:$0xf]
    %v3852 = vld [vmem:[%s47 + $0x70] sm:$0xf]
    %v3853 = vld [vmem:[%s47 + $0x74] sm:$0xf]
    %v3854 = vld [vmem:[%s47 + $0x78] sm:$0xf]
    %v3855 = vld [vmem:[%s47 + $0x7c] sm:$0xf]
    %v3856 = vld [vmem:[%s49] sm:$0x1]
    %v3858 = vperm.slane %v3856, 0
    %v3892 = vunpack.c.l.b16 %v3824
    %v3893 = vunpack.c.l.b16 %v3825
    %v3894 = vunpack.c.l.b16 %v3826
    %v3895 = vunpack.c.l.b16 %v3827
    %v3896 = vunpack.c.l.b16 %v3828
    %v3897 = vunpack.c.l.b16 %v3829
    %v3898 = vunpack.c.l.b16 %v3830
    %v3899 = vunpack.c.l.b16 %v3831
    %v3900 = vunpack.c.l.b16 %v3832
    %v3901 = vunpack.c.l.b16 %v3833
    %v3902 = vunpack.c.l.b16 %v3834
    %v3903 = vunpack.c.l.b16 %v3835
    %v3904 = vunpack.c.l.b16 %v3836
    %v3905 = vunpack.c.l.b16 %v3837
    %v3906 = vunpack.c.l.b16 %v3838
    %v3907 = vunpack.c.l.b16 %v3839
    %v3908 = vunpack.c.l.b16 %v3840
    %v3909 = vunpack.c.l.b16 %v3841
    %v3910 = vunpack.c.l.b16 %v3842
    %v3911 = vunpack.c.l.b16 %v3843
    %v3912 = vunpack.c.l.b16 %v3844
    %v3913 = vunpack.c.l.b16 %v3845
    %v3914 = vunpack.c.l.b16 %v3846
    %v3915 = vunpack.c.l.b16 %v3847
    %v3916 = vunpack.c.l.b16 %v3848
    %v3917 = vunpack.c.l.b16 %v3849
    %v3918 = vunpack.c.l.b16 %v3850
    %v3919 = vunpack.c.l.b16 %v3851
    %v3920 = vunpack.c.l.b16 %v3852
    %v3921 = vunpack.c.l.b16 %v3853
    %v3922 = vunpack.c.l.b16 %v3854
    %v3923 = vunpack.c.l.b16 %v3855
    %v3924 = vpack.c.b16 %v3893, %v3892
    %v3925 = vpack.c.b16 %v3895, %v3894
    %v3926 = vpack.c.b16 %v3897, %v3896
    %v3927 = vpack.c.b16 %v3899, %v3898
    %v3928 = vpack.c.b16 %v3901, %v3900
    %v3929 = vpack.c.b16 %v3903, %v3902
    %v3930 = vpack.c.b16 %v3905, %v3904
    %v3931 = vpack.c.b16 %v3907, %v3906
    %v3932 = vpack.c.b16 %v3909, %v3908
    %v3933 = vpack.c.b16 %v3911, %v3910
    %v3934 = vpack.c.b16 %v3913, %v3912
    %v3935 = vpack.c.b16 %v3915, %v3914
    %v3936 = vpack.c.b16 %v3917, %v3916
    %v3937 = vpack.c.b16 %v3919, %v3918
    %v3938 = vpack.c.b16 %v3921, %v3920
    %v3939 = vpack.c.b16 %v3923, %v3922
    %3956 = vmatpush.bf16.msra.mxu0 %v3931
    %3957 = vmatpush.bf16.msra.mxu0 %v3930
    %3958 = vmatpush.bf16.msra.mxu0 %v3929
    %3959 = vmatpush.bf16.msra.mxu0 %v3928
    %3960 = vmatpush.bf16.msra.mxu0 %v3927
    %3961 = vmatpush.bf16.msra.mxu0 %v3926
    %3962 = vmatpush.bf16.msra.mxu0 %v3925
    %3963 = vmatpush.bf16.msra.mxu0 %v3924
    %3964 = vmatmul.bf16.gmra.mxu0 %v3822
    %v3965 = vpop.f32.mrf.mxu0
    %v3966 = vadd.f32 %v3858, %v3965
    %v3967 = vpop.f32.mrf.mxu0
    %3968 = vdwg.mxu0
    %3969 = vmatpush.bf16.msra.mxu0 %v3939
    %3970 = vmatpush.bf16.msra.mxu0 %v3938
    %3971 = vmatpush.bf16.msra.mxu0 %v3937
    %3972 = vmatpush.bf16.msra.mxu0 %v3936
    %3973 = vmatpush.bf16.msra.mxu0 %v3935
    %3974 = vmatpush.bf16.msra.mxu0 %v3934
    %3975 = vmatpush.bf16.msra.mxu0 %v3933
    %3976 = vmatpush.bf16.msra.mxu0 %v3932
    %3977 = vmatmul.bf16.gmra.mxu0 %v3823
    %v3978 = vpop.f32.mrf.mxu0
    %v3979 = vadd.f32 %v3966, %v3978
    %v3980 = vpop.f32.mrf.mxu0
    %3981 = vdwg.mxu0
    %v3982 = vperm.slane %v2439, 0
    %3984 = vrot.lane.b32.xlu0 %v3979, 64
    %v3985 = vpop.permute.xlu0 %3984
    %v3987 = vmul.f32 %v3982, %v3985
    %3989 = vrot.lane.b32.xlu0 %v3987, 64
    %v3990 = vpop.permute.xlu0 %3989
    %v3992 = vadd.f32 %v3689, %v3990
    %s3993 = scalar_lea.vmem [#allocation2], 8
    %3994 = vst.msk [vmem:[%s3993] sm:$0xff] %vm254, %v3992
    %v3995 = vpack.c.bf16 %v3630, %v3630
    %v3996 = vld [vmem:[%s39] sm:$0xf]
    %v3997 = vld [vmem:[%s39 + $0x4] sm:$0xf]
    %v3998 = vld [vmem:[%s39 + $0x8] sm:$0xf]
    %v3999 = vld [vmem:[%s39 + $0xc] sm:$0xf]
    %v4000 = vld [vmem:[%s39 + $0x10] sm:$0xf]
    %v4001 = vld [vmem:[%s39 + $0x14] sm:$0xf]
    %v4002 = vld [vmem:[%s39 + $0x18] sm:$0xf]
    %v4003 = vld [vmem:[%s39 + $0x1c] sm:$0xf]
    %v4004 = vld [vmem:[%s41] sm:$0x1]
    %v4006 = vperm.slane %v4004, 0
    %v4016 = vunpack.c.l.b16 %v3996
    %v4017 = vunpack.c.l.b16 %v3997
    %v4018 = vunpack.c.l.b16 %v3998
    %v4019 = vunpack.c.l.b16 %v3999
    %v4020 = vunpack.c.l.b16 %v4000
    %v4021 = vunpack.c.l.b16 %v4001
    %v4022 = vunpack.c.l.b16 %v4002
    %v4023 = vunpack.c.l.b16 %v4003
    %v4024 = vpack.c.b16 %v4017, %v4016
    %v4025 = vpack.c.b16 %v4019, %v4018
    %v4026 = vpack.c.b16 %v4021, %v4020
    %v4027 = vpack.c.b16 %v4023, %v4022
    %v4033 = vsel %vm254, %v3995, 0
    %4035 = vmatpush.bf16.msra.mxu0 0
    %4036 = vmatpush.bf16.msra.mxu0 0
    %4037 = vmatpush.bf16.msra.mxu0 0
    %4038 = vmatpush.bf16.msra.mxu0 0
    %4039 = vmatpush.bf16.msra.mxu0 %v4027
    %4040 = vmatpush.bf16.msra.mxu0 %v4026
    %4041 = vmatpush.bf16.msra.mxu0 %v4025
    %4042 = vmatpush.bf16.msra.mxu0 %v4024
    %4043 = vmatmul.bf16.gmra.mxu0 %v4033
    %v4044 = vpop.f32.mrf.mxu0
    %v4045 = vadd.f32 %v4006, %v4044
    %v4046 = vpop.f32.mrf.mxu0
    %4047 = vdwg.mxu0
    %v4048 = vperm.slane %v2553, 0
    %v4049 = vmul.f32 %v4048, %v4045
    %v4050 = vadd.f32 %v2289, %v4049
    %v4051 = vadd.f32 %v2566, 1.0
    %v4052 = vsel %vm554, %v4050, 0.0
    %4053 = vadd.xlane.f32.xlu0 %v4052
    %v4054 = vpop.xlane.xlu0 %4053
    %v4055 = vmul.f32 %v4054, %v434
    %v4056 = vsub.f32 %v4050, %v4055
    %v4057 = vmul.f32 %v4056, %v4056
    %v4058 = vsel %vm554, %v4057, 0.0
    %4059 = vadd.xlane.f32.xlu0 %v4058
    %v4060 = vpop.xlane.xlu0 %4059
    %v4061 = vmul.f32 %v4060, %v434
    %v4062 = vadd.f32 %v4061, 1e-06
    %v4063 = vrsqrt.pop %v4062
    %v4064 = vmul.f32 %v4063, %v4062
    %v4065 = vmul.f32 %v4064, %v4063
    %v4066 = vmul.f32 0.5, %v4065
    %v4067 = vsub.f32 1.5, %v4066
    %v4068 = vmul.f32 %v4063, %v4067
    %vm4069 = vweird.f32 %v4062
    %vm4070 = vweird.f32 %v4063
    %vm4071 = vmor %vm4069, %vm4070
    %v4072 = vsel %vm4071, %v4063, %v4068
    %v4073 = vmul.f32 %v4056, %v4072
    %v4074 = vperm.slane %v4051, 0
    %v4075 = vmul.f32 %v4074, %v4073
    %4077 = vrot.lane.b32.xlu0 %v4048, 64
    %v4078 = vpop.permute.xlu0 %4077
    %v4080 = vadd.f32 %v4075, %v4078
    %v4081 = vpack.c.bf16 %v4080, %v4080
    %v4082 = vld [vmem:[%s51] sm:$0xff]
    %v4083 = vld [vmem:[%s51 + $0x8] sm:$0xff]
    %v4084 = vld [vmem:[%s51 + $0x10] sm:$0xff]
    %v4085 = vld [vmem:[%s51 + $0x18] sm:$0xff]
    %v4086 = vld [vmem:[%s51 + $0x20] sm:$0xff]
    %v4087 = vld [vmem:[%s51 + $0x28] sm:$0xff]
    %v4088 = vld [vmem:[%s51 + $0x30] sm:$0xff]
    %v4089 = vld [vmem:[%s51 + $0x38] sm:$0xff]
    %v4090 = vld [vmem:[%s53] sm:$0x3]
    %v4092 = vperm.slane %v4090, 0
    %v4093 = vperm.slane %v4090, 1
    %v4104 = vunpack.c.l.b16 %v4082
    %v4105 = vunpack.c.h.b16 %v4082
    %v4106 = vunpack.c.l.b16 %v4083
    %v4107 = vunpack.c.h.b16 %v4083
    %v4108 = vunpack.c.l.b16 %v4084
    %v4109 = vunpack.c.h.b16 %v4084
    %v4110 = vunpack.c.l.b16 %v4085
    %v4111 = vunpack.c.h.b16 %v4085
    %v4112 = vunpack.c.l.b16 %v4086
    %v4113 = vunpack.c.h.b16 %v4086
    %v4114 = vunpack.c.l.b16 %v4087
    %v4115 = vunpack.c.h.b16 %v4087
    %v4116 = vunpack.c.l.b16 %v4088
    %v4117 = vunpack.c.h.b16 %v4088
    %v4118 = vunpack.c.l.b16 %v4089
    %v4119 = vunpack.c.h.b16 %v4089
    %v4120 = vpack.c.b16 %v4106, %v4104
    %v4121 = vpack.c.b16 %v4107, %v4105
    %v4122 = vpack.c.b16 %v4110, %v4108
    %v4123 = vpack.c.b16 %v4111, %v4109
    %v4124 = vpack.c.b16 %v4114, %v4112
    %v4125 = vpack.c.b16 %v4115, %v4113
    %v4126 = vpack.c.b16 %v4118, %v4116
    %v4127 = vpack.c.b16 %v4119, %v4117
    %v4137 = vsel %vm254, %v4081, 0
    %4139 = vmatpush.bf16.msra.mxu0 0
    %4140 = vmatpush.bf16.msra.mxu0 0
    %4141 = vmatpush.bf16.msra.mxu0 0
    %4142 = vmatpush.bf16.msra.mxu0 0
    %4143 = vmatpush.bf16.msra.mxu0 %v4126
    %4144 = vmatpush.bf16.msra.mxu0 %v4124
    %4145 = vmatpush.bf16.msra.mxu0 %v4122
    %4146 = vmatpush.bf16.msra.mxu0 %v4120
    %4147 = vmatmul.bf16.gmra.mxu0 %v4137
    %v4148 = vpop.f32.mrf.mxu0
    %v4149 = vadd.f32 %v4092, %v4148
    %v4150 = vpop.f32.mrf.mxu0
    %4151 = vdwg.mxu0
    %4152 = vmatpush.bf16.msra.mxu0 0
    %4153 = vmatpush.bf16.msra.mxu0 0
    %4154 = vmatpush.bf16.msra.mxu0 0
    %4155 = vmatpush.bf16.msra.mxu0 0
    %4156 = vmatpush.bf16.msra.mxu0 %v4127
    %4157 = vmatpush.bf16.msra.mxu0 %v4125
    %4158 = vmatpush.bf16.msra.mxu0 %v4123
    %4159 = vmatpush.bf16.msra.mxu0 %v4121
    %4160 = vmatmul.bf16.gmra.mxu0 %v4137
    %v4161 = vpop.f32.mrf.mxu0
    %v4162 = vadd.f32 %v4093, %v4161
    %v4163 = vpop.f32.mrf.mxu0
    %4164 = vdwg.mxu0
    %v4165 = vmul.f32 %v4149, 0.5
    %v4166 = vmul.f32 %v4162, 0.5
    %v4167 = vmul.f32 %v4149, 0.044715
    %v4168 = vmul.f32 %v4162, 0.044715
    %v4169 = vmul.f32 %v4167, %v4149
    %v4170 = vmul.f32 %v4168, %v4162
    %v4171 = vmul.f32 %v4169, %v4149
    %v4172 = vmul.f32 %v4170, %v4162
    %v4173 = vadd.f32 %v4149, %v4171
    %v4174 = vadd.f32 %v4162, %v4172
    %v4175 = vmul.f32 %v4173, 0.7978846
    %v4176 = vmul.f32 %v4174, 0.7978846
    %v4177 = vtanh.pop %v4175
    %v4178 = vtanh.pop %v4176
    %v4179 = vadd.f32 %v4177, 1.0
    %v4180 = vadd.f32 %v4178, 1.0
    %v4181 = vmul.f32 %v4165, %v4179
    %v4182 = vmul.f32 %v4166, %v4180
    %v4183 = vpack.c.bf16 %v4181, %v4181
    %v4184 = vpack.c.bf16 %v4182, %v4182
    %v4185 = vld [vmem:[%s55] sm:$0xf]
    %v4186 = vld [vmem:[%s55 + $0x4] sm:$0xf]
    %v4187 = vld [vmem:[%s55 + $0x8] sm:$0xf]
    %v4188 = vld [vmem:[%s55 + $0xc] sm:$0xf]
    %v4189 = vld [vmem:[%s55 + $0x10] sm:$0xf]
    %v4190 = vld [vmem:[%s55 + $0x14] sm:$0xf]
    %v4191 = vld [vmem:[%s55 + $0x18] sm:$0xf]
    %v4192 = vld [vmem:[%s55 + $0x1c] sm:$0xf]
    %v4193 = vld [vmem:[%s55 + $0x20] sm:$0xf]
    %v4194 = vld [vmem:[%s55 + $0x24] sm:$0xf]
    %v4195 = vld [vmem:[%s55 + $0x28] sm:$0xf]
    %v4196 = vld [vmem:[%s55 + $0x2c] sm:$0xf]
    %v4197 = vld [vmem:[%s55 + $0x30] sm:$0xf]
    %v4198 = vld [vmem:[%s55 + $0x34] sm:$0xf]
    %v4199 = vld [vmem:[%s55 + $0x38] sm:$0xf]
    %v4200 = vld [vmem:[%s55 + $0x3c] sm:$0xf]
    %v4201 = vld [vmem:[%s55 + $0x40] sm:$0xf]
    %v4202 = vld [vmem:[%s55 + $0x44] sm:$0xf]
    %v4203 = vld [vmem:[%s55 + $0x48] sm:$0xf]
    %v4204 = vld [vmem:[%s55 + $0x4c] sm:$0xf]
    %v4205 = vld [vmem:[%s55 + $0x50] sm:$0xf]
    %v4206 = vld [vmem:[%s55 + $0x54] sm:$0xf]
    %v4207 = vld [vmem:[%s55 + $0x58] sm:$0xf]
    %v4208 = vld [vmem:[%s55 + $0x5c] sm:$0xf]
    %v4209 = vld [vmem:[%s55 + $0x60] sm:$0xf]
    %v4210 = vld [vmem:[%s55 + $0x64] sm:$0xf]
    %v4211 = vld [vmem:[%s55 + $0x68] sm:$0xf]
    %v4212 = vld [vmem:[%s55 + $0x6c] sm:$0xf]
    %v4213 = vld [vmem:[%s55 + $0x70] sm:$0xf]
    %v4214 = vld [vmem:[%s55 + $0x74] sm:$0xf]
    %v4215 = vld [vmem:[%s55 + $0x78] sm:$0xf]
    %v4216 = vld [vmem:[%s55 + $0x7c] sm:$0xf]
    %v4217 = vld [vmem:[%s57] sm:$0x1]
    %v4219 = vperm.slane %v4217, 0
    %v4253 = vunpack.c.l.b16 %v4185
    %v4254 = vunpack.c.l.b16 %v4186
    %v4255 = vunpack.c.l.b16 %v4187
    %v4256 = vunpack.c.l.b16 %v4188
    %v4257 = vunpack.c.l.b16 %v4189
    %v4258 = vunpack.c.l.b16 %v4190
    %v4259 = vunpack.c.l.b16 %v4191
    %v4260 = vunpack.c.l.b16 %v4192
    %v4261 = vunpack.c.l.b16 %v4193
    %v4262 = vunpack.c.l.b16 %v4194
    %v4263 = vunpack.c.l.b16 %v4195
    %v4264 = vunpack.c.l.b16 %v4196
    %v4265 = vunpack.c.l.b16 %v4197
    %v4266 = vunpack.c.l.b16 %v4198
    %v4267 = vunpack.c.l.b16 %v4199
    %v4268 = vunpack.c.l.b16 %v4200
    %v4269 = vunpack.c.l.b16 %v4201
    %v4270 = vunpack.c.l.b16 %v4202
    %v4271 = vunpack.c.l.b16 %v4203
    %v4272 = vunpack.c.l.b16 %v4204
    %v4273 = vunpack.c.l.b16 %v4205
    %v4274 = vunpack.c.l.b16 %v4206
    %v4275 = vunpack.c.l.b16 %v4207
    %v4276 = vunpack.c.l.b16 %v4208
    %v4277 = vunpack.c.l.b16 %v4209
    %v4278 = vunpack.c.l.b16 %v4210
    %v4279 = vunpack.c.l.b16 %v4211
    %v4280 = vunpack.c.l.b16 %v4212
    %v4281 = vunpack.c.l.b16 %v4213
    %v4282 = vunpack.c.l.b16 %v4214
    %v4283 = vunpack.c.l.b16 %v4215
    %v4284 = vunpack.c.l.b16 %v4216
    %v4285 = vpack.c.b16 %v4254, %v4253
    %v4286 = vpack.c.b16 %v4256, %v4255
    %v4287 = vpack.c.b16 %v4258, %v4257
    %v4288 = vpack.c.b16 %v4260, %v4259
    %v4289 = vpack.c.b16 %v4262, %v4261
    %v4290 = vpack.c.b16 %v4264, %v4263
    %v4291 = vpack.c.b16 %v4266, %v4265
    %v4292 = vpack.c.b16 %v4268, %v4267
    %v4293 = vpack.c.b16 %v4270, %v4269
    %v4294 = vpack.c.b16 %v4272, %v4271
    %v4295 = vpack.c.b16 %v4274, %v4273
    %v4296 = vpack.c.b16 %v4276, %v4275
    %v4297 = vpack.c.b16 %v4278, %v4277
    %v4298 = vpack.c.b16 %v4280, %v4279
    %v4299 = vpack.c.b16 %v4282, %v4281
    %v4300 = vpack.c.b16 %v4284, %v4283
    %4317 = vmatpush.bf16.msra.mxu0 %v4292
    %4318 = vmatpush.bf16.msra.mxu0 %v4291
    %4319 = vmatpush.bf16.msra.mxu0 %v4290
    %4320 = vmatpush.bf16.msra.mxu0 %v4289
    %4321 = vmatpush.bf16.msra.mxu0 %v4288
    %4322 = vmatpush.bf16.msra.mxu0 %v4287
    %4323 = vmatpush.bf16.msra.mxu0 %v4286
    %4324 = vmatpush.bf16.msra.mxu0 %v4285
    %4325 = vmatmul.bf16.gmra.mxu0 %v4183
    %v4326 = vpop.f32.mrf.mxu0
    %v4327 = vadd.f32 %v4219, %v4326
    %v4328 = vpop.f32.mrf.mxu0
    %4329 = vdwg.mxu0
    %4330 = vmatpush.bf16.msra.mxu0 %v4300
    %4331 = vmatpush.bf16.msra.mxu0 %v4299
    %4332 = vmatpush.bf16.msra.mxu0 %v4298
    %4333 = vmatpush.bf16.msra.mxu0 %v4297
    %4334 = vmatpush.bf16.msra.mxu0 %v4296
    %4335 = vmatpush.bf16.msra.mxu0 %v4295
    %4336 = vmatpush.bf16.msra.mxu0 %v4294
    %4337 = vmatpush.bf16.msra.mxu0 %v4293
    %4338 = vmatmul.bf16.gmra.mxu0 %v4184
    %v4339 = vpop.f32.mrf.mxu0
    %v4340 = vadd.f32 %v4327, %v4339
    %v4341 = vpop.f32.mrf.mxu0
    %4342 = vdwg.mxu0
    %v4343 = vperm.slane %v2566, 0
    %4345 = vrot.lane.b32.xlu0 %v4340, 64
    %v4346 = vpop.permute.xlu0 %4345
    %v4348 = vmul.f32 %v4343, %v4346
    %4350 = vrot.lane.b32.xlu0 %v4348, 64
    %v4351 = vpop.permute.xlu0 %4350
    %v4353 = vadd.f32 %v4050, %v4351
    %s4354 = scalar_lea.vmem [#allocation4], 4
    %4355 = vst.msk [vmem:[%s4354] sm:$0xf] %vm554, %v4353
    // Predicated region
    $region118: #{double_stream_block.1} parent=1 // pred_check
      _
    $region119: #{double_stream_block.1} parent=1 // pred_check_branch
      %4357 = sbr.rel (0) target = $region121
    $region120: #{double_stream_block.1} parent=1 // pred_region
      %4359 = vsyncadd [#allocation3], 0
      %s4360 = sshll.u32 [#allocation2], 4
      %s4361 = int_to_ptr.vmem [resolvable:$true] %s4360
      %s4362 = sshll.u32 %s59, 4
      %s4363 = int_to_ptr.hbm [resolvable:$true] %s4362
      %4368 = dma.vmem_to_hbm [thread:$0]  %s4361, 256, %s4363, [#allocation3], 128, 128, 8
    $region121: #{double_stream_block.1} parent=1 // pred_fallthru
      _
    // Predicated region
    $region122: #{double_stream_block.1} parent=1 // pred_check
      _
    $region123: #{double_stream_block.1} parent=1 // pred_check_branch
      %4370 = sbr.rel (0) target = $region125
    $region124: #{double_stream_block.1} parent=1 // pred_region
      %4372 = vsyncadd [#allocation5], 0
      %s4373 = sshll.u32 [#allocation4], 4
      %s4374 = int_to_ptr.vmem [resolvable:$true] %s4373
      %s4375 = sshll.u32 %s61, 4
      %s4376 = int_to_ptr.hbm [resolvable:$true] %s4375
      %4381 = dma.vmem_to_hbm [thread:$0]  %s4374, 128, %s4376, [#allocation5], 64, 64, 4
    $region125: #{double_stream_block.1} parent=1 // pred_fallthru
      _
    // Predicated region
    $region126: #{double_stream_block.1} parent=1 // pred_check
      _
    $region127: #{double_stream_block.1} parent=1 // pred_check_branch
      %4383 = sbr.rel (0) target = $region129
    $region128: #{double_stream_block.1} parent=1 // pred_region
      %4385 = dma.done [#allocation3], 256
    $region129: #{double_stream_block.1} parent=1 // pred_fallthru
      _
    // Predicated region
    $region130: #{double_stream_block.1} parent=1 // pred_check
      _
    $region131: #{double_stream_block.1} parent=1 // pred_check_branch
      %4387 = sbr.rel (0) target = $region133
    $region132: #{double_stream_block.1} parent=1 // pred_region
      %4389 = dma.done [#allocation5], 128
    $region133: #{double_stream_block.1} parent=1 // pred_fallthru
      _
    %4390 = vsyncpa [#allocation3], 1
    %4391 = vsyncpa [#allocation5], 1

</llo_original>
